<compile_context>
chip_gen: v7x
topology: tpu7x:2x2x1
jax: 0.10.0
libtpu: 0.0.40
codegen_flags: <defaults>
</compile_context>

<pallas_src>
import functools
import sys

import jax
import jax.numpy as jnp
import numpy as np
from jax.experimental import pallas as pl
from jax.experimental.pallas import tpu as pltpu


# -----------------------------------------------------------------------------
# Kernel
# -----------------------------------------------------------------------------
def _quant_mlp_kernel(xq_ref, xs_ref, w1_ref, w1s_ref, w2_ref, w2s_ref, out_ref,
                      g_scr, amax_scr, acc_scr,
                      *, use_int8_mxu: bool, gelu_approximate: bool):
    """Grid = (token_tile i, phase p, h_chunk h).

    phase 0: fc1 chunk + GELU -> g_scr[h]; running per-token amax.
    phase 1: requantize g_scr[h] with the finished amax, accumulate the fc2
             chunk matmul; store the 16-bit output tile on the last chunk.
    """
    phase = pl.program_id(1)
    h = pl.program_id(2)
    n_h = pl.num_programs(2)

    @pl.when(phase == 0)
    def _fc1_gelu_amax():
        @pl.when(h == 0)
        def _init():
            amax_scr[...] = jnp.zeros_like(amax_scr)

        # fc1 chunk: int8 operands go straight to the MXU (int32 accumulate) on
        # v5e/v6e; on chips without an integer MXU (v7x, v4, ...) only the
        # current chunk is cast to bf16 (exact for int8 payloads), so the cast
        # overlaps the chunk DMA instead of re-casting full weights every tile.
        if use_int8_mxu:
            acc1 = jnp.dot(xq_ref[...], w1_ref[...],
                           preferred_element_type=jnp.int32).astype(jnp.float32)
        else:
            acc1 = jnp.dot(xq_ref[...].astype(jnp.bfloat16),
                           w1_ref[...].astype(jnp.bfloat16),
                           preferred_element_type=jnp.float32)
        y = acc1 * xs_ref[...] * w1s_ref[...]       # dequantized fc1 output chunk

        # GELU: tanh approximation runs on the EUP (its own VLIW slot); the
        # error (<~3e-3 abs) is well below the int8 quant step of the requant.
        g = jax.nn.gelu(y, approximate=gelu_approximate)
        g_scr[h] = g
        amax_scr[...] = jnp.maximum(
            amax_scr[...], jnp.max(jnp.abs(g), axis=-1, keepdims=True))

    @pl.when(phase == 1)
    def _requant_fc2():
        @pl.when(h == 0)
        def _init():
            acc_scr[...] = jnp.zeros_like(acc_scr)

        # gelu_and_quant: dynamic symmetric per-token int8 requantization.
        amax = jnp.maximum(amax_scr[...], 1e-8)                 # (tS, 1)
        inv_s2 = 127.0 * pl.reciprocal(amax, approx=True)       # EUP, (tS,1) only
        q = jnp.clip(jnp.round(g_scr[h] * inv_s2), -127.0, 127.0)

        if use_int8_mxu:
            # Single f32->int8 cast (values already rounded & clipped); exact
            # int32 accumulation across all H chunks, like the CUDA engine.
            acc_scr[...] += jnp.dot(q.astype(jnp.int8), w2_ref[...],
                                    preferred_element_type=jnp.int32)
        else:
            acc_scr[...] += jnp.dot(q.astype(jnp.bfloat16),
                                    w2_ref[...].astype(jnp.bfloat16),
                                    preferred_element_type=jnp.float32)

        @pl.when(h == n_h - 1)
        def _store():
            s2 = jnp.maximum(amax_scr[...], 1e-8) * (1.0 / 127.0)  # exact dequant scale
            out_ref[...] = (acc_scr[...].astype(jnp.float32) * s2
                            * w2s_ref[...]).astype(out_ref.dtype)


# -----------------------------------------------------------------------------
# Sizing helpers
# -----------------------------------------------------------------------------
def _round_up(x: int, m: int) -> int:
    return ((x + m - 1) // m) * m


def _device_kind() -> str:
    try:
        return jax.devices()[0].device_kind.lower()
    except Exception:
        return ""


def _supports_int8_mxu() -> bool:
    """int8 x int8 MXU exists on v5/v6; v7x (and <= v4) take the bf16 path."""
    kind = _device_kind()
    return ("v5" in kind) or ("v6" in kind)


def _vmem_capacity_bytes() -> int:
    try:
        return int(pltpu.get_tpu_info().vmem_capacity_bytes)
    except Exception:
        return 64 * 1024 * 1024        # conservative default (v7x per-core VMEM)


def _vmem_estimate(tile_s, tile_h, D, H, out_itemsize, use_int8_mxu) -> int:
    """Bytes of VMEM the kernel needs (double-buffered blocks + scratch + temps)."""
    n_h = max(H // tile_h, 1)
    w_chunks = 2 * (D * tile_h) + 2 * (tile_h * D)      # double-buffered int8 weight chunks
    w_scales = 2 * 4 * tile_h + 4 * D                   # streamed fc1 scale chunks + resident fc2 scale
    acts_in = 2 * (tile_s * D + tile_s * 128 * 4)       # int8 x tile + padded (tS,1) token scales
    acts_out = 2 * tile_s * D * out_itemsize            # 16-bit output tile
    g_scr = n_h * tile_s * tile_h * 4                   # f32 GELU scratch (== tS * H * 4)
    acc_scr = tile_s * D * 4
    amax_scr = tile_s * 128 * 4                         # (tS,1) padded to full lanes
    temps = 3 * tile_s * tile_h * 4                     # y / g / q element-wise temporaries
    if not use_int8_mxu:
        temps += 2 * D * tile_h * 2                     # per-chunk bf16 weight casts (fc1 + fc2)
    return w_chunks + w_scales + acts_in + acts_out + g_scr + acc_scr + amax_scr + temps


def _select_tiles(S, D, H, out_itemsize, use_int8_mxu, tile_s, tile_h, budget):
    kind = _device_kind()
    tile_h_auto = tile_h is None

    if tile_h_auto:
        tile_h = H
        for cand in (2048, 1024, 512, 256, 128):
            if H % cand == 0:
                tile_h = cand
                break

    if tile_s is None:
        if "v6" in kind:                      # 2x256^2 MXU, 128 MiB VMEM -> big token tiles
            prefs = (512, 256, 128, 64, 32)
        elif "v5" in kind:                    # 4x128^2 MXU, small scoped VMEM -> 128 fills it
            prefs = (128, 64, 32)
        else:                                 # v7x / unknown: 256 matches the 256-wide MXU
            prefs = (256, 128, 64, 32)
        tile_s = prefs[-1]
        for cand in prefs:
            if cand <= _round_up(S, 32) and \
               _vmem_estimate(cand, tile_h, D, H, out_itemsize, use_int8_mxu) <= budget:
                tile_s = cand
                break
        tile_s = min(tile_s, _round_up(S, 32))

    # Shrink the H chunk (only if auto-chosen) until the estimate fits the budget.
    while (tile_h_auto
           and _vmem_estimate(tile_s, tile_h, D, H, out_itemsize, use_int8_mxu) > budget
           and tile_h > 128 and tile_h % 2 == 0 and H % (tile_h // 2) == 0):
        tile_h //= 2
    return tile_s, tile_h


# -----------------------------------------------------------------------------
# Wrapper
# -----------------------------------------------------------------------------
def quant_mlp(xq, xs, w1q, w1s, w2q, w2s, *, tile_s=None, tile_h=None,
              out_dtype=jnp.bfloat16, use_int8_mxu=None, gelu_approximate=True,
              single_buffer_w2s=True):
    """xq:(S,D) int8, xs:(S,1) f32, w1q:(D,H) int8, w1s:(1,H) f32,
       w2q:(H,D) int8, w2s:(1,D) f32  ->  (S,D) 16-bit output."""
    S, D = xq.shape
    H = w1q.shape[1]
    assert w1q.shape == (D, H) and w2q.shape == (H, D)
    assert xs.shape == (S, 1) and w1s.shape == (1, H) and w2s.shape == (1, D)

    if use_int8_mxu is None:
        use_int8_mxu = _supports_int8_mxu()
    out_itemsize = jnp.dtype(out_dtype).itemsize

    capacity = _vmem_capacity_bytes()
    budget = int(0.85 * capacity)
    tile_s, tile_h = _select_tiles(S, D, H, out_itemsize, use_int8_mxu,
                                   tile_s, tile_h, budget)
    assert H % tile_h == 0, (H, tile_h)
    assert tile_h == H or tile_h % 128 == 0, tile_h
    assert tile_s % 8 == 0, tile_s
    n_h = H // tile_h

    # Pad the token axis so any S pipelines cleanly (no giant single block).
    S_pad = _round_up(S, tile_s)
    if S_pad != S:
        xq = jnp.pad(xq, ((0, S_pad - S), (0, 0)))
        xs = jnp.pad(xs, ((0, S_pad - S), (0, 0)))
    n_s = S_pad // tile_s

    kernel = functools.partial(_quant_mlp_kernel, use_int8_mxu=use_int8_mxu,
                               gelu_approximate=gelu_approximate)
    acc_dtype = jnp.int32 if use_int8_mxu else jnp.float32

    # Weight-chunk index maps: stream chunks in the phase that uses them and pin
    # the boundary chunk in the other phase, so each chunk is DMA'd exactly once
    # per token tile (no re-fetch across the phase switch).
    w1_idx = lambda i, p, h: (0, jnp.where(p == 0, h, n_h - 1))
    w2_idx = lambda i, p, h: (jnp.where(p == 0, 0, h), 0)

    w2s_spec = (pl.BlockSpec((1, D), lambda i, p, h: (0, 0),
                             pipeline_mode=pl.Buffered(1))
                if single_buffer_w2s else
                pl.BlockSpec((1, D), lambda i, p, h: (0, 0)))

    est = _vmem_estimate(tile_s, tile_h, D, H, out_itemsize, use_int8_mxu)
    vmem_limit = int(min(max(int(1.4 * est), 32 * 1024 * 1024),
                         int(0.9 * capacity)))

    cost = pl.CostEstimate(
        flops=4 * S_pad * D * H,                               # two matmuls
        transcendentals=S_pad * H,                             # tanh GELU
        bytes_accessed=(S_pad * D * (1 + out_itemsize) + 2 * D * H
                        + 4 * (H + D) + 4 * S_pad),
    )

    out = pl.pallas_call(
        kernel,
        out_shape=jax.ShapeDtypeStruct((S_pad, D), out_dtype),
        grid_spec=pltpu.PrefetchScalarGridSpec(
            num_scalar_prefetch=0,
            grid=(n_s, 2, n_h),                                # (token tile, phase, H chunk)
            in_specs=[
                pl.BlockSpec((tile_s, D), lambda i, p, h: (i, 0)),  # quantized_input_buffer
                pl.BlockSpec((tile_s, 1), lambda i, p, h: (i, 0)),  # quantized_scale_buffer
                pl.BlockSpec((D, tile_h), w1_idx),                  # fc1 int8 weight chunk
                pl.BlockSpec((1, tile_h), w1_idx),                  # fc1 per-out-channel scale chunk
                pl.BlockSpec((tile_h, D), w2_idx),                  # fc2 int8 weight chunk
                w2s_spec,                                           # fc2 per-out-channel scale (tiny)
            ],
            out_specs=pl.BlockSpec((tile_s, D), lambda i, p, h: (i, 0)),
            scratch_shapes=[
                pltpu.VMEM((n_h, tile_s, tile_h), jnp.float32),  # GELU output chunks
                pltpu.VMEM((tile_s, 1), jnp.float32),            # running per-token amax
                pltpu.VMEM((tile_s, D), acc_dtype),              # fc2 accumulator
            ],
        ),
        compiler_params=pltpu.CompilerParams(
            dimension_semantics=("parallel", "arbitrary", "arbitrary"),
            vmem_limit_bytes=vmem_limit,
        ),
        cost_estimate=cost,
    )(xq, xs, w1q, w1s, w2q, w2s)
    return out[:S] if S_pad != S else out


# -----------------------------------------------------------------------------
# Pure-JAX reference (mirrors fc1 -> gelu_and_quant -> fc2)
# -----------------------------------------------------------------------------
def _reference(xq, xs, w1q, w1s, w2q, w2s, out_dtype=jnp.bfloat16,
               gelu_approximate=True):
    x = xq.astype(jnp.float32)
    y = (x @ w1q.astype(jnp.float32)) * xs * w1s
    g = jax.nn.gelu(y, approximate=gelu_approximate)
    amax = jnp.maximum(jnp.max(jnp.abs(g), axis=-1, keepdims=True), 1e-8)
    s2 = amax * (1.0 / 127.0)
    q = jnp.clip(jnp.round(g * (127.0 / amax)), -127.0, 127.0)
    out = (q @ w2q.astype(jnp.float32)) * s2 * w2s
    return out.astype(out_dtype)


if __name__ == "__main__":
    # Small lane-dense toy shapes; tile_h=128 gives 4 H chunks so the streamed
    # two-phase path (fc1/gelu/amax then requant/fc2) is actually exercised.
    S, D, H = 256, 128, 512
    key = jax.random.PRNGKey(0)
    k1, k2, k3 = jax.random.split(key, 3)

    x_fp = jax.random.normal(k1, (S, D), jnp.float32)
    w1_fp = jax.random.normal(k2, (H, D), jnp.float32) * 0.1   # fc1: D -> H (torch [out, in])
    w2_fp = jax.random.normal(k3, (D, H), jnp.float32) * 0.1   # fc2: H -> D (torch [out, in])

    # W8: symmetric per-output-channel int8 weight quantization.
    w1s = jnp.max(jnp.abs(w1_fp), axis=1) / 127.0
    w1q = jnp.clip(jnp.round(w1_fp / w1s[:, None]), -127, 127).astype(jnp.int8)
    w2s = jnp.max(jnp.abs(w2_fp), axis=1) / 127.0
    w2q = jnp.clip(jnp.round(w2_fp / w2s[:, None]), -127, 127).astype(jnp.int8)

    # A8: dynamic per-token int8 activation quantization.
    xs = jnp.max(jnp.abs(x_fp), axis=1) / 127.0
    xq = jnp.clip(jnp.round(x_fp / xs[:, None]), -127, 127).astype(jnp.int8)

    # Glue: pre-transpose weights to [in, out] so the kernel computes x @ W.
    args = (
        xq,
        xs[:, None].astype(jnp.float32),
        jnp.transpose(w1q),                   # (D, H)
        w1s[None, :].astype(jnp.float32),
        jnp.transpose(w2q),                   # (H, D)
        w2s[None, :].astype(jnp.float32),
    )

    try:
        # Auto path: native int8 MXU on v5e/v6e, bf16 operands elsewhere.
        out = quant_mlp(*args, tile_h=128)
        jax.block_until_ready(out)
    except Exception as e:  # non-silent safety net; conservative lowering options
        print("[quant_mlp] tuned path failed (%s: %s); retrying with bf16 "
              "operands and default buffering" % (type(e).__name__, e),
              file=sys.stderr)
        out = quant_mlp(*args, tile_h=128, use_int8_mxu=False,
                        single_buffer_w2s=False)
        jax.block_until_ready(out)

    ref = _reference(*args, gelu_approximate=True)
    np.testing.assert_allclose(np.asarray(out.astype(jnp.float32)),
                               np.asarray(ref.astype(jnp.float32)),
                               rtol=5e-2, atol=5e-2)
    print("KERNEL_OK")
</pallas_src>

<mosaic_0001>
module attributes {stable_mosaic.version = 11 : i64} {
  func.func @_quant_mlp_kernel(%arg0: i32, %arg1: i32, %arg2: i32, %arg3: memref<256x128xi8, #tpu.memory_space<vmem>>, %arg4: memref<256x1xf32, #tpu.memory_space<vmem>>, %arg5: memref<128x128xi8, #tpu.memory_space<vmem>>, %arg6: memref<1x128xf32, #tpu.memory_space<vmem>>, %arg7: memref<128x128xi8, #tpu.memory_space<vmem>>, %arg8: memref<1x128xf32, #tpu.memory_space<vmem>>, %arg9: memref<256x128xbf16, #tpu.memory_space<vmem>>, %arg10: memref<4x256x128xf32, #tpu.memory_space<vmem>>, %arg11: memref<256x1xf32, #tpu.memory_space<vmem>>, %arg12: memref<256x128xf32, #tpu.memory_space<vmem>>) attributes {dimension_semantics = [#tpu.dimension_semantics<parallel>, #tpu.dimension_semantics<arbitrary>, #tpu.dimension_semantics<arbitrary>], iteration_bounds = array<i64: 1, 2, 4>, scalar_prefetch = 0 : i64, scratch_operands = 3 : i64, tpu.core_type = #tpu.core_type<tc>, window_params = [{transform_indices = @transform_0, window_bounds = array<i64: 256, 128>}, {transform_indices = @transform_1, window_bounds = array<i64: 256, 1>}, {transform_indices = @transform_2, window_bounds = array<i64: 128, 128>}, {transform_indices = @transform_3, window_bounds = array<i64: 1, 128>}, {transform_indices = @transform_4, window_bounds = array<i64: 128, 128>}, {pipeline_mode = #tpu.pipeline_mode<synchronous>, transform_indices = @transform_5, window_bounds = array<i64: 1, 128>}, {transform_indices = @transform_6, window_bounds = array<i64: 256, 128>}]} {
    %c0_i32 = arith.constant 0 : i32
    %0 = arith.cmpi eq, %arg1, %c0_i32 : i32
    %1 = arith.extui %0 : i1 to i32
    %c0_i32_0 = arith.constant 0 : i32
    %2 = arith.cmpi ne, %1, %c0_i32_0 : i32
    scf.if %2 {
      %c0_i32_2 = arith.constant 0 : i32
      %6 = arith.cmpi eq, %arg2, %c0_i32_2 : i32
      %7 = arith.extui %6 : i1 to i32
      %c0_i32_3 = arith.constant 0 : i32
      %8 = arith.cmpi ne, %7, %c0_i32_3 : i32
      scf.if %8 {
        %cst_22 = arith.constant 0.000000e+00 : f32
        %43 = vector.broadcast %cst_22 : f32 to vector<256x1xf32>
        %c0_23 = arith.constant 0 : index
        %c0_24 = arith.constant 0 : index
        %44 = vector.load %arg11[%c0_23, %c0_24] : memref<256x1xf32, #tpu.memory_space<vmem>>, vector<256x1xf32>
        tpu.vector_store %arg11[%c0_23, %c0_24], %43 {strides = array<i32>} : memref<256x1xf32, #tpu.memory_space<vmem>>, vector<256x1xf32>,
      } else {
      }
      %c0 = arith.constant 0 : index
      %c0_4 = arith.constant 0 : index
      %9 = vector.load %arg3[%c0, %c0_4] : memref<256x128xi8, #tpu.memory_space<vmem>>, vector<256x128xi8>
      %10 = arith.sitofp %9 : vector<256x128xi8> to vector<256x128xbf16>
      %c0_5 = arith.constant 0 : index
      %c0_6 = arith.constant 0 : index
      %11 = vector.load %arg5[%c0_5, %c0_6] : memref<128x128xi8, #tpu.memory_space<vmem>>, vector<128x128xi8>
      %12 = arith.sitofp %11 : vector<128x128xi8> to vector<128x128xbf16>
      %cst = arith.constant dense<0.000000e+00> : vector<256x128xf32>
      %13 = tpu.matmul %10, %12, %cst {dimension_numbers = #tpu.dot_dimension_numbers<[1], [0], [0], [1], [0, 0, 1, 1], [], []>} : vector<256x128xbf16>, vector<128x128xbf16>, vector<256x128xf32> -> vector<256x128xf32>
      %c0_7 = arith.constant 0 : index
      %c0_8 = arith.constant 0 : index
      %14 = vector.load %arg4[%c0_7, %c0_8] : memref<256x1xf32, #tpu.memory_space<vmem>>, vector<256x1xf32>
      %15 = vector.broadcast %14 : vector<256x1xf32> to vector<256x128xf32>
      %16 = arith.mulf %13, %15 : vector<256x128xf32>
      %c0_9 = arith.constant 0 : index
      %c0_10 = arith.constant 0 : index
      %17 = vector.load %arg6[%c0_9, %c0_10] : memref<1x128xf32, #tpu.memory_space<vmem>>, vector<1x128xf32>
      %18 = vector.broadcast %17 : vector<1x128xf32> to vector<256x128xf32>
      %19 = arith.mulf %16, %18 : vector<256x128xf32>
      %20 = arith.mulf %19, %19 : vector<256x128xf32>
      %21 = arith.mulf %19, %20 : vector<256x128xf32>
      %cst_11 = arith.constant 4.471500e-02 : f32
      %22 = vector.broadcast %cst_11 : f32 to vector<256x128xf32>
      %23 = arith.mulf %22, %21 : vector<256x128xf32>
      %24 = arith.addf %19, %23 : vector<256x128xf32>
      %cst_12 = arith.constant 0.797884583 : f32
      %25 = vector.broadcast %cst_12 : f32 to vector<256x128xf32>
      %26 = arith.mulf %25, %24 : vector<256x128xf32>
      %27 = math.tanh %26 : vector<256x128xf32>
      %cst_13 = arith.constant 1.000000e+00 : f32
      %28 = vector.broadcast %cst_13 : f32 to vector<256x128xf32>
      %29 = arith.addf %28, %27 : vector<256x128xf32>
      %cst_14 = arith.constant 5.000000e-01 : f32
      %30 = vector.broadcast %cst_14 : f32 to vector<256x128xf32>
      %31 = arith.mulf %30, %29 : vector<256x128xf32>
      %32 = arith.mulf %19, %31 : vector<256x128xf32>
      %33 = arith.index_cast %arg2 : i32 to index
      %c0_15 = arith.constant 0 : index
      %c0_16 = arith.constant 0 : index
      %34 = vector.load %arg10[%33, %c0_15, %c0_16] : memref<4x256x128xf32, #tpu.memory_space<vmem>>, vector<1x256x128xf32>
      %35 = vector.shape_cast %34 : vector<1x256x128xf32> to vector<256x128xf32>
      %36 = vector.shape_cast %32 : vector<256x128xf32> to vector<1x256x128xf32>
      tpu.vector_store %arg10[%33, %c0_15, %c0_16], %36 {strides = array<i32>} : memref<4x256x128xf32, #tpu.memory_space<vmem>>, vector<1x256x128xf32>,
      %c0_17 = arith.constant 0 : index
      %c0_18 = arith.constant 0 : index
      %37 = vector.load %arg11[%c0_17, %c0_18] : memref<256x1xf32, #tpu.memory_space<vmem>>, vector<256x1xf32>
      %38 = math.absf %32 : vector<256x128xf32>
      %cst_19 = arith.constant dense<0xFF800000> : vector<256xf32>
      %39 = vector.multi_reduction <maximumf>, %38, %cst_19 [1] : vector<256x128xf32> to vector<256xf32>
      %40 = vector.shape_cast %39 : vector<256xf32> to vector<256x1xf32>
      %41 = arith.maximumf %37, %40 : vector<256x1xf32>
      %c0_20 = arith.constant 0 : index
      %c0_21 = arith.constant 0 : index
      %42 = vector.load %arg11[%c0_20, %c0_21] : memref<256x1xf32, #tpu.memory_space<vmem>>, vector<256x1xf32>
      tpu.vector_store %arg11[%c0_20, %c0_21], %41 {strides = array<i32>} : memref<256x1xf32, #tpu.memory_space<vmem>>, vector<256x1xf32>,
    } else {
    }
    %c1_i32 = arith.constant 1 : i32
    %3 = arith.cmpi eq, %arg1, %c1_i32 : i32
    %4 = arith.extui %3 : i1 to i32
    %c0_i32_1 = arith.constant 0 : i32
    %5 = arith.cmpi ne, %4, %c0_i32_1 : i32
    scf.if %5 {
      %c0_i32_2 = arith.constant 0 : i32
      %6 = arith.cmpi eq, %arg2, %c0_i32_2 : i32
      %7 = arith.extui %6 : i1 to i32
      %c0_i32_3 = arith.constant 0 : i32
      %8 = arith.cmpi ne, %7, %c0_i32_3 : i32
      scf.if %8 {
        %cst_18 = arith.constant 0.000000e+00 : f32
        %35 = vector.broadcast %cst_18 : f32 to vector<256x128xf32>
        %c0_19 = arith.constant 0 : index
        %c0_20 = arith.constant 0 : index
        %36 = vector.load %arg12[%c0_19, %c0_20] : memref<256x128xf32, #tpu.memory_space<vmem>>, vector<256x128xf32>
        tpu.vector_store %arg12[%c0_19, %c0_20], %35 {strides = array<i32>} : memref<256x128xf32, #tpu.memory_space<vmem>>, vector<256x128xf32>,
      } else {
      }
      %c0 = arith.constant 0 : index
      %c0_4 = arith.constant 0 : index
      %9 = vector.load %arg11[%c0, %c0_4] : memref<256x1xf32, #tpu.memory_space<vmem>>, vector<256x1xf32>
      %cst = arith.constant 9.99999993E-9 : f32
      %10 = vector.broadcast %cst : f32 to vector<256x1xf32>
      %11 = arith.maximumf %9, %10 : vector<256x1xf32>
      %12 = tpu.reciprocal %11 {approx = true} : vector<256x1xf32> -> vector<256x1xf32>
      %cst_5 = arith.constant 1.270000e+02 : f32
      %13 = vector.broadcast %cst_5 : f32 to vector<256x1xf32>
      %14 = arith.mulf %13, %12 : vector<256x1xf32>
      %15 = arith.index_cast %arg2 : i32 to index
      %c0_6 = arith.constant 0 : index
      %c0_7 = arith.constant 0 : index
      %16 = vector.load %arg10[%15, %c0_6, %c0_7] : memref<4x256x128xf32, #tpu.memory_space<vmem>>, vector<1x256x128xf32>
      %17 = vector.shape_cast %16 : vector<1x256x128xf32> to vector<256x128xf32>
      %18 = vector.broadcast %14 : vector<256x1xf32> to vector<256x128xf32>
      %19 = arith.mulf %17, %18 : vector<256x128xf32>
      %20 = math.roundeven %19 : vector<256x128xf32>
      %cst_8 = arith.constant -1.270000e+02 : f32
      %cst_9 = arith.constant 1.270000e+02 : f32
      %21 = vector.broadcast %cst_8 : f32 to vector<256x128xf32>
      %22 = arith.maximumf %21, %20 : vector<256x128xf32>
      %23 = vector.broadcast %cst_9 : f32 to vector<256x128xf32>
      %24 = arith.minimumf %23, %22 : vector<256x128xf32>
      %c0_10 = arith.constant 0 : index
      %c0_11 = arith.constant 0 : index
      %25 = vector.load %arg12[%c0_10, %c0_11] : memref<256x128xf32, #tpu.memory_space<vmem>>, vector<256x128xf32>
      %26 = arith.truncf %24 : vector<256x128xf32> to vector<256x128xbf16>
      %c0_12 = arith.constant 0 : index
      %c0_13 = arith.constant 0 : index
      %27 = vector.load %arg7[%c0_12, %c0_13] : memref<128x128xi8, #tpu.memory_space<vmem>>, vector<128x128xi8>
      %28 = arith.sitofp %27 : vector<128x128xi8> to vector<128x128xbf16>
      %cst_14 = arith.constant dense<0.000000e+00> : vector<256x128xf32>
      %29 = tpu.matmul %26, %28, %cst_14 {dimension_numbers = #tpu.dot_dimension_numbers<[1], [0], [0], [1], [0, 0, 1, 1], [], []>} : vector<256x128xbf16>, vector<128x128xbf16>, vector<256x128xf32> -> vector<256x128xf32>
      %30 = arith.addf %25, %29 : vector<256x128xf32>
      %c0_15 = arith.constant 0 : index
      %c0_16 = arith.constant 0 : index
      %31 = vector.load %arg12[%c0_15, %c0_16] : memref<256x128xf32, #tpu.memory_space<vmem>>, vector<256x128xf32>
      tpu.vector_store %arg12[%c0_15, %c0_16], %30 {strides = array<i32>} : memref<256x128xf32, #tpu.memory_space<vmem>>, vector<256x128xf32>,
      %c3_i32 = arith.constant 3 : i32
      %32 = arith.cmpi eq, %arg2, %c3_i32 : i32
      %33 = arith.extui %32 : i1 to i32
      %c0_i32_17 = arith.constant 0 : i32
      %34 = arith.cmpi ne, %33, %c0_i32_17 : i32
      scf.if %34 {
        %c0_18 = arith.constant 0 : index
        %c0_19 = arith.constant 0 : index
        %35 = vector.load %arg11[%c0_18, %c0_19] : memref<256x1xf32, #tpu.memory_space<vmem>>, vector<256x1xf32>
        %cst_20 = arith.constant 9.99999993E-9 : f32
        %36 = vector.broadcast %cst_20 : f32 to vector<256x1xf32>
        %37 = arith.maximumf %35, %36 : vector<256x1xf32>
        %cst_21 = arith.constant 0.00787401571 : f32
        %38 = vector.broadcast %cst_21 : f32 to vector<256x1xf32>
        %39 = arith.mulf %37, %38 : vector<256x1xf32>
        %c0_22 = arith.constant 0 : index
        %c0_23 = arith.constant 0 : index
        %40 = vector.load %arg12[%c0_22, %c0_23] : memref<256x128xf32, #tpu.memory_space<vmem>>, vector<256x128xf32>
        %41 = vector.broadcast %39 : vector<256x1xf32> to vector<256x128xf32>
        %42 = arith.mulf %40, %41 : vector<256x128xf32>
        %c0_24 = arith.constant 0 : index
        %c0_25 = arith.constant 0 : index
        %43 = vector.load %arg8[%c0_24, %c0_25] : memref<1x128xf32, #tpu.memory_space<vmem>>, vector<1x128xf32>
        %44 = vector.broadcast %43 : vector<1x128xf32> to vector<256x128xf32>
        %45 = arith.mulf %42, %44 : vector<256x128xf32>
        %46 = arith.truncf %45 : vector<256x128xf32> to vector<256x128xbf16>
        %c0_26 = arith.constant 0 : index
        %c0_27 = arith.constant 0 : index
        %47 = vector.load %arg9[%c0_26, %c0_27] : memref<256x128xbf16, #tpu.memory_space<vmem>>, vector<256x128xbf16>
        tpu.vector_store %arg9[%c0_26, %c0_27], %46 {strides = array<i32>} : memref<256x128xbf16, #tpu.memory_space<vmem>>, vector<256x128xbf16>,
      } else {
      }
    } else {
    }
    return
  }
  func.func @transform_0(%arg0: i32, %arg1: i32, %arg2: i32) -> (i32, i32) {
    %c0_i32 = arith.constant 0 : i32
    %c0_i32_0 = arith.constant 0 : i32
    return %arg0, %c0_i32 : i32, i32
  }
  func.func @transform_1(%arg0: i32, %arg1: i32, %arg2: i32) -> (i32, i32) {
    %c0_i32 = arith.constant 0 : i32
    %c0_i32_0 = arith.constant 0 : i32
    return %arg0, %c0_i32 : i32, i32
  }
  func.func @transform_2(%arg0: i32, %arg1: i32, %arg2: i32) -> (i32, i32) {
    %c0_i32 = arith.constant 0 : i32
    %0 = arith.cmpi eq, %arg1, %c0_i32 : i32
    %c3_i32 = arith.constant 3 : i32
    %1 = arith.select %0, %arg2, %c3_i32 : i32
    %c0_i32_0 = arith.constant 0 : i32
    %c0_i32_1 = arith.constant 0 : i32
    return %c0_i32_0, %1 : i32, i32
  }
  func.func @transform_3(%arg0: i32, %arg1: i32, %arg2: i32) -> (i32, i32) {
    %c0_i32 = arith.constant 0 : i32
    %0 = arith.cmpi eq, %arg1, %c0_i32 : i32
    %c3_i32 = arith.constant 3 : i32
    %1 = arith.select %0, %arg2, %c3_i32 : i32
    %c0_i32_0 = arith.constant 0 : i32
    %c0_i32_1 = arith.constant 0 : i32
    return %c0_i32_0, %1 : i32, i32
  }
  func.func @transform_4(%arg0: i32, %arg1: i32, %arg2: i32) -> (i32, i32) {
    %c0_i32 = arith.constant 0 : i32
    %0 = arith.cmpi eq, %arg1, %c0_i32 : i32
    %c0_i32_0 = arith.constant 0 : i32
    %1 = arith.select %0, %c0_i32_0, %arg2 : i32
    %c0_i32_1 = arith.constant 0 : i32
    %c0_i32_2 = arith.constant 0 : i32
    return %1, %c0_i32_1 : i32, i32
  }
  func.func @transform_5(%arg0: i32, %arg1: i32, %arg2: i32) -> (i32, i32) {
    %c0_i32 = arith.constant 0 : i32
    %c0_i32_0 = arith.constant 0 : i32
    %c0_i32_1 = arith.constant 0 : i32
    return %c0_i32, %c0_i32_0 : i32, i32
  }
  func.func @transform_6(%arg0: i32, %arg1: i32, %arg2: i32) -> (i32, i32) {
    %c0_i32 = arith.constant 0 : i32
    %c0_i32_0 = arith.constant 0 : i32
    return %arg0, %c0_i32 : i32, i32
  }
}

module attributes {stable_mosaic.version = 11 : i64} {
  func.func @_quant_mlp_kernel(%arg0: i32, %arg1: i32, %arg2: i32, %arg3: memref<256x128xi8, #tpu.memory_space<vmem>>, %arg4: memref<256x1xf32, #tpu.memory_space<vmem>>, %arg5: memref<128x128xi8, #tpu.memory_space<vmem>>, %arg6: memref<1x128xf32, #tpu.memory_space<vmem>>, %arg7: memref<128x128xi8, #tpu.memory_space<vmem>>, %arg8: memref<1x128xf32, #tpu.memory_space<vmem>>, %arg9: memref<256x128xbf16, #tpu.memory_space<vmem>>, %arg10: memref<4x256x128xf32, #tpu.memory_space<vmem>>, %arg11: memref<256x1xf32, #tpu.memory_space<vmem>>, %arg12: memref<256x128xf32, #tpu.memory_space<vmem>>) attributes {dimension_semantics = [#tpu.dimension_semantics<parallel>, #tpu.dimension_semantics<arbitrary>, #tpu.dimension_semantics<arbitrary>], iteration_bounds = array<i64: 1, 2, 4>, scalar_prefetch = 0 : i64, scratch_operands = 3 : i64, tpu.core_type = #tpu.core_type<tc>, window_params = [{transform_indices = @transform_0, window_bounds = array<i64: 256, 128>}, {transform_indices = @transform_1, window_bounds = array<i64: 256, 1>}, {transform_indices = @transform_2, window_bounds = array<i64: 128, 128>}, {transform_indices = @transform_3, window_bounds = array<i64: 1, 128>}, {transform_indices = @transform_4, window_bounds = array<i64: 128, 128>}, {pipeline_mode = #tpu.pipeline_mode<synchronous>, transform_indices = @transform_5, window_bounds = array<i64: 1, 128>}, {transform_indices = @transform_6, window_bounds = array<i64: 256, 128>}]} {
    %c0_i32 = arith.constant 0 : i32
    %0 = arith.cmpi eq, %arg1, %c0_i32 : i32
    %1 = arith.extui %0 : i1 to i32
    %c0_i32_0 = arith.constant 0 : i32
    %2 = arith.cmpi ne, %1, %c0_i32_0 : i32
    scf.if %2 {
      %c0_i32_2 = arith.constant 0 : i32
      %6 = arith.cmpi eq, %arg2, %c0_i32_2 : i32
      %7 = arith.extui %6 : i1 to i32
      %c0_i32_3 = arith.constant 0 : i32
      %8 = arith.cmpi ne, %7, %c0_i32_3 : i32
      scf.if %8 {
        %cst_22 = arith.constant 0.000000e+00 : f32
        %43 = vector.broadcast %cst_22 : f32 to vector<256x1xf32>
        %c0_23 = arith.constant 0 : index
        %c0_24 = arith.constant 0 : index
        %44 = vector.load %arg11[%c0_23, %c0_24] : memref<256x1xf32, #tpu.memory_space<vmem>>, vector<256x1xf32>
        tpu.vector_store %arg11[%c0_23, %c0_24], %43 {strides = array<i32>} : memref<256x1xf32, #tpu.memory_space<vmem>>, vector<256x1xf32>,
      } else {
      }
      %c0 = arith.constant 0 : index
      %c0_4 = arith.constant 0 : index
      %9 = vector.load %arg3[%c0, %c0_4] : memref<256x128xi8, #tpu.memory_space<vmem>>, vector<256x128xi8>
      %10 = arith.sitofp %9 : vector<256x128xi8> to vector<256x128xbf16>
      %c0_5 = arith.constant 0 : index
      %c0_6 = arith.constant 0 : index
      %11 = vector.load %arg5[%c0_5, %c0_6] : memref<128x128xi8, #tpu.memory_space<vmem>>, vector<128x128xi8>
      %12 = arith.sitofp %11 : vector<128x128xi8> to vector<128x128xbf16>
      %cst = arith.constant dense<0.000000e+00> : vector<256x128xf32>
      %13 = tpu.matmul %10, %12, %cst {dimension_numbers = #tpu.dot_dimension_numbers<[1], [0], [0], [1], [0, 0, 1, 1], [], []>} : vector<256x128xbf16>, vector<128x128xbf16>, vector<256x128xf32> -> vector<256x128xf32>
      %c0_7 = arith.constant 0 : index
      %c0_8 = arith.constant 0 : index
      %14 = vector.load %arg4[%c0_7, %c0_8] : memref<256x1xf32, #tpu.memory_space<vmem>>, vector<256x1xf32>
      %15 = vector.broadcast %14 : vector<256x1xf32> to vector<256x128xf32>
      %16 = arith.mulf %13, %15 : vector<256x128xf32>
      %c0_9 = arith.constant 0 : index
      %c0_10 = arith.constant 0 : index
      %17 = vector.load %arg6[%c0_9, %c0_10] : memref<1x128xf32, #tpu.memory_space<vmem>>, vector<1x128xf32>
      %18 = vector.broadcast %17 : vector<1x128xf32> to vector<256x128xf32>
      %19 = arith.mulf %16, %18 : vector<256x128xf32>
      %20 = arith.mulf %19, %19 : vector<256x128xf32>
      %21 = arith.mulf %19, %20 : vector<256x128xf32>
      %cst_11 = arith.constant 4.471500e-02 : f32
      %22 = vector.broadcast %cst_11 : f32 to vector<256x128xf32>
      %23 = arith.mulf %22, %21 : vector<256x128xf32>
      %24 = arith.addf %19, %23 : vector<256x128xf32>
      %cst_12 = arith.constant 0.797884583 : f32
      %25 = vector.broadcast %cst_12 : f32 to vector<256x128xf32>
      %26 = arith.mulf %25, %24 : vector<256x128xf32>
      %27 = math.tanh %26 : vector<256x128xf32>
      %cst_13 = arith.constant 1.000000e+00 : f32
      %28 = vector.broadcast %cst_13 : f32 to vector<256x128xf32>
      %29 = arith.addf %28, %27 : vector<256x128xf32>
      %cst_14 = arith.constant 5.000000e-01 : f32
      %30 = vector.broadcast %cst_14 : f32 to vector<256x128xf32>
      %31 = arith.mulf %30, %29 : vector<256x128xf32>
      %32 = arith.mulf %19, %31 : vector<256x128xf32>
      %33 = arith.index_cast %arg2 : i32 to index
      %c0_15 = arith.constant 0 : index
      %c0_16 = arith.constant 0 : index
      %34 = vector.load %arg10[%33, %c0_15, %c0_16] : memref<4x256x128xf32, #tpu.memory_space<vmem>>, vector<1x256x128xf32>
      %35 = vector.shape_cast %34 : vector<1x256x128xf32> to vector<256x128xf32>
      %36 = vector.shape_cast %32 : vector<256x128xf32> to vector<1x256x128xf32>
      tpu.vector_store %arg10[%33, %c0_15, %c0_16], %36 {strides = array<i32>} : memref<4x256x128xf32, #tpu.memory_space<vmem>>, vector<1x256x128xf32>,
      %c0_17 = arith.constant 0 : index
      %c0_18 = arith.constant 0 : index
      %37 = vector.load %arg11[%c0_17, %c0_18] : memref<256x1xf32, #tpu.memory_space<vmem>>, vector<256x1xf32>
      %38 = math.absf %32 : vector<256x128xf32>
      %cst_19 = arith.constant dense<0xFF800000> : vector<256xf32>
      %39 = vector.multi_reduction <maximumf>, %38, %cst_19 [1] : vector<256x128xf32> to vector<256xf32>
      %40 = vector.shape_cast %39 : vector<256xf32> to vector<256x1xf32>
      %41 = arith.maximumf %37, %40 : vector<256x1xf32>
      %c0_20 = arith.constant 0 : index
      %c0_21 = arith.constant 0 : index
      %42 = vector.load %arg11[%c0_20, %c0_21] : memref<256x1xf32, #tpu.memory_space<vmem>>, vector<256x1xf32>
      tpu.vector_store %arg11[%c0_20, %c0_21], %41 {strides = array<i32>} : memref<256x1xf32, #tpu.memory_space<vmem>>, vector<256x1xf32>,
    } else {
    }
    %c1_i32 = arith.constant 1 : i32
    %3 = arith.cmpi eq, %arg1, %c1_i32 : i32
    %4 = arith.extui %3 : i1 to i32
    %c0_i32_1 = arith.constant 0 : i32
    %5 = arith.cmpi ne, %4, %c0_i32_1 : i32
    scf.if %5 {
      %c0_i32_2 = arith.constant 0 : i32
      %6 = arith.cmpi eq, %arg2, %c0_i32_2 : i32
      %7 = arith.extui %6 : i1 to i32
      %c0_i32_3 = arith.constant 0 : i32
      %8 = arith.cmpi ne, %7, %c0_i32_3 : i32
      scf.if %8 {
        %cst_18 = arith.constant 0.000000e+00 : f32
        %35 = vector.broadcast %cst_18 : f32 to vector<256x128xf32>
        %c0_19 = arith.constant 0 : index
        %c0_20 = arith.constant 0 : index
        %36 = vector.load %arg12[%c0_19, %c0_20] : memref<256x128xf32, #tpu.memory_space<vmem>>, vector<256x128xf32>
        tpu.vector_store %arg12[%c0_19, %c0_20], %35 {strides = array<i32>} : memref<256x128xf32, #tpu.memory_space<vmem>>, vector<256x128xf32>,
      } else {
      }
      %c0 = arith.constant 0 : index
      %c0_4 = arith.constant 0 : index
      %9 = vector.load %arg11[%c0, %c0_4] : memref<256x1xf32, #tpu.memory_space<vmem>>, vector<256x1xf32>
      %cst = arith.constant 9.99999993E-9 : f32
      %10 = vector.broadcast %cst : f32 to vector<256x1xf32>
      %11 = arith.maximumf %9, %10 : vector<256x1xf32>
      %12 = tpu.reciprocal %11 {approx = true} : vector<256x1xf32> -> vector<256x1xf32>
      %cst_5 = arith.constant 1.270000e+02 : f32
      %13 = vector.broadcast %cst_5 : f32 to vector<256x1xf32>
      %14 = arith.mulf %13, %12 : vector<256x1xf32>
      %15 = arith.index_cast %arg2 : i32 to index
      %c0_6 = arith.constant 0 : index
      %c0_7 = arith.constant 0 : index
      %16 = vector.load %arg10[%15, %c0_6, %c0_7] : memref<4x256x128xf32, #tpu.memory_space<vmem>>, vector<1x256x128xf32>
      %17 = vector.shape_cast %16 : vector<1x256x128xf32> to vector<256x128xf32>
      %18 = vector.broadcast %14 : vector<256x1xf32> to vector<256x128xf32>
      %19 = arith.mulf %17, %18 : vector<256x128xf32>
      %20 = math.roundeven %19 : vector<256x128xf32>
      %cst_8 = arith.constant -1.270000e+02 : f32
      %cst_9 = arith.constant 1.270000e+02 : f32
      %21 = vector.broadcast %cst_8 : f32 to vector<256x128xf32>
      %22 = arith.maximumf %21, %20 : vector<256x128xf32>
      %23 = vector.broadcast %cst_9 : f32 to vector<256x128xf32>
      %24 = arith.minimumf %23, %22 : vector<256x128xf32>
      %c0_10 = arith.constant 0 : index
      %c0_11 = arith.constant 0 : index
      %25 = vector.load %arg12[%c0_10, %c0_11] : memref<256x128xf32, #tpu.memory_space<vmem>>, vector<256x128xf32>
      %26 = arith.truncf %24 : vector<256x128xf32> to vector<256x128xbf16>
      %c0_12 = arith.constant 0 : index
      %c0_13 = arith.constant 0 : index
      %27 = vector.load %arg7[%c0_12, %c0_13] : memref<128x128xi8, #tpu.memory_space<vmem>>, vector<128x128xi8>
      %28 = arith.sitofp %27 : vector<128x128xi8> to vector<128x128xbf16>
      %cst_14 = arith.constant dense<0.000000e+00> : vector<256x128xf32>
      %29 = tpu.matmul %26, %28, %cst_14 {dimension_numbers = #tpu.dot_dimension_numbers<[1], [0], [0], [1], [0, 0, 1, 1], [], []>} : vector<256x128xbf16>, vector<128x128xbf16>, vector<256x128xf32> -> vector<256x128xf32>
      %30 = arith.addf %25, %29 : vector<256x128xf32>
      %c0_15 = arith.constant 0 : index
      %c0_16 = arith.constant 0 : index
      %31 = vector.load %arg12[%c0_15, %c0_16] : memref<256x128xf32, #tpu.memory_space<vmem>>, vector<256x128xf32>
      tpu.vector_store %arg12[%c0_15, %c0_16], %30 {strides = array<i32>} : memref<256x128xf32, #tpu.memory_space<vmem>>, vector<256x128xf32>,
      %c3_i32 = arith.constant 3 : i32
      %32 = arith.cmpi eq, %arg2, %c3_i32 : i32
      %33 = arith.extui %32 : i1 to i32
      %c0_i32_17 = arith.constant 0 : i32
      %34 = arith.cmpi ne, %33, %c0_i32_17 : i32
      scf.if %34 {
        %c0_18 = arith.constant 0 : index
        %c0_19 = arith.constant 0 : index
        %35 = vector.load %arg11[%c0_18, %c0_19] : memref<256x1xf32, #tpu.memory_space<vmem>>, vector<256x1xf32>
        %cst_20 = arith.constant 9.99999993E-9 : f32
        %36 = vector.broadcast %cst_20 : f32 to vector<256x1xf32>
        %37 = arith.maximumf %35, %36 : vector<256x1xf32>
        %cst_21 = arith.constant 0.00787401571 : f32
        %38 = vector.broadcast %cst_21 : f32 to vector<256x1xf32>
        %39 = arith.mulf %37, %38 : vector<256x1xf32>
        %c0_22 = arith.constant 0 : index
        %c0_23 = arith.constant 0 : index
        %40 = vector.load %arg12[%c0_22, %c0_23] : memref<256x128xf32, #tpu.memory_space<vmem>>, vector<256x128xf32>
        %41 = vector.broadcast %39 : vector<256x1xf32> to vector<256x128xf32>
        %42 = arith.mulf %40, %41 : vector<256x128xf32>
        %c0_24 = arith.constant 0 : index
        %c0_25 = arith.constant 0 : index
        %43 = vector.load %arg8[%c0_24, %c0_25] : memref<1x128xf32, #tpu.memory_space<vmem>>, vector<1x128xf32>
        %44 = vector.broadcast %43 : vector<1x128xf32> to vector<256x128xf32>
        %45 = arith.mulf %42, %44 : vector<256x128xf32>
        %46 = arith.truncf %45 : vector<256x128xf32> to vector<256x128xbf16>
        %c0_26 = arith.constant 0 : index
        %c0_27 = arith.constant 0 : index
        %47 = vector.load %arg9[%c0_26, %c0_27] : memref<256x128xbf16, #tpu.memory_space<vmem>>, vector<256x128xbf16>
        tpu.vector_store %arg9[%c0_26, %c0_27], %46 {strides = array<i32>} : memref<256x128xbf16, #tpu.memory_space<vmem>>, vector<256x128xbf16>,
      } else {
      }
    } else {
    }
    return
  }
  func.func @transform_0(%arg0: i32, %arg1: i32, %arg2: i32) -> (i32, i32) {
    %c0_i32 = arith.constant 0 : i32
    %c0_i32_0 = arith.constant 0 : i32
    return %arg0, %c0_i32 : i32, i32
  }
  func.func @transform_1(%arg0: i32, %arg1: i32, %arg2: i32) -> (i32, i32) {
    %c0_i32 = arith.constant 0 : i32
    %c0_i32_0 = arith.constant 0 : i32
    return %arg0, %c0_i32 : i32, i32
  }
  func.func @transform_2(%arg0: i32, %arg1: i32, %arg2: i32) -> (i32, i32) {
    %c0_i32 = arith.constant 0 : i32
    %0 = arith.cmpi eq, %arg1, %c0_i32 : i32
    %c3_i32 = arith.constant 3 : i32
    %1 = arith.select %0, %arg2, %c3_i32 : i32
    %c0_i32_0 = arith.constant 0 : i32
    %c0_i32_1 = arith.constant 0 : i32
    return %c0_i32_0, %1 : i32, i32
  }
  func.func @transform_3(%arg0: i32, %arg1: i32, %arg2: i32) -> (i32, i32) {
    %c0_i32 = arith.constant 0 : i32
    %0 = arith.cmpi eq, %arg1, %c0_i32 : i32
    %c3_i32 = arith.constant 3 : i32
    %1 = arith.select %0, %arg2, %c3_i32 : i32
    %c0_i32_0 = arith.constant 0 : i32
    %c0_i32_1 = arith.constant 0 : i32
    return %c0_i32_0, %1 : i32, i32
  }
  func.func @transform_4(%arg0: i32, %arg1: i32, %arg2: i32) -> (i32, i32) {
    %c0_i32 = arith.constant 0 : i32
    %0 = arith.cmpi eq, %arg1, %c0_i32 : i32
    %c0_i32_0 = arith.constant 0 : i32
    %1 = arith.select %0, %c0_i32_0, %arg2 : i32
    %c0_i32_1 = arith.constant 0 : i32
    %c0_i32_2 = arith.constant 0 : i32
    return %1, %c0_i32_1 : i32, i32
  }
  func.func @transform_5(%arg0: i32, %arg1: i32, %arg2: i32) -> (i32, i32) {
    %c0_i32 = arith.constant 0 : i32
    %c0_i32_0 = arith.constant 0 : i32
    %c0_i32_1 = arith.constant 0 : i32
    return %c0_i32, %c0_i32_0 : i32, i32
  }
  func.func @transform_6(%arg0: i32, %arg1: i32, %arg2: i32) -> (i32, i32) {
    %c0_i32 = arith.constant 0 : i32
    %c0_i32_0 = arith.constant 0 : i32
    return %arg0, %c0_i32 : i32, i32
  }
}

</mosaic_0001>

<llo_original>
// kernel: tpu_custom_call.1
$region0: #{tpu_custom_call.1}
  #allocation0 [shape = 'u32[]', space=smem, size = 0x4, offset = 0x4, fixed_abs, tag = 'smem constant byte address 0x4 - core index']
  #allocation1 [shape = 'u32[144,128]{1,0:T(1,128)}', space=vmem, size = 0x12000, scoped, tag = 'internal scratch']
  #allocation2 [shape = 'f32[4,256,128]{2,1,0:T(8,128)}', space=vmem, size = 0x80000, scoped, tag = 'scratch operand']
  #allocation3 [shape = 'f32[256,1]{1,0:T(8,128)}', space=vmem, size = 0x20000, scoped, tag = 'scratch operand']
  #allocation4 [shape = 'f32[256,128]{1,0:T(8,128)}', space=vmem, size = 0x20000, scoped, tag = 'scratch operand']
  %s0 = inlined_call_operand.hbm [shape: s8[256,128], index: 0, kind: input, shape index: {}]
  %s1 = inlined_call_operand.vmem [shape: f32[256,1], index: 1, kind: input, shape index: {}]
  %s2 = inlined_call_operand.vmem [shape: s8[128,512], index: 2, kind: input, shape index: {}]
  %s3 = inlined_call_operand.vmem [shape: f32[1,512], index: 3, kind: input, shape index: {}]
  %s4 = inlined_call_operand.vmem [shape: s8[512,128], index: 4, kind: input, shape index: {}]
  %s5 = inlined_call_operand.vmem [shape: f32[1,128], index: 5, kind: input, shape index: {}]
  %s6 = inlined_call_operand.hbm [shape: bf16[256,128], index: 6, kind: output, shape index: {}]
  %s7 = sld [smem:[#allocation0]]
  $region119: #{tpu_custom_call.1} parent=0
    _
  %s9 = ssub.s32 1, %s7
  %s10 = scalar_select 0, %s9, %s7
  $region1: #{tpu_custom_call.1} parent=0
    #allocation5 [shape = 'u8[32768]{0}', space=vmem, size = 0x8000, scoped, tag = 'input window, operand 0, single buffered']
    #allocation6 [shape = 's32[2]{0}', space=sflag, size = 0x8, scoped, tag = 'scoped memory for tpu_custom_call.1']
    #allocation7 [shape = 's32[2]{0}', space=sflag, size = 0x8, scoped, tag = 'scoped memory for tpu_custom_call.1']
    #allocation8 [shape = 'u8[32768]{0}', space=vmem, size = 0x8000, scoped, tag = 'input window, operand 2']
    #allocation9 [shape = 'u8[65536]{0}', space=vmem, size = 0x10000, scoped, tag = 'output window, operand 0, single buffered']
    %11 = vsyncpa [#allocation6], 0
    %12 = vsyncpa [#allocation7], 0
    loop: start=0, step=1, limit=10
    $region2: #{tpu_custom_call.1} parent=1 // loop_pre_header
      _
    $region3: #{tpu_custom_call.1} parent=1 // loop_header
      %s14 = sphi 0, %s18
      %p15 = scmp.ge.s32.totalorder %s14, 10
      %s21 = sphi 0, %s40
      %s22 = sphi 0, %s36
      %s23 = sphi 0, %s32
      %s24 = sphi 0, %s21
      %s25 = sphi 0, %s22
      %s26 = sphi 0, %s23
      %s27 = sphi 0, %s24
      %s28 = sphi 0, %s25
      %s29 = sphi 0, %s26
      %s43 = sphi 0, %s45
      %s46 = sphi 0, %s43
      %s47 = sphi 0, %s46
      %s63 = sphi 0, %s47
      %s69 = sphi 0, %s71
      %s72 = sphi 0, %s69
      %s73 = sphi 0, %s72
      %s89 = sphi 0, %s73
      %s99 = sphi 0, %s101
      %s102 = sphi 0, %s99
      %s103 = sphi 0, %s102
      %s119 = sphi 0, %s103
      %s129 = sphi 0, %s131
      %s132 = sphi 0, %s129
      %s133 = sphi 0, %s132
      %s149 = sphi 0, %s133
      %s159 = sphi 0, %s161
      %s162 = sphi 0, %s159
      %s163 = sphi 0, %s162
      %s179 = sphi 0, %s163
      %s183 = sphi 0, %s183
      %s185 = sphi 0, %s183
      %s186 = sphi 0, %s185
      %s200 = sphi 0, %s186
      %s206 = sphi 0, %s208
      %s209 = sphi 0, %s206
      %s210 = sphi 0, %s209
      %s226 = sphi 0, %s210
    $region4: #{tpu_custom_call.1} parent=1 // loop_header_branch
      %17 = sbr.rel (%p15) target = $region8
    $region5: #{tpu_custom_call.1} parent=1 // loop_body
      %s19 = ssub.s32 %s14, 1
      %s20 = ssub.s32 %s14, 2
      %s30 = sadd.s32 1, %s23
      %p31 = scmp.ge.s32.totalorder %s30, 4
      %s32 = scalar_select %p31, 0, %s30
      %s33 = sadd.s32 1, %s22
      %s34 = scalar_select %p31, %s33, %s22
      %p35 = scmp.ge.s32.totalorder %s34, 2
      %s36 = scalar_select %p35, 0, %s34
      %s37 = sadd.s32 1, %s21
      %s38 = scalar_select %p35, %s37, %s21
      %p39 = scmp.ge.s32.totalorder %s38, 1
      %s40 = scalar_select %p39, 0, %s38
      %s41 = ssub.s32 %s21, %s40
      %p42 = scmp.eq.s32.totalorder %s41, 0
      %s44 = sadd.s32 %s43, 1
      %s45 = scalar_select %p42, %s43, %s44
      %p48 = pneg %p42
      %p49 = scmp.eq.s32.totalorder %s14, 7
      %p50 = por %p48, %p49
      %p51 = scmp.ne.s32.totalorder %s43, %s46
      %p52 = scmp.eq.s32.totalorder %s14, 0
      %p53 = por %p51, %p52
      %p54 = scmp.ne.s32.totalorder %s43, %s46
      %p55 = scmp.eq.s32.totalorder %s19, 7
      %p56 = por %p54, %p55
      %p57 = scmp.ne.s32.totalorder %s46, %s47
      %p58 = scmp.eq.s32.totalorder %s19, 0
      %p59 = por %p57, %p58
      %p60 = scmp.ne.s32.totalorder %s46, %s47
      %p61 = scmp.eq.s32.totalorder %s20, 7
      %p62 = por %p60, %p61
      %p64 = scmp.ne.s32.totalorder %s47, %s63
      %p65 = scmp.eq.s32.totalorder %s20, 0
      %p66 = por %p64, %p65
      %s67 = ssub.s32 %s21, %s40
      %p68 = scmp.eq.s32.totalorder %s67, 0
      %s70 = sadd.s32 %s69, 1
      %s71 = scalar_select %p68, %s69, %s70
      %p74 = pneg %p68
      %p75 = scmp.eq.s32.totalorder %s14, 7
      %p76 = por %p74, %p75
      %p77 = scmp.ne.s32.totalorder %s69, %s72
      %p78 = scmp.eq.s32.totalorder %s14, 0
      %p79 = por %p77, %p78
      %p80 = scmp.ne.s32.totalorder %s69, %s72
      %p81 = scmp.eq.s32.totalorder %s19, 7
      %p82 = por %p80, %p81
      %p83 = scmp.ne.s32.totalorder %s72, %s73
      %p84 = scmp.eq.s32.totalorder %s19, 0
      %p85 = por %p83, %p84
      %p86 = scmp.ne.s32.totalorder %s72, %s73
      %p87 = scmp.eq.s32.totalorder %s20, 7
      %p88 = por %p86, %p87
      %p90 = scmp.ne.s32.totalorder %s73, %s89
      %p91 = scmp.eq.s32.totalorder %s20, 0
      %p92 = por %p90, %p91
      %p93 = scmp.eq.s32.totalorder %s22, 0
      %s94 = scalar_select %p93, %s23, 3
      %p95 = scmp.eq.s32.totalorder %s36, 0
      %s96 = scalar_select %p95, %s32, 3
      %s97 = ssub.s32 %s94, %s96
      %p98 = scmp.eq.s32.totalorder %s97, 0
      %s100 = sadd.s32 %s99, 1
      %s101 = scalar_select %p98, %s99, %s100
      %p104 = pneg %p98
      %p105 = scmp.eq.s32.totalorder %s14, 7
      %p106 = por %p104, %p105
      %p107 = scmp.ne.s32.totalorder %s99, %s102
      %p108 = scmp.eq.s32.totalorder %s14, 0
      %p109 = por %p107, %p108
      %p110 = scmp.ne.s32.totalorder %s99, %s102
      %p111 = scmp.eq.s32.totalorder %s19, 7
      %p112 = por %p110, %p111
      %p113 = scmp.ne.s32.totalorder %s102, %s103
      %p114 = scmp.eq.s32.totalorder %s19, 0
      %p115 = por %p113, %p114
      %p116 = scmp.ne.s32.totalorder %s102, %s103
      %p117 = scmp.eq.s32.totalorder %s20, 7
      %p118 = por %p116, %p117
      %p120 = scmp.ne.s32.totalorder %s103, %s119
      %p121 = scmp.eq.s32.totalorder %s20, 0
      %p122 = por %p120, %p121
      %p123 = scmp.eq.s32.totalorder %s22, 0
      %s124 = scalar_select %p123, %s23, 3
      %p125 = scmp.eq.s32.totalorder %s36, 0
      %s126 = scalar_select %p125, %s32, 3
      %s127 = ssub.s32 %s124, %s126
      %p128 = scmp.eq.s32.totalorder %s127, 0
      %s130 = sadd.s32 %s129, 1
      %s131 = scalar_select %p128, %s129, %s130
      %p134 = pneg %p128
      %p135 = scmp.eq.s32.totalorder %s14, 7
      %p136 = por %p134, %p135
      %p137 = scmp.ne.s32.totalorder %s129, %s132
      %p138 = scmp.eq.s32.totalorder %s14, 0
      %p139 = por %p137, %p138
      %p140 = scmp.ne.s32.totalorder %s129, %s132
      %p141 = scmp.eq.s32.totalorder %s19, 7
      %p142 = por %p140, %p141
      %p143 = scmp.ne.s32.totalorder %s132, %s133
      %p144 = scmp.eq.s32.totalorder %s19, 0
      %p145 = por %p143, %p144
      %p146 = scmp.ne.s32.totalorder %s132, %s133
      %p147 = scmp.eq.s32.totalorder %s20, 7
      %p148 = por %p146, %p147
      %p150 = scmp.ne.s32.totalorder %s133, %s149
      %p151 = scmp.eq.s32.totalorder %s20, 0
      %p152 = por %p150, %p151
      %p153 = scmp.eq.s32.totalorder %s22, 0
      %s154 = scalar_select %p153, 0, %s23
      %p155 = scmp.eq.s32.totalorder %s36, 0
      %s156 = scalar_select %p155, 0, %s32
      %s157 = ssub.s32 %s154, %s156
      %p158 = scmp.eq.s32.totalorder %s157, 0
      %s160 = sadd.s32 %s159, 1
      %s161 = scalar_select %p158, %s159, %s160
      %p164 = pneg %p158
      %p165 = scmp.eq.s32.totalorder %s14, 7
      %p166 = por %p164, %p165
      %p167 = scmp.ne.s32.totalorder %s159, %s162
      %p168 = scmp.eq.s32.totalorder %s14, 0
      %p169 = por %p167, %p168
      %p170 = scmp.ne.s32.totalorder %s159, %s162
      %p171 = scmp.eq.s32.totalorder %s19, 7
      %p172 = por %p170, %p171
      %p173 = scmp.ne.s32.totalorder %s162, %s163
      %p174 = scmp.eq.s32.totalorder %s19, 0
      %p175 = por %p173, %p174
      %p176 = scmp.ne.s32.totalorder %s162, %s163
      %p177 = scmp.eq.s32.totalorder %s20, 7
      %p178 = por %p176, %p177
      %p180 = scmp.ne.s32.totalorder %s163, %s179
      %p181 = scmp.eq.s32.totalorder %s20, 0
      %p182 = por %p180, %p181
      %s184 = sadd.s32 %s183, 1
      %p187 = scmp.eq.s32.totalorder %s14, 7
      %p188 = scmp.ne.s32.totalorder %s183, %s185
      %p189 = scmp.eq.s32.totalorder %s14, 0
      %p190 = por %p188, %p189
      %p191 = scmp.ne.s32.totalorder %s183, %s185
      %p192 = scmp.eq.s32.totalorder %s19, 7
      %p193 = por %p191, %p192
      %p194 = scmp.ne.s32.totalorder %s185, %s186
      %p195 = scmp.eq.s32.totalorder %s19, 0
      %p196 = por %p194, %p195
      %p197 = scmp.ne.s32.totalorder %s185, %s186
      %p198 = scmp.eq.s32.totalorder %s20, 7
      %p199 = por %p197, %p198
      %p201 = scmp.ne.s32.totalorder %s186, %s200
      %p202 = scmp.eq.s32.totalorder %s20, 0
      %p203 = por %p201, %p202
      %s204 = ssub.s32 %s21, %s40
      %p205 = scmp.eq.s32.totalorder %s204, 0
      %s207 = sadd.s32 %s206, 1
      %s208 = scalar_select %p205, %s206, %s207
      %p211 = pneg %p205
      %p212 = scmp.eq.s32.totalorder %s14, 7
      %p213 = por %p211, %p212
      %p214 = scmp.ne.s32.totalorder %s206, %s209
      %p215 = scmp.eq.s32.totalorder %s14, 0
      %p216 = por %p214, %p215
      %p217 = scmp.ne.s32.totalorder %s206, %s209
      %p218 = scmp.eq.s32.totalorder %s19, 7
      %p219 = por %p217, %p218
      %p220 = scmp.ne.s32.totalorder %s209, %s210
      %p221 = scmp.eq.s32.totalorder %s19, 0
      %p222 = por %p220, %p221
      %p223 = scmp.ne.s32.totalorder %s209, %s210
      %p224 = scmp.eq.s32.totalorder %s20, 7
      %p225 = por %p223, %p224
      %p227 = scmp.ne.s32.totalorder %s210, %s226
      %p228 = scmp.eq.s32.totalorder %s20, 0
      %p229 = por %p227, %p228
      %p230 = scmp.le.s32.totalorder 1, %s14
      %p231 = scmp.lt.s32.totalorder %s14, 9
      %p232 = pnand %p230, %p231
      %p233 = pneg %p232
      // Predicated region
      $region9: #{tpu_custom_call.1} parent=5 // pred_check
        _
      $region10: #{tpu_custom_call.1} parent=5 // pred_check_branch
        %235 = sbr.rel (%p232) target = $region12
      $region11: #{tpu_custom_call.1} parent=5 // pred_region
        %s236 = ssub.s32 %s14, 1
        // Predicated region
        $region13: #{tpu_custom_call.1} parent=11 // pred_check
          %p237 = pneg %p59
        $region14: #{tpu_custom_call.1} parent=11 // pred_check_branch
          %239 = sbr.rel (%p237) target = $region16
        $region15: #{tpu_custom_call.1} parent=11 // pred_region
          %s240 = smul.u32 8, %s24
          %s242 = ssub.s32 1024, 1024
          %243 = vsyncadd [#allocation6], %s242
          %s244 = smul.addr %s240, 128
          %s245 = scalar_lea.hbm %s0, %s244
          %s246 = sshll.u32 [#allocation5], 4
          %s247 = int_to_ptr.vmem [resolvable:$true] %s246
          %252 = dma.hbm_to_vmem [thread:$0]  %s245, 1024, %s247, [#allocation6], 128, 128, 8
        $region16: #{tpu_custom_call.1} parent=11 // pred_fallthru
          _
        // Predicated region
        $region17: #{tpu_custom_call.1} parent=11 // pred_check
          %p253 = pneg %p85
        $region18: #{tpu_custom_call.1} parent=11 // pred_check_branch
          %255 = sbr.rel (%p253) target = $region20
        $region19: #{tpu_custom_call.1} parent=11 // pred_region
          %s256 = smul.u32 32, %s24
          %p257 = scmp.lt.s32.totalorder %s256, 31
          %s258 = scalar_select %p257, %s256, 31
          %s259 = smul.addr %s258, 8
          %s260 = scalar_lea.vmem %s1, %s259
          %s261 = smul.u32 32, %s24
        $region20: #{tpu_custom_call.1} parent=11 // pred_fallthru
          _
        // Predicated region
        $region21: #{tpu_custom_call.1} parent=11 // pred_check
          %p262 = pneg %p196
        $region22: #{tpu_custom_call.1} parent=11 // pred_check_branch
          %264 = sbr.rel (%p262) target = $region24
        $region23: #{tpu_custom_call.1} parent=11 // pred_region
          _
        $region24: #{tpu_custom_call.1} parent=11 // pred_fallthru
          _
      $region12: #{tpu_custom_call.1} parent=5 // pred_fallthru
        _
      %p265 = scmp.lt.s32.totalorder %s14, 8
      // Predicated region
      $region25: #{tpu_custom_call.1} parent=5 // pred_check
        %p266 = pneg %p265
      $region26: #{tpu_custom_call.1} parent=5 // pred_check_branch
        %268 = sbr.rel (%p266) target = $region28
      $region27: #{tpu_custom_call.1} parent=5 // pred_region
        // Predicated region
        $region29: #{tpu_custom_call.1} parent=27 // pred_check
          %p269 = pneg %p109
        $region30: #{tpu_custom_call.1} parent=27 // pred_check_branch
          %271 = sbr.rel (%p269) target = $region32
        $region31: #{tpu_custom_call.1} parent=27 // pred_region
          %s272 = sand.u32 %s99, 1
          %s273 = sand.u32 %s99, 1
          %s274 = smul.addr %s273, 32
          %s275 = scalar_lea.vmem [#allocation8], %s274
          %p276 = scmp.eq.s32.totalorder %s22, 0
          %s277 = scalar_select %p276, %s23, 3
          %s278 = smul.addr %s277, 8
          %s279 = scalar_lea.vmem %s2, %s278
          // Predicated region
          $region33: #{tpu_custom_call.1} parent=31 // pred_check
            _
          $region34: #{tpu_custom_call.1} parent=31 // pred_check_branch
            %281 = sbr.rel (0) target = $region36
          $region35: #{tpu_custom_call.1} parent=31 // pred_region
            // Predicated region
            $region37: #{tpu_custom_call.1} parent=35 // pred_check
              _
            $region38: #{tpu_custom_call.1} parent=35 // pred_check_branch
              %283 = sbr.rel (0) target = $region40
            $region39: #{tpu_custom_call.1} parent=35 // pred_region
              // Predicated region
              $region52: #{tpu_custom_call.1} parent=39 // pred_check
                _
              $region53: #{tpu_custom_call.1} parent=39 // pred_check_branch
                %304 = sbr.rel (0) target = $region55
              $region54: #{tpu_custom_call.1} parent=39 // pred_region
                loop: start=0, step=1, limit=1
                $region56: #{tpu_custom_call.1} parent=54 // loop_pre_header
                  _
                $region57: #{tpu_custom_call.1} parent=54 // loop_header
                  %s306 = sphi 0, %s310
                  %p307 = scmp.ge.s32.totalorder %s306, 1
                  %s311 = sphi %s279, %s279
                  %s312 = sphi %s275, %s275
                $region58: #{tpu_custom_call.1} parent=54 // loop_header_branch
                  %309 = sbr.rel (%p307) target = $region62
                $region59: #{tpu_custom_call.1} parent=54 // loop_body
                  %v313 = vld [vmem:[%s311] sm:$0xff]
                  %314 = vst [vmem:[%s312] sm:$0xff] %v313
                  %v315 = vld [vmem:[%s311 + $0x20] sm:$0xff]
                  %316 = vst [vmem:[%s312 + $0x8] sm:$0xff] %v315
                  %v317 = vld [vmem:[%s311 + $0x40] sm:$0xff]
                  %318 = vst [vmem:[%s312 + $0x10] sm:$0xff] %v317
                  %v319 = vld [vmem:[%s311 + $0x60] sm:$0xff]
                  %320 = vst [vmem:[%s312 + $0x18] sm:$0xff] %v319
                $region60: #{tpu_custom_call.1} parent=54 // loop_footer
                  %s310 = sadd.s32 1, %s306
                $region61: #{tpu_custom_call.1} parent=54 // loop_footer_branch
                  %305 = sbr.rel target = $region57
                $region62: #{tpu_custom_call.1} parent=54 // loop_exit
                  _
              $region55: #{tpu_custom_call.1} parent=39 // pred_fallthru
                _
              // Predicated region
              $region63: #{tpu_custom_call.1} parent=39 // pred_check
                _
              $region64: #{tpu_custom_call.1} parent=39 // pred_check_branch
                %322 = sbr.rel target = $region66
              $region65: #{tpu_custom_call.1} parent=39 // pred_region
                _
              $region66: #{tpu_custom_call.1} parent=39 // pred_fallthru
                _
            $region40: #{tpu_custom_call.1} parent=35 // pred_fallthru
              _
            // Predicated region
            $region41: #{tpu_custom_call.1} parent=35 // pred_check
              _
            $region42: #{tpu_custom_call.1} parent=35 // pred_check_branch
              %285 = sbr.rel target = $region44
            $region43: #{tpu_custom_call.1} parent=35 // pred_region
              loop: start=0, step=1, limit=1
              $region45: #{tpu_custom_call.1} parent=43 // loop_pre_header
                _
              $region46: #{tpu_custom_call.1} parent=43 // loop_header
                %s288 = sphi 0, %s292
                %p289 = scmp.ge.s32.totalorder %s288, 1
                %s293 = sphi %s279, %s279
                %s294 = sphi %s275, %s275
              $region47: #{tpu_custom_call.1} parent=43 // loop_header_branch
                %291 = sbr.rel (%p289) target = $region51
              $region48: #{tpu_custom_call.1} parent=43 // loop_body
                %v295 = vld [vmem:[%s293] sm:$0xff]
                %296 = vst [vmem:[%s294] sm:$0xff] %v295
                %v297 = vld [vmem:[%s293 + $0x20] sm:$0xff]
                %298 = vst [vmem:[%s294 + $0x8] sm:$0xff] %v297
                %v299 = vld [vmem:[%s293 + $0x40] sm:$0xff]
                %300 = vst [vmem:[%s294 + $0x10] sm:$0xff] %v299
                %v301 = vld [vmem:[%s293 + $0x60] sm:$0xff]
                %302 = vst [vmem:[%s294 + $0x18] sm:$0xff] %v301
              $region49: #{tpu_custom_call.1} parent=43 // loop_footer
                %s292 = sadd.s32 1, %s288
              $region50: #{tpu_custom_call.1} parent=43 // loop_footer_branch
                %287 = sbr.rel target = $region46
              $region51: #{tpu_custom_call.1} parent=43 // loop_exit
                _
            $region44: #{tpu_custom_call.1} parent=35 // pred_fallthru
              _
          $region36: #{tpu_custom_call.1} parent=31 // pred_fallthru
            _
          %323 = vnop
        $region32: #{tpu_custom_call.1} parent=27 // pred_fallthru
          _
        // Predicated region
        $region67: #{tpu_custom_call.1} parent=27 // pred_check
          %p324 = pneg %p139
        $region68: #{tpu_custom_call.1} parent=27 // pred_check_branch
          %326 = sbr.rel (%p324) target = $region70
        $region69: #{tpu_custom_call.1} parent=27 // pred_region
          %p327 = scmp.eq.s32.totalorder %s22, 0
          %s328 = scalar_select %p327, %s23, 3
          %p329 = scmp.lt.s32.totalorder %s328, 3
          %s330 = scalar_select %p329, %s328, 3
          %s331 = scalar_lea.vmem %s3, %s330
          %p332 = scmp.eq.s32.totalorder %s22, 0
          %s333 = scalar_select %p332, %s23, 3
        $region70: #{tpu_custom_call.1} parent=27 // pred_fallthru
          _
        // Predicated region
        $region71: #{tpu_custom_call.1} parent=27 // pred_check
          %p334 = pneg %p169
        $region72: #{tpu_custom_call.1} parent=27 // pred_check_branch
          %336 = sbr.rel (%p334) target = $region74
        $region73: #{tpu_custom_call.1} parent=27 // pred_region
          %p337 = scmp.eq.s32.totalorder %s22, 0
          %s338 = scalar_select %p337, 0, %s23
          %s339 = smul.u32 4, %s338
          %p340 = scmp.lt.s32.totalorder %s339, 15
          %s341 = scalar_select %p340, %s339, 15
          %s342 = smul.addr %s341, 8
          %s343 = scalar_lea.vmem %s4, %s342
          %p344 = scmp.eq.s32.totalorder %s22, 0
          %s345 = scalar_select %p344, 0, %s23
          %s346 = smul.u32 4, %s345
        $region74: #{tpu_custom_call.1} parent=27 // pred_fallthru
          _
      $region28: #{tpu_custom_call.1} parent=5 // pred_fallthru
        _
      %p347 = scmp.le.s32.totalorder 1, %s14
      %p348 = scmp.lt.s32.totalorder %s14, 9
      %p349 = pnand %p347, %p348
      %p350 = pneg %p349
      // Predicated region
      $region75: #{tpu_custom_call.1} parent=5 // pred_check
        _
      $region76: #{tpu_custom_call.1} parent=5 // pred_check_branch
        %352 = sbr.rel (%p349) target = $region78
      $region77: #{tpu_custom_call.1} parent=5 // pred_region
        %s353 = ssub.s32 %s14, 1
        // Predicated region
        $region79: #{tpu_custom_call.1} parent=77 // pred_check
          %p354 = pneg %p59
        $region80: #{tpu_custom_call.1} parent=77 // pred_check_branch
          %356 = sbr.rel (%p354) target = $region82
        $region81: #{tpu_custom_call.1} parent=77 // pred_region
          %357 = dma.done [#allocation6], 1024
        $region82: #{tpu_custom_call.1} parent=77 // pred_fallthru
          _
        %s358 = sand.u32 %s102, 1
        %s359 = sand.u32 %s102, 1
        %s360 = smul.addr %s359, 32
        %s361 = scalar_lea.vmem [#allocation8], %s360
        // Predicated region
        $region83: #{tpu_custom_call.1} parent=77 // pred_check
          %p362 = pneg %p115
        $region84: #{tpu_custom_call.1} parent=77 // pred_check_branch
          %364 = sbr.rel (%p362) target = $region86
        $region85: #{tpu_custom_call.1} parent=77 // pred_region
          _
        $region86: #{tpu_custom_call.1} parent=77 // pred_fallthru
          _
        %p365 = pneg %p59
        %p366 = pneg %p56
        %s367 = smul.u32 32, %s24
        %p368 = scmp.lt.s32.totalorder %s367, 31
        %s369 = scalar_select %p368, %s367, 31
        %s370 = smul.addr %s369, 8
        %s371 = scalar_lea.vmem %s1, %s370
        %p372 = pneg %p85
        %p373 = pneg %p82
        %s374 = sand.u32 %s102, 1
        %s375 = sand.u32 %s102, 1
        %s376 = smul.addr %s375, 32
        %s377 = scalar_lea.vmem [#allocation8], %s376
        %p378 = pneg %p115
        %p379 = pneg %p112
        %p380 = scmp.eq.s32.totalorder %s25, 0
        %s381 = scalar_select %p380, %s26, 3
        %p382 = scmp.lt.s32.totalorder %s381, 3
        %s383 = scalar_select %p382, %s381, 3
        %s384 = scalar_lea.vmem %s3, %s383
        %p385 = pneg %p145
        %p386 = pneg %p142
        %p387 = scmp.eq.s32.totalorder %s25, 0
        %s388 = scalar_select %p387, 0, %s26
        %s389 = smul.u32 4, %s388
        %p390 = scmp.lt.s32.totalorder %s389, 15
        %s391 = scalar_select %p390, %s389, 15
        %s392 = smul.addr %s391, 8
        %s393 = scalar_lea.vmem %s4, %s392
        %p394 = pneg %p175
        %p395 = pneg %p172
        %p396 = pneg %p196
        %p397 = pneg %p193
        %p398 = pneg %p222
        %p399 = pneg %p219
        %s400 = smul.u32 8, %s24
        %s401 = smul.u32 32, %s24
        %p402 = scmp.lt.s32.totalorder %s401, 31
        %s403 = scalar_select %p402, %s401, 31
        %s404 = smul.addr %s403, 8
        %s405 = scalar_lea.vmem %s1, %s404
        %s406 = smul.u32 32, %s24
        %p407 = scmp.eq.s32.totalorder %s25, 0
        %s408 = scalar_select %p407, %s26, 3
        %p409 = scmp.eq.s32.totalorder %s25, 0
        %s410 = scalar_select %p409, %s26, 3
        %p411 = scmp.lt.s32.totalorder %s410, 3
        %s412 = scalar_select %p411, %s410, 3
        %s413 = scalar_lea.vmem %s3, %s412
        %p414 = scmp.eq.s32.totalorder %s25, 0
        %s415 = scalar_select %p414, %s26, 3
        %p416 = scmp.eq.s32.totalorder %s25, 0
        %s417 = scalar_select %p416, 0, %s26
        %s418 = smul.u32 4, %s417
        %p419 = scmp.lt.s32.totalorder %s418, 15
        %s420 = scalar_select %p419, %s418, 15
        %s421 = smul.addr %s420, 8
        %s422 = scalar_lea.vmem %s4, %s421
        %p423 = scmp.eq.s32.totalorder %s25, 0
        %s424 = scalar_select %p423, 0, %s26
        %s425 = smul.u32 4, %s424
        %s426 = smul.u32 32, %s24
        %p428 = scmp.eq.s32.totalorder %s25, 0
        // Predicated region
        $region87: #{tpu_custom_call.1} parent=77 // pred_check
          %p429 = pneg %p428
        $region88: #{tpu_custom_call.1} parent=77 // pred_check_branch
          %431 = sbr.rel (%p429) target = $region90
        $region89: #{tpu_custom_call.1} parent=77 // pred_region
          %p432 = scmp.eq.s32.totalorder %s26, 0
          // Predicated region
          $region91: #{tpu_custom_call.1} parent=89 // pred_check
            %p433 = pneg %p432
          $region92: #{tpu_custom_call.1} parent=89 // pred_check_branch
            %435 = sbr.rel (%p433) target = $region94
          $region93: #{tpu_custom_call.1} parent=89 // pred_region
            %vm436 = vcmask 7168
            %437 = vst.msk [vmem:[#allocation3] sm:$0xff] %vm436, 0.0
            %438 = vst.msk [vmem:[#allocation3 + $0x8] sm:$0xff] %vm436, 0.0
            %439 = vst.msk [vmem:[#allocation3 + $0x10] sm:$0xff] %vm436, 0.0
            %440 = vst.msk [vmem:[#allocation3 + $0x18] sm:$0xff] %vm436, 0.0
            %441 = vst.msk [vmem:[#allocation3 + $0x20] sm:$0xff] %vm436, 0.0
            %442 = vst.msk [vmem:[#allocation3 + $0x28] sm:$0xff] %vm436, 0.0
            %443 = vst.msk [vmem:[#allocation3 + $0x30] sm:$0xff] %vm436, 0.0
            %444 = vst.msk [vmem:[#allocation3 + $0x38] sm:$0xff] %vm436, 0.0
            %445 = vst.msk [vmem:[#allocation3 + $0x40] sm:$0xff] %vm436, 0.0
            %446 = vst.msk [vmem:[#allocation3 + $0x48] sm:$0xff] %vm436, 0.0
            %447 = vst.msk [vmem:[#allocation3 + $0x50] sm:$0xff] %vm436, 0.0
            %448 = vst.msk [vmem:[#allocation3 + $0x58] sm:$0xff] %vm436, 0.0
            %449 = vst.msk [vmem:[#allocation3 + $0x60] sm:$0xff] %vm436, 0.0
            %450 = vst.msk [vmem:[#allocation3 + $0x68] sm:$0xff] %vm436, 0.0
            %451 = vst.msk [vmem:[#allocation3 + $0x70] sm:$0xff] %vm436, 0.0
            %452 = vst.msk [vmem:[#allocation3 + $0x78] sm:$0xff] %vm436, 0.0
            %453 = vst.msk [vmem:[#allocation3 + $0x80] sm:$0xff] %vm436, 0.0
            %454 = vst.msk [vmem:[#allocation3 + $0x88] sm:$0xff] %vm436, 0.0
            %455 = vst.msk [vmem:[#allocation3 + $0x90] sm:$0xff] %vm436, 0.0
            %456 = vst.msk [vmem:[#allocation3 + $0x98] sm:$0xff] %vm436, 0.0
            %457 = vst.msk [vmem:[#allocation3 + $0xa0] sm:$0xff] %vm436, 0.0
            %458 = vst.msk [vmem:[#allocation3 + $0xa8] sm:$0xff] %vm436, 0.0
            %459 = vst.msk [vmem:[#allocation3 + $0xb0] sm:$0xff] %vm436, 0.0
            %460 = vst.msk [vmem:[#allocation3 + $0xb8] sm:$0xff] %vm436, 0.0
            %461 = vst.msk [vmem:[#allocation3 + $0xc0] sm:$0xff] %vm436, 0.0
            %462 = vst.msk [vmem:[#allocation3 + $0xc8] sm:$0xff] %vm436, 0.0
            %463 = vst.msk [vmem:[#allocation3 + $0xd0] sm:$0xff] %vm436, 0.0
            %464 = vst.msk [vmem:[#allocation3 + $0xd8] sm:$0xff] %vm436, 0.0
            %465 = vst.msk [vmem:[#allocation3 + $0xe0] sm:$0xff] %vm436, 0.0
            %466 = vst.msk [vmem:[#allocation3 + $0xe8] sm:$0xff] %vm436, 0.0
            %467 = vst.msk [vmem:[#allocation3 + $0xf0] sm:$0xff] %vm436, 0.0
            %468 = vst.msk [vmem:[#allocation3 + $0xf8] sm:$0xff] %vm436, 0.0
          $region94: #{tpu_custom_call.1} parent=89 // pred_fallthru
            _
          %v469 = vld [vmem:[#allocation5] sm:$0xff]
          %v470 = vld [vmem:[#allocation5 + $0x8] sm:$0xff]
          %v471 = vld [vmem:[#allocation5 + $0x10] sm:$0xff]
          %v472 = vld [vmem:[#allocation5 + $0x18] sm:$0xff]
          %v473 = vld [vmem:[#allocation5 + $0x20] sm:$0xff]
          %v474 = vld [vmem:[#allocation5 + $0x28] sm:$0xff]
          %v475 = vld [vmem:[#allocation5 + $0x30] sm:$0xff]
          %v476 = vld [vmem:[#allocation5 + $0x38] sm:$0xff]
          %v477 = vunpack.c.l.s8.bf16 %v469
          %v478 = vunpack.c.h.s8.bf16 %v469
          %v479 = vunpack.c.l.s8.bf16 %v470
          %v480 = vunpack.c.h.s8.bf16 %v470
          %v481 = vunpack.c.l.s8.bf16 %v471
          %v482 = vunpack.c.h.s8.bf16 %v471
          %v483 = vunpack.c.l.s8.bf16 %v472
          %v484 = vunpack.c.h.s8.bf16 %v472
          %v485 = vunpack.c.l.s8.bf16 %v473
          %v486 = vunpack.c.h.s8.bf16 %v473
          %v487 = vunpack.c.l.s8.bf16 %v474
          %v488 = vunpack.c.h.s8.bf16 %v474
          %v489 = vunpack.c.l.s8.bf16 %v475
          %v490 = vunpack.c.h.s8.bf16 %v475
          %v491 = vunpack.c.l.s8.bf16 %v476
          %v492 = vunpack.c.h.s8.bf16 %v476
          %v493 = vld [vmem:[%s361] sm:$0xff]
          %v494 = vld [vmem:[%s361 + $0x8] sm:$0xff]
          %v495 = vld [vmem:[%s361 + $0x10] sm:$0xff]
          %v496 = vld [vmem:[%s361 + $0x18] sm:$0xff]
          %v497 = vunpack.c.l.s8.bf16 %v493
          %v498 = vunpack.c.h.s8.bf16 %v493
          %v499 = vunpack.c.l.s8.bf16 %v494
          %v500 = vunpack.c.h.s8.bf16 %v494
          %v501 = vunpack.c.l.s8.bf16 %v495
          %v502 = vunpack.c.h.s8.bf16 %v495
          %v503 = vunpack.c.l.s8.bf16 %v496
          %v504 = vunpack.c.h.s8.bf16 %v496
          %505 = vmatprep.subr.bf16.mxu0 0
          %506 = vmatpush1.bf16.msra.mxu0 %v497
          %507 = vmatprep.subr.bf16.mxu0 0
          %508 = vmatpush1.bf16.msra.mxu0 %v498
          %509 = vmatprep.subr.bf16.mxu0 0
          %510 = vmatpush1.bf16.msra.mxu0 %v499
          %511 = vmatprep.subr.bf16.mxu0 0
          %512 = vmatpush1.bf16.msra.mxu0 %v500
          %513 = vmatprep.subr.bf16.mxu0 0
          %514 = vmatpush1.bf16.msra.mxu0 %v501
          %515 = vmatprep.subr.bf16.mxu0 0
          %516 = vmatpush1.bf16.msra.mxu0 %v502
          %517 = vmatprep.subr.bf16.mxu0 0
          %518 = vmatpush1.bf16.msra.mxu0 %v503
          %519 = vmatprep.subr.bf16.mxu0 0
          %520 = vmatpush1.bf16.msra.mxu0 %v504
          %521 = vmatprep.subr.bf16.mxu0 0
          %522 = vmatpush1.bf16.msra.mxu0 0
          %523 = vmatprep.subr.bf16.mxu0 0
          %524 = vmatpush1.bf16.msra.mxu0 0
          %525 = vmatprep.subr.bf16.mxu0 0
          %526 = vmatpush1.bf16.msra.mxu0 0
          %527 = vmatprep.subr.bf16.mxu0 0
          %528 = vmatpush1.bf16.msra.mxu0 0
          %529 = vmatprep.subr.bf16.mxu0 0
          %530 = vmatpush1.bf16.msra.mxu0 0
          %531 = vmatprep.subr.bf16.mxu0 0
          %532 = vmatpush1.bf16.msra.mxu0 0
          %533 = vmatprep.subr.bf16.mxu0 0
          %534 = vmatpush1.bf16.msra.mxu0 0
          %535 = vmatprep.subr.bf16.mxu0 0
          %536 = vmatpush1.bf16.msra.mxu0 0
          %537 = vmatprep.mubr.bf16.mxu0 0
          %538 = vmatmul.mubr.bf16.gmra.mrb[0].mxu0 %v477
          %v539 = vpop.f32.mrb[0].mxu0
          %v540 = vadd.f32 0.0, %v539
          %v541 = vpop.f32.mrb[0].mxu0
          %v542 = vpop.f32.mrb[0].mxu0
          %v543 = vadd.f32 0.0, %v542
          %v544 = vpop.f32.mrb[0].mxu0
          %545 = vmatprep.mubr.bf16.mxu0 0
          %546 = vmatmul.mubr.bf16.gmra.mrb[0].mxu0 %v478
          %v547 = vpop.f32.mrb[0].mxu0
          %v548 = vadd.f32 0.0, %v547
          %v549 = vpop.f32.mrb[0].mxu0
          %v550 = vpop.f32.mrb[0].mxu0
          %v551 = vadd.f32 0.0, %v550
          %v552 = vpop.f32.mrb[0].mxu0
          %553 = vmatprep.mubr.bf16.mxu0 0
          %554 = vmatmul.mubr.bf16.gmra.mrb[0].mxu0 %v479
          %v555 = vpop.f32.mrb[0].mxu0
          %v556 = vadd.f32 0.0, %v555
          %v557 = vpop.f32.mrb[0].mxu0
          %v558 = vpop.f32.mrb[0].mxu0
          %v559 = vadd.f32 0.0, %v558
          %v560 = vpop.f32.mrb[0].mxu0
          %561 = vmatprep.mubr.bf16.mxu0 0
          %562 = vmatmul.mubr.bf16.gmra.mrb[0].mxu0 %v480
          %v563 = vpop.f32.mrb[0].mxu0
          %v564 = vadd.f32 0.0, %v563
          %v565 = vpop.f32.mrb[0].mxu0
          %v566 = vpop.f32.mrb[0].mxu0
          %v567 = vadd.f32 0.0, %v566
          %v568 = vpop.f32.mrb[0].mxu0
          %569 = vmatprep.mubr.bf16.mxu0 0
          %570 = vmatmul.mubr.bf16.gmra.mrb[0].mxu0 %v481
          %v571 = vpop.f32.mrb[0].mxu0
          %v572 = vadd.f32 0.0, %v571
          %v573 = vpop.f32.mrb[0].mxu0
          %v574 = vpop.f32.mrb[0].mxu0
          %v575 = vadd.f32 0.0, %v574
          %v576 = vpop.f32.mrb[0].mxu0
          %577 = vmatprep.mubr.bf16.mxu0 0
          %578 = vmatmul.mubr.bf16.gmra.mrb[0].mxu0 %v482
          %v579 = vpop.f32.mrb[0].mxu0
          %v580 = vadd.f32 0.0, %v579
          %v581 = vpop.f32.mrb[0].mxu0
          %v582 = vpop.f32.mrb[0].mxu0
          %v583 = vadd.f32 0.0, %v582
          %v584 = vpop.f32.mrb[0].mxu0
          %585 = vmatprep.mubr.bf16.mxu0 0
          %586 = vmatmul.mubr.bf16.gmra.mrb[0].mxu0 %v483
          %v587 = vpop.f32.mrb[0].mxu0
          %v588 = vadd.f32 0.0, %v587
          %v589 = vpop.f32.mrb[0].mxu0
          %v590 = vpop.f32.mrb[0].mxu0
          %v591 = vadd.f32 0.0, %v590
          %v592 = vpop.f32.mrb[0].mxu0
          %593 = vmatprep.mubr.bf16.mxu0 0
          %594 = vmatmul.mubr.bf16.gmra.mrb[0].mxu0 %v484
          %v595 = vpop.f32.mrb[0].mxu0
          %v596 = vadd.f32 0.0, %v595
          %v597 = vpop.f32.mrb[0].mxu0
          %v598 = vpop.f32.mrb[0].mxu0
          %v599 = vadd.f32 0.0, %v598
          %v600 = vpop.f32.mrb[0].mxu0
          %601 = vmatprep.mubr.bf16.mxu0 0
          %602 = vmatmul.mubr.bf16.gmra.mrb[0].mxu0 %v485
          %v603 = vpop.f32.mrb[0].mxu0
          %v604 = vadd.f32 0.0, %v603
          %v605 = vpop.f32.mrb[0].mxu0
          %v606 = vpop.f32.mrb[0].mxu0
          %v607 = vadd.f32 0.0, %v606
          %v608 = vpop.f32.mrb[0].mxu0
          %609 = vmatprep.mubr.bf16.mxu0 0
          %610 = vmatmul.mubr.bf16.gmra.mrb[0].mxu0 %v486
          %v611 = vpop.f32.mrb[0].mxu0
          %v612 = vadd.f32 0.0, %v611
          %v613 = vpop.f32.mrb[0].mxu0
          %v614 = vpop.f32.mrb[0].mxu0
          %v615 = vadd.f32 0.0, %v614
          %v616 = vpop.f32.mrb[0].mxu0
          %617 = vmatprep.mubr.bf16.mxu0 0
          %618 = vmatmul.mubr.bf16.gmra.mrb[0].mxu0 %v487
          %v619 = vpop.f32.mrb[0].mxu0
          %v620 = vadd.f32 0.0, %v619
          %v621 = vpop.f32.mrb[0].mxu0
          %v622 = vpop.f32.mrb[0].mxu0
          %v623 = vadd.f32 0.0, %v622
          %v624 = vpop.f32.mrb[0].mxu0
          %625 = vmatprep.mubr.bf16.mxu0 0
          %626 = vmatmul.mubr.bf16.gmra.mrb[0].mxu0 %v488
          %v627 = vpop.f32.mrb[0].mxu0
          %v628 = vadd.f32 0.0, %v627
          %v629 = vpop.f32.mrb[0].mxu0
          %v630 = vpop.f32.mrb[0].mxu0
          %v631 = vadd.f32 0.0, %v630
          %v632 = vpop.f32.mrb[0].mxu0
          %633 = vmatprep.mubr.bf16.mxu0 0
          %634 = vmatmul.mubr.bf16.gmra.mrb[0].mxu0 %v489
          %v635 = vpop.f32.mrb[0].mxu0
          %v636 = vadd.f32 0.0, %v635
          %v637 = vpop.f32.mrb[0].mxu0
          %v638 = vpop.f32.mrb[0].mxu0
          %v639 = vadd.f32 0.0, %v638
          %v640 = vpop.f32.mrb[0].mxu0
          %641 = vmatprep.mubr.bf16.mxu0 0
          %642 = vmatmul.mubr.bf16.gmra.mrb[0].mxu0 %v490
          %v643 = vpop.f32.mrb[0].mxu0
          %v644 = vadd.f32 0.0, %v643
          %v645 = vpop.f32.mrb[0].mxu0
          %v646 = vpop.f32.mrb[0].mxu0
          %v647 = vadd.f32 0.0, %v646
          %v648 = vpop.f32.mrb[0].mxu0
          %649 = vmatprep.mubr.bf16.mxu0 0
          %650 = vmatmul.mubr.bf16.gmra.mrb[0].mxu0 %v491
          %v651 = vpop.f32.mrb[0].mxu0
          %v652 = vadd.f32 0.0, %v651
          %v653 = vpop.f32.mrb[0].mxu0
          %v654 = vpop.f32.mrb[0].mxu0
          %v655 = vadd.f32 0.0, %v654
          %v656 = vpop.f32.mrb[0].mxu0
          %657 = vmatprep.mubr.bf16.mxu0 0
          %658 = vmatmul.mubr.bf16.gmra.mrb[0].mxu0 %v492
          %v659 = vpop.f32.mrb[0].mxu0
          %v660 = vadd.f32 0.0, %v659
          %v661 = vpop.f32.mrb[0].mxu0
          %v662 = vpop.f32.mrb[0].mxu0
          %v663 = vadd.f32 0.0, %v662
          %v664 = vpop.f32.mrb[0].mxu0
          %665 = vdwg.mxu0
          %v666 = vld [vmem:[%s405] sm:$0xff]
          %v667 = vld [vmem:[%s405 + $0x8] sm:$0xff]
          %v668 = vld [vmem:[%s405 + $0x10] sm:$0xff]
          %v669 = vld [vmem:[%s405 + $0x18] sm:$0xff]
          %v670 = vld [vmem:[%s405 + $0x20] sm:$0xff]
          %v671 = vld [vmem:[%s405 + $0x28] sm:$0xff]
          %v672 = vld [vmem:[%s405 + $0x30] sm:$0xff]
          %v673 = vld [vmem:[%s405 + $0x38] sm:$0xff]
          %v674 = vld [vmem:[%s405 + $0x40] sm:$0xff]
          %v675 = vld [vmem:[%s405 + $0x48] sm:$0xff]
          %v676 = vld [vmem:[%s405 + $0x50] sm:$0xff]
          %v677 = vld [vmem:[%s405 + $0x58] sm:$0xff]
          %v678 = vld [vmem:[%s405 + $0x60] sm:$0xff]
          %v679 = vld [vmem:[%s405 + $0x68] sm:$0xff]
          %v680 = vld [vmem:[%s405 + $0x70] sm:$0xff]
          %v681 = vld [vmem:[%s405 + $0x78] sm:$0xff]
          %v682 = vld [vmem:[%s405 + $0x80] sm:$0xff]
          %v683 = vld [vmem:[%s405 + $0x88] sm:$0xff]
          %v684 = vld [vmem:[%s405 + $0x90] sm:$0xff]
          %v685 = vld [vmem:[%s405 + $0x98] sm:$0xff]
          %v686 = vld [vmem:[%s405 + $0xa0] sm:$0xff]
          %v687 = vld [vmem:[%s405 + $0xa8] sm:$0xff]
          %v688 = vld [vmem:[%s405 + $0xb0] sm:$0xff]
          %v689 = vld [vmem:[%s405 + $0xb8] sm:$0xff]
          %v690 = vld [vmem:[%s405 + $0xc0] sm:$0xff]
          %v691 = vld [vmem:[%s405 + $0xc8] sm:$0xff]
          %v692 = vld [vmem:[%s405 + $0xd0] sm:$0xff]
          %v693 = vld [vmem:[%s405 + $0xd8] sm:$0xff]
          %v694 = vld [vmem:[%s405 + $0xe0] sm:$0xff]
          %v695 = vld [vmem:[%s405 + $0xe8] sm:$0xff]
          %v696 = vld [vmem:[%s405 + $0xf0] sm:$0xff]
          %v697 = vld [vmem:[%s405 + $0xf8] sm:$0xff]
          %699 = vset.pattern.permute.xlu0 0
          %700 = vperm.xlu0 %699, %v666
          %v701 = vpop.permute.xlu0 %700
          %704 = vset.pattern.permute.xlu0 0
          %705 = vperm.xlu0 %704, %v667
          %v706 = vpop.permute.xlu0 %705
          %709 = vset.pattern.permute.xlu0 0
          %710 = vperm.xlu0 %709, %v668
          %v711 = vpop.permute.xlu0 %710
          %714 = vset.pattern.permute.xlu0 0
          %715 = vperm.xlu0 %714, %v669
          %v716 = vpop.permute.xlu0 %715
          %719 = vset.pattern.permute.xlu0 0
          %720 = vperm.xlu0 %719, %v670
          %v721 = vpop.permute.xlu0 %720
          %724 = vset.pattern.permute.xlu0 0
          %725 = vperm.xlu0 %724, %v671
          %v726 = vpop.permute.xlu0 %725
          %729 = vset.pattern.permute.xlu0 0
          %730 = vperm.xlu0 %729, %v672
          %v731 = vpop.permute.xlu0 %730
          %734 = vset.pattern.permute.xlu0 0
          %735 = vperm.xlu0 %734, %v673
          %v736 = vpop.permute.xlu0 %735
          %739 = vset.pattern.permute.xlu0 0
          %740 = vperm.xlu0 %739, %v674
          %v741 = vpop.permute.xlu0 %740
          %744 = vset.pattern.permute.xlu0 0
          %745 = vperm.xlu0 %744, %v675
          %v746 = vpop.permute.xlu0 %745
          %749 = vset.pattern.permute.xlu0 0
          %750 = vperm.xlu0 %749, %v676
          %v751 = vpop.permute.xlu0 %750
          %754 = vset.pattern.permute.xlu0 0
          %755 = vperm.xlu0 %754, %v677
          %v756 = vpop.permute.xlu0 %755
          %759 = vset.pattern.permute.xlu0 0
          %760 = vperm.xlu0 %759, %v678
          %v761 = vpop.permute.xlu0 %760
          %764 = vset.pattern.permute.xlu0 0
          %765 = vperm.xlu0 %764, %v679
          %v766 = vpop.permute.xlu0 %765
          %769 = vset.pattern.permute.xlu0 0
          %770 = vperm.xlu0 %769, %v680
          %v771 = vpop.permute.xlu0 %770
          %774 = vset.pattern.permute.xlu0 0
          %775 = vperm.xlu0 %774, %v681
          %v776 = vpop.permute.xlu0 %775
          %779 = vset.pattern.permute.xlu0 0
          %780 = vperm.xlu0 %779, %v682
          %v781 = vpop.permute.xlu0 %780
          %784 = vset.pattern.permute.xlu0 0
          %785 = vperm.xlu0 %784, %v683
          %v786 = vpop.permute.xlu0 %785
          %789 = vset.pattern.permute.xlu0 0
          %790 = vperm.xlu0 %789, %v684
          %v791 = vpop.permute.xlu0 %790
          %794 = vset.pattern.permute.xlu0 0
          %795 = vperm.xlu0 %794, %v685
          %v796 = vpop.permute.xlu0 %795
          %799 = vset.pattern.permute.xlu0 0
          %800 = vperm.xlu0 %799, %v686
          %v801 = vpop.permute.xlu0 %800
          %804 = vset.pattern.permute.xlu0 0
          %805 = vperm.xlu0 %804, %v687
          %v806 = vpop.permute.xlu0 %805
          %809 = vset.pattern.permute.xlu0 0
          %810 = vperm.xlu0 %809, %v688
          %v811 = vpop.permute.xlu0 %810
          %814 = vset.pattern.permute.xlu0 0
          %815 = vperm.xlu0 %814, %v689
          %v816 = vpop.permute.xlu0 %815
          %819 = vset.pattern.permute.xlu0 0
          %820 = vperm.xlu0 %819, %v690
          %v821 = vpop.permute.xlu0 %820
          %824 = vset.pattern.permute.xlu0 0
          %825 = vperm.xlu0 %824, %v691
          %v826 = vpop.permute.xlu0 %825
          %829 = vset.pattern.permute.xlu0 0
          %830 = vperm.xlu0 %829, %v692
          %v831 = vpop.permute.xlu0 %830
          %834 = vset.pattern.permute.xlu0 0
          %835 = vperm.xlu0 %834, %v693
          %v836 = vpop.permute.xlu0 %835
          %839 = vset.pattern.permute.xlu0 0
          %840 = vperm.xlu0 %839, %v694
          %v841 = vpop.permute.xlu0 %840
          %844 = vset.pattern.permute.xlu0 0
          %845 = vperm.xlu0 %844, %v695
          %v846 = vpop.permute.xlu0 %845
          %849 = vset.pattern.permute.xlu0 0
          %850 = vperm.xlu0 %849, %v696
          %v851 = vpop.permute.xlu0 %850
          %854 = vset.pattern.permute.xlu0 0
          %855 = vperm.xlu0 %854, %v697
          %v856 = vpop.permute.xlu0 %855
          %v858 = vmul.f32 %v540, %v701
          %v859 = vmul.f32 %v543, %v706
          %v860 = vmul.f32 %v548, %v711
          %v861 = vmul.f32 %v551, %v716
          %v862 = vmul.f32 %v556, %v721
          %v863 = vmul.f32 %v559, %v726
          %v864 = vmul.f32 %v564, %v731
          %v865 = vmul.f32 %v567, %v736
          %v866 = vmul.f32 %v572, %v741
          %v867 = vmul.f32 %v575, %v746
          %v868 = vmul.f32 %v580, %v751
          %v869 = vmul.f32 %v583, %v756
          %v870 = vmul.f32 %v588, %v761
          %v871 = vmul.f32 %v591, %v766
          %v872 = vmul.f32 %v596, %v771
          %v873 = vmul.f32 %v599, %v776
          %v874 = vmul.f32 %v604, %v781
          %v875 = vmul.f32 %v607, %v786
          %v876 = vmul.f32 %v612, %v791
          %v877 = vmul.f32 %v615, %v796
          %v878 = vmul.f32 %v620, %v801
          %v879 = vmul.f32 %v623, %v806
          %v880 = vmul.f32 %v628, %v811
          %v881 = vmul.f32 %v631, %v816
          %v882 = vmul.f32 %v636, %v821
          %v883 = vmul.f32 %v639, %v826
          %v884 = vmul.f32 %v644, %v831
          %v885 = vmul.f32 %v647, %v836
          %v886 = vmul.f32 %v652, %v841
          %v887 = vmul.f32 %v655, %v846
          %v888 = vmul.f32 %v660, %v851
          %v889 = vmul.f32 %v663, %v856
          %v890 = vld [vmem:[%s413] sm:$0x1]
          %v892 = vlaneseq
          %v893 = vshrl.u32 %v892, 7
          %v894 = vsub.s32 0, %v893
          %v895 = vrot.slane %v890, %v894
          %v897 = vmul.f32 %v858, %v895
          %v898 = vmul.f32 %v859, %v895
          %v899 = vmul.f32 %v860, %v895
          %v900 = vmul.f32 %v861, %v895
          %v901 = vmul.f32 %v862, %v895
          %v902 = vmul.f32 %v863, %v895
          %v903 = vmul.f32 %v864, %v895
          %v904 = vmul.f32 %v865, %v895
          %v905 = vmul.f32 %v866, %v895
          %v906 = vmul.f32 %v867, %v895
          %v907 = vmul.f32 %v868, %v895
          %v908 = vmul.f32 %v869, %v895
          %v909 = vmul.f32 %v870, %v895
          %v910 = vmul.f32 %v871, %v895
          %v911 = vmul.f32 %v872, %v895
          %v912 = vmul.f32 %v873, %v895
          %v913 = vmul.f32 %v874, %v895
          %v914 = vmul.f32 %v875, %v895
          %v915 = vmul.f32 %v876, %v895
          %v916 = vmul.f32 %v877, %v895
          %v917 = vmul.f32 %v878, %v895
          %v918 = vmul.f32 %v879, %v895
          %v919 = vmul.f32 %v880, %v895
          %v920 = vmul.f32 %v881, %v895
          %v921 = vmul.f32 %v882, %v895
          %v922 = vmul.f32 %v883, %v895
          %v923 = vmul.f32 %v884, %v895
          %v924 = vmul.f32 %v885, %v895
          %v925 = vmul.f32 %v886, %v895
          %v926 = vmul.f32 %v887, %v895
          %v927 = vmul.f32 %v888, %v895
          %v928 = vmul.f32 %v889, %v895
          %v929 = vmul.f32 %v897, %v897
          %v930 = vmul.f32 %v898, %v898
          %v931 = vmul.f32 %v899, %v899
          %v932 = vmul.f32 %v900, %v900
          %v933 = vmul.f32 %v901, %v901
          %v934 = vmul.f32 %v902, %v902
          %v935 = vmul.f32 %v903, %v903
          %v936 = vmul.f32 %v904, %v904
          %v937 = vmul.f32 %v905, %v905
          %v938 = vmul.f32 %v906, %v906
          %v939 = vmul.f32 %v907, %v907
          %v940 = vmul.f32 %v908, %v908
          %v941 = vmul.f32 %v909, %v909
          %v942 = vmul.f32 %v910, %v910
          %v943 = vmul.f32 %v911, %v911
          %v944 = vmul.f32 %v912, %v912
          %v945 = vmul.f32 %v913, %v913
          %v946 = vmul.f32 %v914, %v914
          %v947 = vmul.f32 %v915, %v915
          %v948 = vmul.f32 %v916, %v916
          %v949 = vmul.f32 %v917, %v917
          %v950 = vmul.f32 %v918, %v918
          %v951 = vmul.f32 %v919, %v919
          %v952 = vmul.f32 %v920, %v920
          %v953 = vmul.f32 %v921, %v921
          %v954 = vmul.f32 %v922, %v922
          %v955 = vmul.f32 %v923, %v923
          %v956 = vmul.f32 %v924, %v924
          %v957 = vmul.f32 %v925, %v925
          %v958 = vmul.f32 %v926, %v926
          %v959 = vmul.f32 %v927, %v927
          %v960 = vmul.f32 %v928, %v928
          %v961 = vmul.f32 %v897, %v929
          %v962 = vmul.f32 %v898, %v930
          %v963 = vmul.f32 %v899, %v931
          %v964 = vmul.f32 %v900, %v932
          %v965 = vmul.f32 %v901, %v933
          %v966 = vmul.f32 %v902, %v934
          %v967 = vmul.f32 %v903, %v935
          %v968 = vmul.f32 %v904, %v936
          %v969 = vmul.f32 %v905, %v937
          %v970 = vmul.f32 %v906, %v938
          %v971 = vmul.f32 %v907, %v939
          %v972 = vmul.f32 %v908, %v940
          %v973 = vmul.f32 %v909, %v941
          %v974 = vmul.f32 %v910, %v942
          %v975 = vmul.f32 %v911, %v943
          %v976 = vmul.f32 %v912, %v944
          %v977 = vmul.f32 %v913, %v945
          %v978 = vmul.f32 %v914, %v946
          %v979 = vmul.f32 %v915, %v947
          %v980 = vmul.f32 %v916, %v948
          %v981 = vmul.f32 %v917, %v949
          %v982 = vmul.f32 %v918, %v950
          %v983 = vmul.f32 %v919, %v951
          %v984 = vmul.f32 %v920, %v952
          %v985 = vmul.f32 %v921, %v953
          %v986 = vmul.f32 %v922, %v954
          %v987 = vmul.f32 %v923, %v955
          %v988 = vmul.f32 %v924, %v956
          %v989 = vmul.f32 %v925, %v957
          %v990 = vmul.f32 %v926, %v958
          %v991 = vmul.f32 %v927, %v959
          %v992 = vmul.f32 %v928, %v960
          %v993 = vmul.f32 %v961, 0.044715
          %v994 = vmul.f32 %v962, 0.044715
          %v995 = vmul.f32 %v963, 0.044715
          %v996 = vmul.f32 %v964, 0.044715
          %v997 = vmul.f32 %v965, 0.044715
          %v998 = vmul.f32 %v966, 0.044715
          %v999 = vmul.f32 %v967, 0.044715
          %v1000 = vmul.f32 %v968, 0.044715
          %v1001 = vmul.f32 %v969, 0.044715
          %v1002 = vmul.f32 %v970, 0.044715
          %v1003 = vmul.f32 %v971, 0.044715
          %v1004 = vmul.f32 %v972, 0.044715
          %v1005 = vmul.f32 %v973, 0.044715
          %v1006 = vmul.f32 %v974, 0.044715
          %v1007 = vmul.f32 %v975, 0.044715
          %v1008 = vmul.f32 %v976, 0.044715
          %v1009 = vmul.f32 %v977, 0.044715
          %v1010 = vmul.f32 %v978, 0.044715
          %v1011 = vmul.f32 %v979, 0.044715
          %v1012 = vmul.f32 %v980, 0.044715
          %v1013 = vmul.f32 %v981, 0.044715
          %v1014 = vmul.f32 %v982, 0.044715
          %v1015 = vmul.f32 %v983, 0.044715
          %v1016 = vmul.f32 %v984, 0.044715
          %v1017 = vmul.f32 %v985, 0.044715
          %v1018 = vmul.f32 %v986, 0.044715
          %v1019 = vmul.f32 %v987, 0.044715
          %v1020 = vmul.f32 %v988, 0.044715
          %v1021 = vmul.f32 %v989, 0.044715
          %v1022 = vmul.f32 %v990, 0.044715
          %v1023 = vmul.f32 %v991, 0.044715
          %v1024 = vmul.f32 %v992, 0.044715
          %v1025 = vadd.f32 %v897, %v993
          %v1026 = vadd.f32 %v898, %v994
          %v1027 = vadd.f32 %v899, %v995
          %v1028 = vadd.f32 %v900, %v996
          %v1029 = vadd.f32 %v901, %v997
          %v1030 = vadd.f32 %v902, %v998
          %v1031 = vadd.f32 %v903, %v999
          %v1032 = vadd.f32 %v904, %v1000
          %v1033 = vadd.f32 %v905, %v1001
          %v1034 = vadd.f32 %v906, %v1002
          %v1035 = vadd.f32 %v907, %v1003
          %v1036 = vadd.f32 %v908, %v1004
          %v1037 = vadd.f32 %v909, %v1005
          %v1038 = vadd.f32 %v910, %v1006
          %v1039 = vadd.f32 %v911, %v1007
          %v1040 = vadd.f32 %v912, %v1008
          %v1041 = vadd.f32 %v913, %v1009
          %v1042 = vadd.f32 %v914, %v1010
          %v1043 = vadd.f32 %v915, %v1011
          %v1044 = vadd.f32 %v916, %v1012
          %v1045 = vadd.f32 %v917, %v1013
          %v1046 = vadd.f32 %v918, %v1014
          %v1047 = vadd.f32 %v919, %v1015
          %v1048 = vadd.f32 %v920, %v1016
          %v1049 = vadd.f32 %v921, %v1017
          %v1050 = vadd.f32 %v922, %v1018
          %v1051 = vadd.f32 %v923, %v1019
          %v1052 = vadd.f32 %v924, %v1020
          %v1053 = vadd.f32 %v925, %v1021
          %v1054 = vadd.f32 %v926, %v1022
          %v1055 = vadd.f32 %v927, %v1023
          %v1056 = vadd.f32 %v928, %v1024
          %v1057 = vmul.f32 %v1025, 0.7978846
          %v1058 = vmul.f32 %v1026, 0.7978846
          %v1059 = vmul.f32 %v1027, 0.7978846
          %v1060 = vmul.f32 %v1028, 0.7978846
          %v1061 = vmul.f32 %v1029, 0.7978846
          %v1062 = vmul.f32 %v1030, 0.7978846
          %v1063 = vmul.f32 %v1031, 0.7978846
          %v1064 = vmul.f32 %v1032, 0.7978846
          %v1065 = vmul.f32 %v1033, 0.7978846
          %v1066 = vmul.f32 %v1034, 0.7978846
          %v1067 = vmul.f32 %v1035, 0.7978846
          %v1068 = vmul.f32 %v1036, 0.7978846
          %v1069 = vmul.f32 %v1037, 0.7978846
          %v1070 = vmul.f32 %v1038, 0.7978846
          %v1071 = vmul.f32 %v1039, 0.7978846
          %v1072 = vmul.f32 %v1040, 0.7978846
          %v1073 = vmul.f32 %v1041, 0.7978846
          %v1074 = vmul.f32 %v1042, 0.7978846
          %v1075 = vmul.f32 %v1043, 0.7978846
          %v1076 = vmul.f32 %v1044, 0.7978846
          %v1077 = vmul.f32 %v1045, 0.7978846
          %v1078 = vmul.f32 %v1046, 0.7978846
          %v1079 = vmul.f32 %v1047, 0.7978846
          %v1080 = vmul.f32 %v1048, 0.7978846
          %v1081 = vmul.f32 %v1049, 0.7978846
          %v1082 = vmul.f32 %v1050, 0.7978846
          %v1083 = vmul.f32 %v1051, 0.7978846
          %v1084 = vmul.f32 %v1052, 0.7978846
          %v1085 = vmul.f32 %v1053, 0.7978846
          %v1086 = vmul.f32 %v1054, 0.7978846
          %v1087 = vmul.f32 %v1055, 0.7978846
          %v1088 = vmul.f32 %v1056, 0.7978846
          %v1089 = vtanh.pop %v1057
          %v1090 = vtanh.pop %v1058
          %v1091 = vtanh.pop %v1059
          %v1092 = vtanh.pop %v1060
          %v1093 = vtanh.pop %v1061
          %v1094 = vtanh.pop %v1062
          %v1095 = vtanh.pop %v1063
          %v1096 = vtanh.pop %v1064
          %v1097 = vtanh.pop %v1065
          %v1098 = vtanh.pop %v1066
          %v1099 = vtanh.pop %v1067
          %v1100 = vtanh.pop %v1068
          %v1101 = vtanh.pop %v1069
          %v1102 = vtanh.pop %v1070
          %v1103 = vtanh.pop %v1071
          %v1104 = vtanh.pop %v1072
          %v1105 = vtanh.pop %v1073
          %v1106 = vtanh.pop %v1074
          %v1107 = vtanh.pop %v1075
          %v1108 = vtanh.pop %v1076
          %v1109 = vtanh.pop %v1077
          %v1110 = vtanh.pop %v1078
          %v1111 = vtanh.pop %v1079
          %v1112 = vtanh.pop %v1080
          %v1113 = vtanh.pop %v1081
          %v1114 = vtanh.pop %v1082
          %v1115 = vtanh.pop %v1083
          %v1116 = vtanh.pop %v1084
          %v1117 = vtanh.pop %v1085
          %v1118 = vtanh.pop %v1086
          %v1119 = vtanh.pop %v1087
          %v1120 = vtanh.pop %v1088
          %v1121 = vadd.f32 %v1089, 1.0
          %v1122 = vadd.f32 %v1090, 1.0
          %v1123 = vadd.f32 %v1091, 1.0
          %v1124 = vadd.f32 %v1092, 1.0
          %v1125 = vadd.f32 %v1093, 1.0
          %v1126 = vadd.f32 %v1094, 1.0
          %v1127 = vadd.f32 %v1095, 1.0
          %v1128 = vadd.f32 %v1096, 1.0
          %v1129 = vadd.f32 %v1097, 1.0
          %v1130 = vadd.f32 %v1098, 1.0
          %v1131 = vadd.f32 %v1099, 1.0
          %v1132 = vadd.f32 %v1100, 1.0
          %v1133 = vadd.f32 %v1101, 1.0
          %v1134 = vadd.f32 %v1102, 1.0
          %v1135 = vadd.f32 %v1103, 1.0
          %v1136 = vadd.f32 %v1104, 1.0
          %v1137 = vadd.f32 %v1105, 1.0
          %v1138 = vadd.f32 %v1106, 1.0
          %v1139 = vadd.f32 %v1107, 1.0
          %v1140 = vadd.f32 %v1108, 1.0
          %v1141 = vadd.f32 %v1109, 1.0
          %v1142 = vadd.f32 %v1110, 1.0
          %v1143 = vadd.f32 %v1111, 1.0
          %v1144 = vadd.f32 %v1112, 1.0
          %v1145 = vadd.f32 %v1113, 1.0
          %v1146 = vadd.f32 %v1114, 1.0
          %v1147 = vadd.f32 %v1115, 1.0
          %v1148 = vadd.f32 %v1116, 1.0
          %v1149 = vadd.f32 %v1117, 1.0
          %v1150 = vadd.f32 %v1118, 1.0
          %v1151 = vadd.f32 %v1119, 1.0
          %v1152 = vadd.f32 %v1120, 1.0
          %v1153 = vmul.f32 %v1121, 0.5
          %v1154 = vmul.f32 %v1122, 0.5
          %v1155 = vmul.f32 %v1123, 0.5
          %v1156 = vmul.f32 %v1124, 0.5
          %v1157 = vmul.f32 %v1125, 0.5
          %v1158 = vmul.f32 %v1126, 0.5
          %v1159 = vmul.f32 %v1127, 0.5
          %v1160 = vmul.f32 %v1128, 0.5
          %v1161 = vmul.f32 %v1129, 0.5
          %v1162 = vmul.f32 %v1130, 0.5
          %v1163 = vmul.f32 %v1131, 0.5
          %v1164 = vmul.f32 %v1132, 0.5
          %v1165 = vmul.f32 %v1133, 0.5
          %v1166 = vmul.f32 %v1134, 0.5
          %v1167 = vmul.f32 %v1135, 0.5
          %v1168 = vmul.f32 %v1136, 0.5
          %v1169 = vmul.f32 %v1137, 0.5
          %v1170 = vmul.f32 %v1138, 0.5
          %v1171 = vmul.f32 %v1139, 0.5
          %v1172 = vmul.f32 %v1140, 0.5
          %v1173 = vmul.f32 %v1141, 0.5
          %v1174 = vmul.f32 %v1142, 0.5
          %v1175 = vmul.f32 %v1143, 0.5
          %v1176 = vmul.f32 %v1144, 0.5
          %v1177 = vmul.f32 %v1145, 0.5
          %v1178 = vmul.f32 %v1146, 0.5
          %v1179 = vmul.f32 %v1147, 0.5
          %v1180 = vmul.f32 %v1148, 0.5
          %v1181 = vmul.f32 %v1149, 0.5
          %v1182 = vmul.f32 %v1150, 0.5
          %v1183 = vmul.f32 %v1151, 0.5
          %v1184 = vmul.f32 %v1152, 0.5
          %v1185 = vmul.f32 %v897, %v1153
          %v1186 = vmul.f32 %v898, %v1154
          %v1187 = vmul.f32 %v899, %v1155
          %v1188 = vmul.f32 %v900, %v1156
          %v1189 = vmul.f32 %v901, %v1157
          %v1190 = vmul.f32 %v902, %v1158
          %v1191 = vmul.f32 %v903, %v1159
          %v1192 = vmul.f32 %v904, %v1160
          %v1193 = vmul.f32 %v905, %v1161
          %v1194 = vmul.f32 %v906, %v1162
          %v1195 = vmul.f32 %v907, %v1163
          %v1196 = vmul.f32 %v908, %v1164
          %v1197 = vmul.f32 %v909, %v1165
          %v1198 = vmul.f32 %v910, %v1166
          %v1199 = vmul.f32 %v911, %v1167
          %v1200 = vmul.f32 %v912, %v1168
          %v1201 = vmul.f32 %v913, %v1169
          %v1202 = vmul.f32 %v914, %v1170
          %v1203 = vmul.f32 %v915, %v1171
          %v1204 = vmul.f32 %v916, %v1172
          %v1205 = vmul.f32 %v917, %v1173
          %v1206 = vmul.f32 %v918, %v1174
          %v1207 = vmul.f32 %v919, %v1175
          %v1208 = vmul.f32 %v920, %v1176
          %v1209 = vmul.f32 %v921, %v1177
          %v1210 = vmul.f32 %v922, %v1178
          %v1211 = vmul.f32 %v923, %v1179
          %v1212 = vmul.f32 %v924, %v1180
          %v1213 = vmul.f32 %v925, %v1181
          %v1214 = vmul.f32 %v926, %v1182
          %v1215 = vmul.f32 %v927, %v1183
          %v1216 = vmul.f32 %v928, %v1184
          %s1217 = smul.u32 %s26, 256
          %s1218 = scalar_lea.vmem [#allocation2], %s1217
          %1219 = vst [vmem:[%s1218] sm:$0xff] %v1185
          %1220 = vst [vmem:[%s1218 + $0x8] sm:$0xff] %v1186
          %1221 = vst [vmem:[%s1218 + $0x10] sm:$0xff] %v1187
          %1222 = vst [vmem:[%s1218 + $0x18] sm:$0xff] %v1188
          %1223 = vst [vmem:[%s1218 + $0x20] sm:$0xff] %v1189
          %1224 = vst [vmem:[%s1218 + $0x28] sm:$0xff] %v1190
          %1225 = vst [vmem:[%s1218 + $0x30] sm:$0xff] %v1191
          %1226 = vst [vmem:[%s1218 + $0x38] sm:$0xff] %v1192
          %1227 = vst [vmem:[%s1218 + $0x40] sm:$0xff] %v1193
          %1228 = vst [vmem:[%s1218 + $0x48] sm:$0xff] %v1194
          %1229 = vst [vmem:[%s1218 + $0x50] sm:$0xff] %v1195
          %1230 = vst [vmem:[%s1218 + $0x58] sm:$0xff] %v1196
          %1231 = vst [vmem:[%s1218 + $0x60] sm:$0xff] %v1197
          %1232 = vst [vmem:[%s1218 + $0x68] sm:$0xff] %v1198
          %1233 = vst [vmem:[%s1218 + $0x70] sm:$0xff] %v1199
          %1234 = vst [vmem:[%s1218 + $0x78] sm:$0xff] %v1200
          %1235 = vst [vmem:[%s1218 + $0x80] sm:$0xff] %v1201
          %1236 = vst [vmem:[%s1218 + $0x88] sm:$0xff] %v1202
          %1237 = vst [vmem:[%s1218 + $0x90] sm:$0xff] %v1203
          %1238 = vst [vmem:[%s1218 + $0x98] sm:$0xff] %v1204
          %1239 = vst [vmem:[%s1218 + $0xa0] sm:$0xff] %v1205
          %1240 = vst [vmem:[%s1218 + $0xa8] sm:$0xff] %v1206
          %1241 = vst [vmem:[%s1218 + $0xb0] sm:$0xff] %v1207
          %1242 = vst [vmem:[%s1218 + $0xb8] sm:$0xff] %v1208
          %1243 = vst [vmem:[%s1218 + $0xc0] sm:$0xff] %v1209
          %1244 = vst [vmem:[%s1218 + $0xc8] sm:$0xff] %v1210
          %1245 = vst [vmem:[%s1218 + $0xd0] sm:$0xff] %v1211
          %1246 = vst [vmem:[%s1218 + $0xd8] sm:$0xff] %v1212
          %1247 = vst [vmem:[%s1218 + $0xe0] sm:$0xff] %v1213
          %1248 = vst [vmem:[%s1218 + $0xe8] sm:$0xff] %v1214
          %1249 = vst [vmem:[%s1218 + $0xf0] sm:$0xff] %v1215
          %1250 = vst [vmem:[%s1218 + $0xf8] sm:$0xff] %v1216
          %v1251 = vld [vmem:[#allocation3] sm:$0xff]
          %v1252 = vld [vmem:[#allocation3 + $0x8] sm:$0xff]
          %v1253 = vld [vmem:[#allocation3 + $0x10] sm:$0xff]
          %v1254 = vld [vmem:[#allocation3 + $0x18] sm:$0xff]
          %v1255 = vld [vmem:[#allocation3 + $0x20] sm:$0xff]
          %v1256 = vld [vmem:[#allocation3 + $0x28] sm:$0xff]
          %v1257 = vld [vmem:[#allocation3 + $0x30] sm:$0xff]
          %v1258 = vld [vmem:[#allocation3 + $0x38] sm:$0xff]
          %v1259 = vld [vmem:[#allocation3 + $0x40] sm:$0xff]
          %v1260 = vld [vmem:[#allocation3 + $0x48] sm:$0xff]
          %v1261 = vld [vmem:[#allocation3 + $0x50] sm:$0xff]
          %v1262 = vld [vmem:[#allocation3 + $0x58] sm:$0xff]
          %v1263 = vld [vmem:[#allocation3 + $0x60] sm:$0xff]
          %v1264 = vld [vmem:[#allocation3 + $0x68] sm:$0xff]
          %v1265 = vld [vmem:[#allocation3 + $0x70] sm:$0xff]
          %v1266 = vld [vmem:[#allocation3 + $0x78] sm:$0xff]
          %v1267 = vld [vmem:[#allocation3 + $0x80] sm:$0xff]
          %v1268 = vld [vmem:[#allocation3 + $0x88] sm:$0xff]
          %v1269 = vld [vmem:[#allocation3 + $0x90] sm:$0xff]
          %v1270 = vld [vmem:[#allocation3 + $0x98] sm:$0xff]
          %v1271 = vld [vmem:[#allocation3 + $0xa0] sm:$0xff]
          %v1272 = vld [vmem:[#allocation3 + $0xa8] sm:$0xff]
          %v1273 = vld [vmem:[#allocation3 + $0xb0] sm:$0xff]
          %v1274 = vld [vmem:[#allocation3 + $0xb8] sm:$0xff]
          %v1275 = vld [vmem:[#allocation3 + $0xc0] sm:$0xff]
          %v1276 = vld [vmem:[#allocation3 + $0xc8] sm:$0xff]
          %v1277 = vld [vmem:[#allocation3 + $0xd0] sm:$0xff]
          %v1278 = vld [vmem:[#allocation3 + $0xd8] sm:$0xff]
          %v1279 = vld [vmem:[#allocation3 + $0xe0] sm:$0xff]
          %v1280 = vld [vmem:[#allocation3 + $0xe8] sm:$0xff]
          %v1281 = vld [vmem:[#allocation3 + $0xf0] sm:$0xff]
          %v1282 = vld [vmem:[#allocation3 + $0xf8] sm:$0xff]
          %v1283 = vand.u32 2147483647, %v1185
          %v1284 = vand.u32 2147483647, %v1186
          %v1285 = vand.u32 2147483647, %v1187
          %v1286 = vand.u32 2147483647, %v1188
          %v1287 = vand.u32 2147483647, %v1189
          %v1288 = vand.u32 2147483647, %v1190
          %v1289 = vand.u32 2147483647, %v1191
          %v1290 = vand.u32 2147483647, %v1192
          %v1291 = vand.u32 2147483647, %v1193
          %v1292 = vand.u32 2147483647, %v1194
          %v1293 = vand.u32 2147483647, %v1195
          %v1294 = vand.u32 2147483647, %v1196
          %v1295 = vand.u32 2147483647, %v1197
          %v1296 = vand.u32 2147483647, %v1198
          %v1297 = vand.u32 2147483647, %v1199
          %v1298 = vand.u32 2147483647, %v1200
          %v1299 = vand.u32 2147483647, %v1201
          %v1300 = vand.u32 2147483647, %v1202
          %v1301 = vand.u32 2147483647, %v1203
          %v1302 = vand.u32 2147483647, %v1204
          %v1303 = vand.u32 2147483647, %v1205
          %v1304 = vand.u32 2147483647, %v1206
          %v1305 = vand.u32 2147483647, %v1207
          %v1306 = vand.u32 2147483647, %v1208
          %v1307 = vand.u32 2147483647, %v1209
          %v1308 = vand.u32 2147483647, %v1210
          %v1309 = vand.u32 2147483647, %v1211
          %v1310 = vand.u32 2147483647, %v1212
          %v1311 = vand.u32 2147483647, %v1213
          %v1312 = vand.u32 2147483647, %v1214
          %v1313 = vand.u32 2147483647, %v1215
          %v1314 = vand.u32 2147483647, %v1216
          %1315 = vmax.xlane.f32.xlu0 %v1283
          %v1316 = vpop.xlane.xlu0 %1315
          %1317 = vmax.xlane.f32.xlu0 %v1284
          %v1318 = vpop.xlane.xlu0 %1317
          %1319 = vmax.xlane.f32.xlu0 %v1285
          %v1320 = vpop.xlane.xlu0 %1319
          %1321 = vmax.xlane.f32.xlu0 %v1286
          %v1322 = vpop.xlane.xlu0 %1321
          %1323 = vmax.xlane.f32.xlu0 %v1287
          %v1324 = vpop.xlane.xlu0 %1323
          %1325 = vmax.xlane.f32.xlu0 %v1288
          %v1326 = vpop.xlane.xlu0 %1325
          %1327 = vmax.xlane.f32.xlu0 %v1289
          %v1328 = vpop.xlane.xlu0 %1327
          %1329 = vmax.xlane.f32.xlu0 %v1290
          %v1330 = vpop.xlane.xlu0 %1329
          %1331 = vmax.xlane.f32.xlu0 %v1291
          %v1332 = vpop.xlane.xlu0 %1331
          %1333 = vmax.xlane.f32.xlu0 %v1292
          %v1334 = vpop.xlane.xlu0 %1333
          %1335 = vmax.xlane.f32.xlu0 %v1293
          %v1336 = vpop.xlane.xlu0 %1335
          %1337 = vmax.xlane.f32.xlu0 %v1294
          %v1338 = vpop.xlane.xlu0 %1337
          %1339 = vmax.xlane.f32.xlu0 %v1295
          %v1340 = vpop.xlane.xlu0 %1339
          %1341 = vmax.xlane.f32.xlu0 %v1296
          %v1342 = vpop.xlane.xlu0 %1341
          %1343 = vmax.xlane.f32.xlu0 %v1297
          %v1344 = vpop.xlane.xlu0 %1343
          %1345 = vmax.xlane.f32.xlu0 %v1298
          %v1346 = vpop.xlane.xlu0 %1345
          %1347 = vmax.xlane.f32.xlu0 %v1299
          %v1348 = vpop.xlane.xlu0 %1347
          %1349 = vmax.xlane.f32.xlu0 %v1300
          %v1350 = vpop.xlane.xlu0 %1349
          %1351 = vmax.xlane.f32.xlu0 %v1301
          %v1352 = vpop.xlane.xlu0 %1351
          %1353 = vmax.xlane.f32.xlu0 %v1302
          %v1354 = vpop.xlane.xlu0 %1353
          %1355 = vmax.xlane.f32.xlu0 %v1303
          %v1356 = vpop.xlane.xlu0 %1355
          %1357 = vmax.xlane.f32.xlu0 %v1304
          %v1358 = vpop.xlane.xlu0 %1357
          %1359 = vmax.xlane.f32.xlu0 %v1305
          %v1360 = vpop.xlane.xlu0 %1359
          %1361 = vmax.xlane.f32.xlu0 %v1306
          %v1362 = vpop.xlane.xlu0 %1361
          %1363 = vmax.xlane.f32.xlu0 %v1307
          %v1364 = vpop.xlane.xlu0 %1363
          %1365 = vmax.xlane.f32.xlu0 %v1308
          %v1366 = vpop.xlane.xlu0 %1365
          %1367 = vmax.xlane.f32.xlu0 %v1309
          %v1368 = vpop.xlane.xlu0 %1367
          %1369 = vmax.xlane.f32.xlu0 %v1310
          %v1370 = vpop.xlane.xlu0 %1369
          %1371 = vmax.xlane.f32.xlu0 %v1311
          %v1372 = vpop.xlane.xlu0 %1371
          %1373 = vmax.xlane.f32.xlu0 %v1312
          %v1374 = vpop.xlane.xlu0 %1373
          %1375 = vmax.xlane.f32.xlu0 %v1313
          %v1376 = vpop.xlane.xlu0 %1375
          %1377 = vmax.xlane.f32.xlu0 %v1314
          %v1378 = vpop.xlane.xlu0 %1377
          %v1379 = vmax.f32 %v1251, %v1316
          %v1380 = vmax.f32 %v1252, %v1318
          %v1381 = vmax.f32 %v1253, %v1320
          %v1382 = vmax.f32 %v1254, %v1322
          %v1383 = vmax.f32 %v1255, %v1324
          %v1384 = vmax.f32 %v1256, %v1326
          %v1385 = vmax.f32 %v1257, %v1328
          %v1386 = vmax.f32 %v1258, %v1330
          %v1387 = vmax.f32 %v1259, %v1332
          %v1388 = vmax.f32 %v1260, %v1334
          %v1389 = vmax.f32 %v1261, %v1336
          %v1390 = vmax.f32 %v1262, %v1338
          %v1391 = vmax.f32 %v1263, %v1340
          %v1392 = vmax.f32 %v1264, %v1342
          %v1393 = vmax.f32 %v1265, %v1344
          %v1394 = vmax.f32 %v1266, %v1346
          %v1395 = vmax.f32 %v1267, %v1348
          %v1396 = vmax.f32 %v1268, %v1350
          %v1397 = vmax.f32 %v1269, %v1352
          %v1398 = vmax.f32 %v1270, %v1354
          %v1399 = vmax.f32 %v1271, %v1356
          %v1400 = vmax.f32 %v1272, %v1358
          %v1401 = vmax.f32 %v1273, %v1360
          %v1402 = vmax.f32 %v1274, %v1362
          %v1403 = vmax.f32 %v1275, %v1364
          %v1404 = vmax.f32 %v1276, %v1366
          %v1405 = vmax.f32 %v1277, %v1368
          %v1406 = vmax.f32 %v1278, %v1370
          %v1407 = vmax.f32 %v1279, %v1372
          %v1408 = vmax.f32 %v1280, %v1374
          %v1409 = vmax.f32 %v1281, %v1376
          %v1410 = vmax.f32 %v1282, %v1378
          %vm1411 = vcmask 7168
          %1412 = vst.msk [vmem:[#allocation3] sm:$0xff] %vm1411, %v1379
          %1413 = vst.msk [vmem:[#allocation3 + $0x8] sm:$0xff] %vm1411, %v1380
          %1414 = vst.msk [vmem:[#allocation3 + $0x10] sm:$0xff] %vm1411, %v1381
          %1415 = vst.msk [vmem:[#allocation3 + $0x18] sm:$0xff] %vm1411, %v1382
          %1416 = vst.msk [vmem:[#allocation3 + $0x20] sm:$0xff] %vm1411, %v1383
          %1417 = vst.msk [vmem:[#allocation3 + $0x28] sm:$0xff] %vm1411, %v1384
          %1418 = vst.msk [vmem:[#allocation3 + $0x30] sm:$0xff] %vm1411, %v1385
          %1419 = vst.msk [vmem:[#allocation3 + $0x38] sm:$0xff] %vm1411, %v1386
          %1420 = vst.msk [vmem:[#allocation3 + $0x40] sm:$0xff] %vm1411, %v1387
          %1421 = vst.msk [vmem:[#allocation3 + $0x48] sm:$0xff] %vm1411, %v1388
          %1422 = vst.msk [vmem:[#allocation3 + $0x50] sm:$0xff] %vm1411, %v1389
          %1423 = vst.msk [vmem:[#allocation3 + $0x58] sm:$0xff] %vm1411, %v1390
          %1424 = vst.msk [vmem:[#allocation3 + $0x60] sm:$0xff] %vm1411, %v1391
          %1425 = vst.msk [vmem:[#allocation3 + $0x68] sm:$0xff] %vm1411, %v1392
          %1426 = vst.msk [vmem:[#allocation3 + $0x70] sm:$0xff] %vm1411, %v1393
          %1427 = vst.msk [vmem:[#allocation3 + $0x78] sm:$0xff] %vm1411, %v1394
          %1428 = vst.msk [vmem:[#allocation3 + $0x80] sm:$0xff] %vm1411, %v1395
          %1429 = vst.msk [vmem:[#allocation3 + $0x88] sm:$0xff] %vm1411, %v1396
          %1430 = vst.msk [vmem:[#allocation3 + $0x90] sm:$0xff] %vm1411, %v1397
          %1431 = vst.msk [vmem:[#allocation3 + $0x98] sm:$0xff] %vm1411, %v1398
          %1432 = vst.msk [vmem:[#allocation3 + $0xa0] sm:$0xff] %vm1411, %v1399
          %1433 = vst.msk [vmem:[#allocation3 + $0xa8] sm:$0xff] %vm1411, %v1400
          %1434 = vst.msk [vmem:[#allocation3 + $0xb0] sm:$0xff] %vm1411, %v1401
          %1435 = vst.msk [vmem:[#allocation3 + $0xb8] sm:$0xff] %vm1411, %v1402
          %1436 = vst.msk [vmem:[#allocation3 + $0xc0] sm:$0xff] %vm1411, %v1403
          %1437 = vst.msk [vmem:[#allocation3 + $0xc8] sm:$0xff] %vm1411, %v1404
          %1438 = vst.msk [vmem:[#allocation3 + $0xd0] sm:$0xff] %vm1411, %v1405
          %1439 = vst.msk [vmem:[#allocation3 + $0xd8] sm:$0xff] %vm1411, %v1406
          %1440 = vst.msk [vmem:[#allocation3 + $0xe0] sm:$0xff] %vm1411, %v1407
          %1441 = vst.msk [vmem:[#allocation3 + $0xe8] sm:$0xff] %vm1411, %v1408
          %1442 = vst.msk [vmem:[#allocation3 + $0xf0] sm:$0xff] %vm1411, %v1409
          %1443 = vst.msk [vmem:[#allocation3 + $0xf8] sm:$0xff] %vm1411, %v1410
        $region90: #{tpu_custom_call.1} parent=77 // pred_fallthru
          _
        %p1444 = scmp.eq.s32.totalorder %s25, 1
        // Predicated region
        $region95: #{tpu_custom_call.1} parent=77 // pred_check
          %p1445 = pneg %p1444
        $region96: #{tpu_custom_call.1} parent=77 // pred_check_branch
          %1447 = sbr.rel (%p1445) target = $region98
        $region97: #{tpu_custom_call.1} parent=77 // pred_region
          %p1448 = scmp.eq.s32.totalorder %s26, 0
          // Predicated region
          $region99: #{tpu_custom_call.1} parent=97 // pred_check
            %p1449 = pneg %p1448
          $region100: #{tpu_custom_call.1} parent=97 // pred_check_branch
            %1451 = sbr.rel (%p1449) target = $region102
          $region101: #{tpu_custom_call.1} parent=97 // pred_region
            %1452 = vst [vmem:[#allocation4] sm:$0xff] 0.0
            %1453 = vst [vmem:[#allocation4 + $0x8] sm:$0xff] 0.0
            %1454 = vst [vmem:[#allocation4 + $0x10] sm:$0xff] 0.0
            %1455 = vst [vmem:[#allocation4 + $0x18] sm:$0xff] 0.0
            %1456 = vst [vmem:[#allocation4 + $0x20] sm:$0xff] 0.0
            %1457 = vst [vmem:[#allocation4 + $0x28] sm:$0xff] 0.0
            %1458 = vst [vmem:[#allocation4 + $0x30] sm:$0xff] 0.0
            %1459 = vst [vmem:[#allocation4 + $0x38] sm:$0xff] 0.0
            %1460 = vst [vmem:[#allocation4 + $0x40] sm:$0xff] 0.0
            %1461 = vst [vmem:[#allocation4 + $0x48] sm:$0xff] 0.0
            %1462 = vst [vmem:[#allocation4 + $0x50] sm:$0xff] 0.0
            %1463 = vst [vmem:[#allocation4 + $0x58] sm:$0xff] 0.0
            %1464 = vst [vmem:[#allocation4 + $0x60] sm:$0xff] 0.0
            %1465 = vst [vmem:[#allocation4 + $0x68] sm:$0xff] 0.0
            %1466 = vst [vmem:[#allocation4 + $0x70] sm:$0xff] 0.0
            %1467 = vst [vmem:[#allocation4 + $0x78] sm:$0xff] 0.0
            %1468 = vst [vmem:[#allocation4 + $0x80] sm:$0xff] 0.0
            %1469 = vst [vmem:[#allocation4 + $0x88] sm:$0xff] 0.0
            %1470 = vst [vmem:[#allocation4 + $0x90] sm:$0xff] 0.0
            %1471 = vst [vmem:[#allocation4 + $0x98] sm:$0xff] 0.0
            %1472 = vst [vmem:[#allocation4 + $0xa0] sm:$0xff] 0.0
            %1473 = vst [vmem:[#allocation4 + $0xa8] sm:$0xff] 0.0
            %1474 = vst [vmem:[#allocation4 + $0xb0] sm:$0xff] 0.0
            %1475 = vst [vmem:[#allocation4 + $0xb8] sm:$0xff] 0.0
            %1476 = vst [vmem:[#allocation4 + $0xc0] sm:$0xff] 0.0
            %1477 = vst [vmem:[#allocation4 + $0xc8] sm:$0xff] 0.0
            %1478 = vst [vmem:[#allocation4 + $0xd0] sm:$0xff] 0.0
            %1479 = vst [vmem:[#allocation4 + $0xd8] sm:$0xff] 0.0
            %1480 = vst [vmem:[#allocation4 + $0xe0] sm:$0xff] 0.0
            %1481 = vst [vmem:[#allocation4 + $0xe8] sm:$0xff] 0.0
            %1482 = vst [vmem:[#allocation4 + $0xf0] sm:$0xff] 0.0
            %1483 = vst [vmem:[#allocation4 + $0xf8] sm:$0xff] 0.0
          $region102: #{tpu_custom_call.1} parent=97 // pred_fallthru
            _
          %v1484 = vld [vmem:[#allocation3] sm:$0xff]
          %v1485 = vld [vmem:[#allocation3 + $0x8] sm:$0xff]
          %v1486 = vld [vmem:[#allocation3 + $0x10] sm:$0xff]
          %v1487 = vld [vmem:[#allocation3 + $0x18] sm:$0xff]
          %v1488 = vld [vmem:[#allocation3 + $0x20] sm:$0xff]
          %v1489 = vld [vmem:[#allocation3 + $0x28] sm:$0xff]
          %v1490 = vld [vmem:[#allocation3 + $0x30] sm:$0xff]
          %v1491 = vld [vmem:[#allocation3 + $0x38] sm:$0xff]
          %v1492 = vld [vmem:[#allocation3 + $0x40] sm:$0xff]
          %v1493 = vld [vmem:[#allocation3 + $0x48] sm:$0xff]
          %v1494 = vld [vmem:[#allocation3 + $0x50] sm:$0xff]
          %v1495 = vld [vmem:[#allocation3 + $0x58] sm:$0xff]
          %v1496 = vld [vmem:[#allocation3 + $0x60] sm:$0xff]
          %v1497 = vld [vmem:[#allocation3 + $0x68] sm:$0xff]
          %v1498 = vld [vmem:[#allocation3 + $0x70] sm:$0xff]
          %v1499 = vld [vmem:[#allocation3 + $0x78] sm:$0xff]
          %v1500 = vld [vmem:[#allocation3 + $0x80] sm:$0xff]
          %v1501 = vld [vmem:[#allocation3 + $0x88] sm:$0xff]
          %v1502 = vld [vmem:[#allocation3 + $0x90] sm:$0xff]
          %v1503 = vld [vmem:[#allocation3 + $0x98] sm:$0xff]
          %v1504 = vld [vmem:[#allocation3 + $0xa0] sm:$0xff]
          %v1505 = vld [vmem:[#allocation3 + $0xa8] sm:$0xff]
          %v1506 = vld [vmem:[#allocation3 + $0xb0] sm:$0xff]
          %v1507 = vld [vmem:[#allocation3 + $0xb8] sm:$0xff]
          %v1508 = vld [vmem:[#allocation3 + $0xc0] sm:$0xff]
          %v1509 = vld [vmem:[#allocation3 + $0xc8] sm:$0xff]
          %v1510 = vld [vmem:[#allocation3 + $0xd0] sm:$0xff]
          %v1511 = vld [vmem:[#allocation3 + $0xd8] sm:$0xff]
          %v1512 = vld [vmem:[#allocation3 + $0xe0] sm:$0xff]
          %v1513 = vld [vmem:[#allocation3 + $0xe8] sm:$0xff]
          %v1514 = vld [vmem:[#allocation3 + $0xf0] sm:$0xff]
          %v1515 = vld [vmem:[#allocation3 + $0xf8] sm:$0xff]
          %v1516 = vmax.f32 %v1484, 1e-08
          %v1517 = vmax.f32 %v1485, 1e-08
          %v1518 = vmax.f32 %v1486, 1e-08
          %v1519 = vmax.f32 %v1487, 1e-08
          %v1520 = vmax.f32 %v1488, 1e-08
          %v1521 = vmax.f32 %v1489, 1e-08
          %v1522 = vmax.f32 %v1490, 1e-08
          %v1523 = vmax.f32 %v1491, 1e-08
          %v1524 = vmax.f32 %v1492, 1e-08
          %v1525 = vmax.f32 %v1493, 1e-08
          %v1526 = vmax.f32 %v1494, 1e-08
          %v1527 = vmax.f32 %v1495, 1e-08
          %v1528 = vmax.f32 %v1496, 1e-08
          %v1529 = vmax.f32 %v1497, 1e-08
          %v1530 = vmax.f32 %v1498, 1e-08
          %v1531 = vmax.f32 %v1499, 1e-08
          %v1532 = vmax.f32 %v1500, 1e-08
          %v1533 = vmax.f32 %v1501, 1e-08
          %v1534 = vmax.f32 %v1502, 1e-08
          %v1535 = vmax.f32 %v1503, 1e-08
          %v1536 = vmax.f32 %v1504, 1e-08
          %v1537 = vmax.f32 %v1505, 1e-08
          %v1538 = vmax.f32 %v1506, 1e-08
          %v1539 = vmax.f32 %v1507, 1e-08
          %v1540 = vmax.f32 %v1508, 1e-08
          %v1541 = vmax.f32 %v1509, 1e-08
          %v1542 = vmax.f32 %v1510, 1e-08
          %v1543 = vmax.f32 %v1511, 1e-08
          %v1544 = vmax.f32 %v1512, 1e-08
          %v1545 = vmax.f32 %v1513, 1e-08
          %v1546 = vmax.f32 %v1514, 1e-08
          %v1547 = vmax.f32 %v1515, 1e-08
          %v1548 = vrcp.pop %v1516
          %v1549 = vrcp.pop %v1517
          %v1550 = vrcp.pop %v1518
          %v1551 = vrcp.pop %v1519
          %v1552 = vrcp.pop %v1520
          %v1553 = vrcp.pop %v1521
          %v1554 = vrcp.pop %v1522
          %v1555 = vrcp.pop %v1523
          %v1556 = vrcp.pop %v1524
          %v1557 = vrcp.pop %v1525
          %v1558 = vrcp.pop %v1526
          %v1559 = vrcp.pop %v1527
          %v1560 = vrcp.pop %v1528
          %v1561 = vrcp.pop %v1529
          %v1562 = vrcp.pop %v1530
          %v1563 = vrcp.pop %v1531
          %v1564 = vrcp.pop %v1532
          %v1565 = vrcp.pop %v1533
          %v1566 = vrcp.pop %v1534
          %v1567 = vrcp.pop %v1535
          %v1568 = vrcp.pop %v1536
          %v1569 = vrcp.pop %v1537
          %v1570 = vrcp.pop %v1538
          %v1571 = vrcp.pop %v1539
          %v1572 = vrcp.pop %v1540
          %v1573 = vrcp.pop %v1541
          %v1574 = vrcp.pop %v1542
          %v1575 = vrcp.pop %v1543
          %v1576 = vrcp.pop %v1544
          %v1577 = vrcp.pop %v1545
          %v1578 = vrcp.pop %v1546
          %v1579 = vrcp.pop %v1547
          %v1580 = vmul.f32 %v1548, 127.0
          %v1581 = vmul.f32 %v1549, 127.0
          %v1582 = vmul.f32 %v1550, 127.0
          %v1583 = vmul.f32 %v1551, 127.0
          %v1584 = vmul.f32 %v1552, 127.0
          %v1585 = vmul.f32 %v1553, 127.0
          %v1586 = vmul.f32 %v1554, 127.0
          %v1587 = vmul.f32 %v1555, 127.0
          %v1588 = vmul.f32 %v1556, 127.0
          %v1589 = vmul.f32 %v1557, 127.0
          %v1590 = vmul.f32 %v1558, 127.0
          %v1591 = vmul.f32 %v1559, 127.0
          %v1592 = vmul.f32 %v1560, 127.0
          %v1593 = vmul.f32 %v1561, 127.0
          %v1594 = vmul.f32 %v1562, 127.0
          %v1595 = vmul.f32 %v1563, 127.0
          %v1596 = vmul.f32 %v1564, 127.0
          %v1597 = vmul.f32 %v1565, 127.0
          %v1598 = vmul.f32 %v1566, 127.0
          %v1599 = vmul.f32 %v1567, 127.0
          %v1600 = vmul.f32 %v1568, 127.0
          %v1601 = vmul.f32 %v1569, 127.0
          %v1602 = vmul.f32 %v1570, 127.0
          %v1603 = vmul.f32 %v1571, 127.0
          %v1604 = vmul.f32 %v1572, 127.0
          %v1605 = vmul.f32 %v1573, 127.0
          %v1606 = vmul.f32 %v1574, 127.0
          %v1607 = vmul.f32 %v1575, 127.0
          %v1608 = vmul.f32 %v1576, 127.0
          %v1609 = vmul.f32 %v1577, 127.0
          %v1610 = vmul.f32 %v1578, 127.0
          %v1611 = vmul.f32 %v1579, 127.0
          %s1612 = smul.u32 %s26, 256
          %s1613 = scalar_lea.vmem [#allocation2], %s1612
          %v1614 = vld [vmem:[%s1613] sm:$0xff]
          %v1615 = vld [vmem:[%s1613 + $0x8] sm:$0xff]
          %v1616 = vld [vmem:[%s1613 + $0x10] sm:$0xff]
          %v1617 = vld [vmem:[%s1613 + $0x18] sm:$0xff]
          %v1618 = vld [vmem:[%s1613 + $0x20] sm:$0xff]
          %v1619 = vld [vmem:[%s1613 + $0x28] sm:$0xff]
          %v1620 = vld [vmem:[%s1613 + $0x30] sm:$0xff]
          %v1621 = vld [vmem:[%s1613 + $0x38] sm:$0xff]
          %v1622 = vld [vmem:[%s1613 + $0x40] sm:$0xff]
          %v1623 = vld [vmem:[%s1613 + $0x48] sm:$0xff]
          %v1624 = vld [vmem:[%s1613 + $0x50] sm:$0xff]
          %v1625 = vld [vmem:[%s1613 + $0x58] sm:$0xff]
          %v1626 = vld [vmem:[%s1613 + $0x60] sm:$0xff]
          %v1627 = vld [vmem:[%s1613 + $0x68] sm:$0xff]
          %v1628 = vld [vmem:[%s1613 + $0x70] sm:$0xff]
          %v1629 = vld [vmem:[%s1613 + $0x78] sm:$0xff]
          %v1630 = vld [vmem:[%s1613 + $0x80] sm:$0xff]
          %v1631 = vld [vmem:[%s1613 + $0x88] sm:$0xff]
          %v1632 = vld [vmem:[%s1613 + $0x90] sm:$0xff]
          %v1633 = vld [vmem:[%s1613 + $0x98] sm:$0xff]
          %v1634 = vld [vmem:[%s1613 + $0xa0] sm:$0xff]
          %v1635 = vld [vmem:[%s1613 + $0xa8] sm:$0xff]
          %v1636 = vld [vmem:[%s1613 + $0xb0] sm:$0xff]
          %v1637 = vld [vmem:[%s1613 + $0xb8] sm:$0xff]
          %v1638 = vld [vmem:[%s1613 + $0xc0] sm:$0xff]
          %v1639 = vld [vmem:[%s1613 + $0xc8] sm:$0xff]
          %v1640 = vld [vmem:[%s1613 + $0xd0] sm:$0xff]
          %v1641 = vld [vmem:[%s1613 + $0xd8] sm:$0xff]
          %v1642 = vld [vmem:[%s1613 + $0xe0] sm:$0xff]
          %v1643 = vld [vmem:[%s1613 + $0xe8] sm:$0xff]
          %v1644 = vld [vmem:[%s1613 + $0xf0] sm:$0xff]
          %v1645 = vld [vmem:[%s1613 + $0xf8] sm:$0xff]
          %1647 = vset.pattern.permute.xlu0 0
          %1648 = vperm.xlu0 %1647, %v1580
          %v1649 = vpop.permute.xlu0 %1648
          %1652 = vset.pattern.permute.xlu0 0
          %1653 = vperm.xlu0 %1652, %v1581
          %v1654 = vpop.permute.xlu0 %1653
          %1657 = vset.pattern.permute.xlu0 0
          %1658 = vperm.xlu0 %1657, %v1582
          %v1659 = vpop.permute.xlu0 %1658
          %1662 = vset.pattern.permute.xlu0 0
          %1663 = vperm.xlu0 %1662, %v1583
          %v1664 = vpop.permute.xlu0 %1663
          %1667 = vset.pattern.permute.xlu0 0
          %1668 = vperm.xlu0 %1667, %v1584
          %v1669 = vpop.permute.xlu0 %1668
          %1672 = vset.pattern.permute.xlu0 0
          %1673 = vperm.xlu0 %1672, %v1585
          %v1674 = vpop.permute.xlu0 %1673
          %1677 = vset.pattern.permute.xlu0 0
          %1678 = vperm.xlu0 %1677, %v1586
          %v1679 = vpop.permute.xlu0 %1678
          %1682 = vset.pattern.permute.xlu0 0
          %1683 = vperm.xlu0 %1682, %v1587
          %v1684 = vpop.permute.xlu0 %1683
          %1687 = vset.pattern.permute.xlu0 0
          %1688 = vperm.xlu0 %1687, %v1588
          %v1689 = vpop.permute.xlu0 %1688
          %1692 = vset.pattern.permute.xlu0 0
          %1693 = vperm.xlu0 %1692, %v1589
          %v1694 = vpop.permute.xlu0 %1693
          %1697 = vset.pattern.permute.xlu0 0
          %1698 = vperm.xlu0 %1697, %v1590
          %v1699 = vpop.permute.xlu0 %1698
          %1702 = vset.pattern.permute.xlu0 0
          %1703 = vperm.xlu0 %1702, %v1591
          %v1704 = vpop.permute.xlu0 %1703
          %1707 = vset.pattern.permute.xlu0 0
          %1708 = vperm.xlu0 %1707, %v1592
          %v1709 = vpop.permute.xlu0 %1708
          %1712 = vset.pattern.permute.xlu0 0
          %1713 = vperm.xlu0 %1712, %v1593
          %v1714 = vpop.permute.xlu0 %1713
          %1717 = vset.pattern.permute.xlu0 0
          %1718 = vperm.xlu0 %1717, %v1594
          %v1719 = vpop.permute.xlu0 %1718
          %1722 = vset.pattern.permute.xlu0 0
          %1723 = vperm.xlu0 %1722, %v1595
          %v1724 = vpop.permute.xlu0 %1723
          %1727 = vset.pattern.permute.xlu0 0
          %1728 = vperm.xlu0 %1727, %v1596
          %v1729 = vpop.permute.xlu0 %1728
          %1732 = vset.pattern.permute.xlu0 0
          %1733 = vperm.xlu0 %1732, %v1597
          %v1734 = vpop.permute.xlu0 %1733
          %1737 = vset.pattern.permute.xlu0 0
          %1738 = vperm.xlu0 %1737, %v1598
          %v1739 = vpop.permute.xlu0 %1738
          %1742 = vset.pattern.permute.xlu0 0
          %1743 = vperm.xlu0 %1742, %v1599
          %v1744 = vpop.permute.xlu0 %1743
          %1747 = vset.pattern.permute.xlu0 0
          %1748 = vperm.xlu0 %1747, %v1600
          %v1749 = vpop.permute.xlu0 %1748
          %1752 = vset.pattern.permute.xlu0 0
          %1753 = vperm.xlu0 %1752, %v1601
          %v1754 = vpop.permute.xlu0 %1753
          %1757 = vset.pattern.permute.xlu0 0
          %1758 = vperm.xlu0 %1757, %v1602
          %v1759 = vpop.permute.xlu0 %1758
          %1762 = vset.pattern.permute.xlu0 0
          %1763 = vperm.xlu0 %1762, %v1603
          %v1764 = vpop.permute.xlu0 %1763
          %1767 = vset.pattern.permute.xlu0 0
          %1768 = vperm.xlu0 %1767, %v1604
          %v1769 = vpop.permute.xlu0 %1768
          %1772 = vset.pattern.permute.xlu0 0
          %1773 = vperm.xlu0 %1772, %v1605
          %v1774 = vpop.permute.xlu0 %1773
          %1777 = vset.pattern.permute.xlu0 0
          %1778 = vperm.xlu0 %1777, %v1606
          %v1779 = vpop.permute.xlu0 %1778
          %1782 = vset.pattern.permute.xlu0 0
          %1783 = vperm.xlu0 %1782, %v1607
          %v1784 = vpop.permute.xlu0 %1783
          %1787 = vset.pattern.permute.xlu0 0
          %1788 = vperm.xlu0 %1787, %v1608
          %v1789 = vpop.permute.xlu0 %1788
          %1792 = vset.pattern.permute.xlu0 0
          %1793 = vperm.xlu0 %1792, %v1609
          %v1794 = vpop.permute.xlu0 %1793
          %1797 = vset.pattern.permute.xlu0 0
          %1798 = vperm.xlu0 %1797, %v1610
          %v1799 = vpop.permute.xlu0 %1798
          %1802 = vset.pattern.permute.xlu0 0
          %1803 = vperm.xlu0 %1802, %v1611
          %v1804 = vpop.permute.xlu0 %1803
          %v1806 = vmul.f32 %v1614, %v1649
          %v1807 = vmul.f32 %v1615, %v1654
          %v1808 = vmul.f32 %v1616, %v1659
          %v1809 = vmul.f32 %v1617, %v1664
          %v1810 = vmul.f32 %v1618, %v1669
          %v1811 = vmul.f32 %v1619, %v1674
          %v1812 = vmul.f32 %v1620, %v1679
          %v1813 = vmul.f32 %v1621, %v1684
          %v1814 = vmul.f32 %v1622, %v1689
          %v1815 = vmul.f32 %v1623, %v1694
          %v1816 = vmul.f32 %v1624, %v1699
          %v1817 = vmul.f32 %v1625, %v1704
          %v1818 = vmul.f32 %v1626, %v1709
          %v1819 = vmul.f32 %v1627, %v1714
          %v1820 = vmul.f32 %v1628, %v1719
          %v1821 = vmul.f32 %v1629, %v1724
          %v1822 = vmul.f32 %v1630, %v1729
          %v1823 = vmul.f32 %v1631, %v1734
          %v1824 = vmul.f32 %v1632, %v1739
          %v1825 = vmul.f32 %v1633, %v1744
          %v1826 = vmul.f32 %v1634, %v1749
          %v1827 = vmul.f32 %v1635, %v1754
          %v1828 = vmul.f32 %v1636, %v1759
          %v1829 = vmul.f32 %v1637, %v1764
          %v1830 = vmul.f32 %v1638, %v1769
          %v1831 = vmul.f32 %v1639, %v1774
          %v1832 = vmul.f32 %v1640, %v1779
          %v1833 = vmul.f32 %v1641, %v1784
          %v1834 = vmul.f32 %v1642, %v1789
          %v1835 = vmul.f32 %v1643, %v1794
          %v1836 = vmul.f32 %v1644, %v1799
          %v1837 = vmul.f32 %v1645, %v1804
          %v1838 = vround.ne.pseudo %v1806
          %v1839 = vround.ne.pseudo %v1807
          %v1840 = vround.ne.pseudo %v1808
          %v1841 = vround.ne.pseudo %v1809
          %v1842 = vround.ne.pseudo %v1810
          %v1843 = vround.ne.pseudo %v1811
          %v1844 = vround.ne.pseudo %v1812
          %v1845 = vround.ne.pseudo %v1813
          %v1846 = vround.ne.pseudo %v1814
          %v1847 = vround.ne.pseudo %v1815
          %v1848 = vround.ne.pseudo %v1816
          %v1849 = vround.ne.pseudo %v1817
          %v1850 = vround.ne.pseudo %v1818
          %v1851 = vround.ne.pseudo %v1819
          %v1852 = vround.ne.pseudo %v1820
          %v1853 = vround.ne.pseudo %v1821
          %v1854 = vround.ne.pseudo %v1822
          %v1855 = vround.ne.pseudo %v1823
          %v1856 = vround.ne.pseudo %v1824
          %v1857 = vround.ne.pseudo %v1825
          %v1858 = vround.ne.pseudo %v1826
          %v1859 = vround.ne.pseudo %v1827
          %v1860 = vround.ne.pseudo %v1828
          %v1861 = vround.ne.pseudo %v1829
          %v1862 = vround.ne.pseudo %v1830
          %v1863 = vround.ne.pseudo %v1831
          %v1864 = vround.ne.pseudo %v1832
          %v1865 = vround.ne.pseudo %v1833
          %v1866 = vround.ne.pseudo %v1834
          %v1867 = vround.ne.pseudo %v1835
          %v1868 = vround.ne.pseudo %v1836
          %v1869 = vround.ne.pseudo %v1837
          %v1870 = vmax.f32 %v1838, -127.0
          %v1871 = vmax.f32 %v1839, -127.0
          %v1872 = vmax.f32 %v1840, -127.0
          %v1873 = vmax.f32 %v1841, -127.0
          %v1874 = vmax.f32 %v1842, -127.0
          %v1875 = vmax.f32 %v1843, -127.0
          %v1876 = vmax.f32 %v1844, -127.0
          %v1877 = vmax.f32 %v1845, -127.0
          %v1878 = vmax.f32 %v1846, -127.0
          %v1879 = vmax.f32 %v1847, -127.0
          %v1880 = vmax.f32 %v1848, -127.0
          %v1881 = vmax.f32 %v1849, -127.0
          %v1882 = vmax.f32 %v1850, -127.0
          %v1883 = vmax.f32 %v1851, -127.0
          %v1884 = vmax.f32 %v1852, -127.0
          %v1885 = vmax.f32 %v1853, -127.0
          %v1886 = vmax.f32 %v1854, -127.0
          %v1887 = vmax.f32 %v1855, -127.0
          %v1888 = vmax.f32 %v1856, -127.0
          %v1889 = vmax.f32 %v1857, -127.0
          %v1890 = vmax.f32 %v1858, -127.0
          %v1891 = vmax.f32 %v1859, -127.0
          %v1892 = vmax.f32 %v1860, -127.0
          %v1893 = vmax.f32 %v1861, -127.0
          %v1894 = vmax.f32 %v1862, -127.0
          %v1895 = vmax.f32 %v1863, -127.0
          %v1896 = vmax.f32 %v1864, -127.0
          %v1897 = vmax.f32 %v1865, -127.0
          %v1898 = vmax.f32 %v1866, -127.0
          %v1899 = vmax.f32 %v1867, -127.0
          %v1900 = vmax.f32 %v1868, -127.0
          %v1901 = vmax.f32 %v1869, -127.0
          %v1902 = vmin.f32 %v1870, 127.0
          %v1903 = vmin.f32 %v1871, 127.0
          %v1904 = vmin.f32 %v1872, 127.0
          %v1905 = vmin.f32 %v1873, 127.0
          %v1906 = vmin.f32 %v1874, 127.0
          %v1907 = vmin.f32 %v1875, 127.0
          %v1908 = vmin.f32 %v1876, 127.0
          %v1909 = vmin.f32 %v1877, 127.0
          %v1910 = vmin.f32 %v1878, 127.0
          %v1911 = vmin.f32 %v1879, 127.0
          %v1912 = vmin.f32 %v1880, 127.0
          %v1913 = vmin.f32 %v1881, 127.0
          %v1914 = vmin.f32 %v1882, 127.0
          %v1915 = vmin.f32 %v1883, 127.0
          %v1916 = vmin.f32 %v1884, 127.0
          %v1917 = vmin.f32 %v1885, 127.0
          %v1918 = vmin.f32 %v1886, 127.0
          %v1919 = vmin.f32 %v1887, 127.0
          %v1920 = vmin.f32 %v1888, 127.0
          %v1921 = vmin.f32 %v1889, 127.0
          %v1922 = vmin.f32 %v1890, 127.0
          %v1923 = vmin.f32 %v1891, 127.0
          %v1924 = vmin.f32 %v1892, 127.0
          %v1925 = vmin.f32 %v1893, 127.0
          %v1926 = vmin.f32 %v1894, 127.0
          %v1927 = vmin.f32 %v1895, 127.0
          %v1928 = vmin.f32 %v1896, 127.0
          %v1929 = vmin.f32 %v1897, 127.0
          %v1930 = vmin.f32 %v1898, 127.0
          %v1931 = vmin.f32 %v1899, 127.0
          %v1932 = vmin.f32 %v1900, 127.0
          %v1933 = vmin.f32 %v1901, 127.0
          %v1934 = vld [vmem:[#allocation4] sm:$0xff]
          %v1935 = vld [vmem:[#allocation4 + $0x8] sm:$0xff]
          %v1936 = vld [vmem:[#allocation4 + $0x10] sm:$0xff]
          %v1937 = vld [vmem:[#allocation4 + $0x18] sm:$0xff]
          %v1938 = vld [vmem:[#allocation4 + $0x20] sm:$0xff]
          %v1939 = vld [vmem:[#allocation4 + $0x28] sm:$0xff]
          %v1940 = vld [vmem:[#allocation4 + $0x30] sm:$0xff]
          %v1941 = vld [vmem:[#allocation4 + $0x38] sm:$0xff]
          %v1942 = vld [vmem:[#allocation4 + $0x40] sm:$0xff]
          %v1943 = vld [vmem:[#allocation4 + $0x48] sm:$0xff]
          %v1944 = vld [vmem:[#allocation4 + $0x50] sm:$0xff]
          %v1945 = vld [vmem:[#allocation4 + $0x58] sm:$0xff]
          %v1946 = vld [vmem:[#allocation4 + $0x60] sm:$0xff]
          %v1947 = vld [vmem:[#allocation4 + $0x68] sm:$0xff]
          %v1948 = vld [vmem:[#allocation4 + $0x70] sm:$0xff]
          %v1949 = vld [vmem:[#allocation4 + $0x78] sm:$0xff]
          %v1950 = vld [vmem:[#allocation4 + $0x80] sm:$0xff]
          %v1951 = vld [vmem:[#allocation4 + $0x88] sm:$0xff]
          %v1952 = vld [vmem:[#allocation4 + $0x90] sm:$0xff]
          %v1953 = vld [vmem:[#allocation4 + $0x98] sm:$0xff]
          %v1954 = vld [vmem:[#allocation4 + $0xa0] sm:$0xff]
          %v1955 = vld [vmem:[#allocation4 + $0xa8] sm:$0xff]
          %v1956 = vld [vmem:[#allocation4 + $0xb0] sm:$0xff]
          %v1957 = vld [vmem:[#allocation4 + $0xb8] sm:$0xff]
          %v1958 = vld [vmem:[#allocation4 + $0xc0] sm:$0xff]
          %v1959 = vld [vmem:[#allocation4 + $0xc8] sm:$0xff]
          %v1960 = vld [vmem:[#allocation4 + $0xd0] sm:$0xff]
          %v1961 = vld [vmem:[#allocation4 + $0xd8] sm:$0xff]
          %v1962 = vld [vmem:[#allocation4 + $0xe0] sm:$0xff]
          %v1963 = vld [vmem:[#allocation4 + $0xe8] sm:$0xff]
          %v1964 = vld [vmem:[#allocation4 + $0xf0] sm:$0xff]
          %v1965 = vld [vmem:[#allocation4 + $0xf8] sm:$0xff]
          %v1966 = vpack.c.bf16 %v1903, %v1902
          %v1967 = vpack.c.bf16 %v1905, %v1904
          %v1968 = vpack.c.bf16 %v1907, %v1906
          %v1969 = vpack.c.bf16 %v1909, %v1908
          %v1970 = vpack.c.bf16 %v1911, %v1910
          %v1971 = vpack.c.bf16 %v1913, %v1912
          %v1972 = vpack.c.bf16 %v1915, %v1914
          %v1973 = vpack.c.bf16 %v1917, %v1916
          %v1974 = vpack.c.bf16 %v1919, %v1918
          %v1975 = vpack.c.bf16 %v1921, %v1920
          %v1976 = vpack.c.bf16 %v1923, %v1922
          %v1977 = vpack.c.bf16 %v1925, %v1924
          %v1978 = vpack.c.bf16 %v1927, %v1926
          %v1979 = vpack.c.bf16 %v1929, %v1928
          %v1980 = vpack.c.bf16 %v1931, %v1930
          %v1981 = vpack.c.bf16 %v1933, %v1932
          %v1982 = vld [vmem:[%s422] sm:$0xff]
          %v1983 = vld [vmem:[%s422 + $0x8] sm:$0xff]
          %v1984 = vld [vmem:[%s422 + $0x10] sm:$0xff]
          %v1985 = vld [vmem:[%s422 + $0x18] sm:$0xff]
          %v1986 = vunpack.c.l.s8.bf16 %v1982
          %v1987 = vunpack.c.h.s8.bf16 %v1982
          %v1988 = vunpack.c.l.s8.bf16 %v1983
          %v1989 = vunpack.c.h.s8.bf16 %v1983
          %v1990 = vunpack.c.l.s8.bf16 %v1984
          %v1991 = vunpack.c.h.s8.bf16 %v1984
          %v1992 = vunpack.c.l.s8.bf16 %v1985
          %v1993 = vunpack.c.h.s8.bf16 %v1985
          %1994 = vmatprep.subr.bf16.mxu0 0
          %1995 = vmatpush1.bf16.msra.mxu0 %v1986
          %1996 = vmatprep.subr.bf16.mxu0 0
          %1997 = vmatpush1.bf16.msra.mxu0 %v1987
          %1998 = vmatprep.subr.bf16.mxu0 0
          %1999 = vmatpush1.bf16.msra.mxu0 %v1988
          %2000 = vmatprep.subr.bf16.mxu0 0
          %2001 = vmatpush1.bf16.msra.mxu0 %v1989
          %2002 = vmatprep.subr.bf16.mxu0 0
          %2003 = vmatpush1.bf16.msra.mxu0 %v1990
          %2004 = vmatprep.subr.bf16.mxu0 0
          %2005 = vmatpush1.bf16.msra.mxu0 %v1991
          %2006 = vmatprep.subr.bf16.mxu0 0
          %2007 = vmatpush1.bf16.msra.mxu0 %v1992
          %2008 = vmatprep.subr.bf16.mxu0 0
          %2009 = vmatpush1.bf16.msra.mxu0 %v1993
          %2010 = vmatprep.subr.bf16.mxu0 0
          %2011 = vmatpush1.bf16.msra.mxu0 0
          %2012 = vmatprep.subr.bf16.mxu0 0
          %2013 = vmatpush1.bf16.msra.mxu0 0
          %2014 = vmatprep.subr.bf16.mxu0 0
          %2015 = vmatpush1.bf16.msra.mxu0 0
          %2016 = vmatprep.subr.bf16.mxu0 0
          %2017 = vmatpush1.bf16.msra.mxu0 0
          %2018 = vmatprep.subr.bf16.mxu0 0
          %2019 = vmatpush1.bf16.msra.mxu0 0
          %2020 = vmatprep.subr.bf16.mxu0 0
          %2021 = vmatpush1.bf16.msra.mxu0 0
          %2022 = vmatprep.subr.bf16.mxu0 0
          %2023 = vmatpush1.bf16.msra.mxu0 0
          %2024 = vmatprep.subr.bf16.mxu0 0
          %2025 = vmatpush1.bf16.msra.mxu0 0
          %2026 = vmatprep.mubr.bf16.mxu0 0
          %2027 = vmatmul.mubr.bf16.gmra.mrb[0].mxu0 %v1966
          %v2028 = vpop.f32.mrb[0].mxu0
          %v2029 = vadd.f32 0.0, %v2028
          %v2030 = vpop.f32.mrb[0].mxu0
          %v2031 = vpop.f32.mrb[0].mxu0
          %v2032 = vadd.f32 0.0, %v2031
          %v2033 = vpop.f32.mrb[0].mxu0
          %2034 = vmatprep.mubr.bf16.mxu0 0
          %2035 = vmatmul.mubr.bf16.gmra.mrb[0].mxu0 %v1967
          %v2036 = vpop.f32.mrb[0].mxu0
          %v2037 = vadd.f32 0.0, %v2036
          %v2038 = vpop.f32.mrb[0].mxu0
          %v2039 = vpop.f32.mrb[0].mxu0
          %v2040 = vadd.f32 0.0, %v2039
          %v2041 = vpop.f32.mrb[0].mxu0
          %2042 = vmatprep.mubr.bf16.mxu0 0
          %2043 = vmatmul.mubr.bf16.gmra.mrb[0].mxu0 %v1968
          %v2044 = vpop.f32.mrb[0].mxu0
          %v2045 = vadd.f32 0.0, %v2044
          %v2046 = vpop.f32.mrb[0].mxu0
          %v2047 = vpop.f32.mrb[0].mxu0
          %v2048 = vadd.f32 0.0, %v2047
          %v2049 = vpop.f32.mrb[0].mxu0
          %2050 = vmatprep.mubr.bf16.mxu0 0
          %2051 = vmatmul.mubr.bf16.gmra.mrb[0].mxu0 %v1969
          %v2052 = vpop.f32.mrb[0].mxu0
          %v2053 = vadd.f32 0.0, %v2052
          %v2054 = vpop.f32.mrb[0].mxu0
          %v2055 = vpop.f32.mrb[0].mxu0
          %v2056 = vadd.f32 0.0, %v2055
          %v2057 = vpop.f32.mrb[0].mxu0
          %2058 = vmatprep.mubr.bf16.mxu0 0
          %2059 = vmatmul.mubr.bf16.gmra.mrb[0].mxu0 %v1970
          %v2060 = vpop.f32.mrb[0].mxu0
          %v2061 = vadd.f32 0.0, %v2060
          %v2062 = vpop.f32.mrb[0].mxu0
          %v2063 = vpop.f32.mrb[0].mxu0
          %v2064 = vadd.f32 0.0, %v2063
          %v2065 = vpop.f32.mrb[0].mxu0
          %2066 = vmatprep.mubr.bf16.mxu0 0
          %2067 = vmatmul.mubr.bf16.gmra.mrb[0].mxu0 %v1971
          %v2068 = vpop.f32.mrb[0].mxu0
          %v2069 = vadd.f32 0.0, %v2068
          %v2070 = vpop.f32.mrb[0].mxu0
          %v2071 = vpop.f32.mrb[0].mxu0
          %v2072 = vadd.f32 0.0, %v2071
          %v2073 = vpop.f32.mrb[0].mxu0
          %2074 = vmatprep.mubr.bf16.mxu0 0
          %2075 = vmatmul.mubr.bf16.gmra.mrb[0].mxu0 %v1972
          %v2076 = vpop.f32.mrb[0].mxu0
          %v2077 = vadd.f32 0.0, %v2076
          %v2078 = vpop.f32.mrb[0].mxu0
          %v2079 = vpop.f32.mrb[0].mxu0
          %v2080 = vadd.f32 0.0, %v2079
          %v2081 = vpop.f32.mrb[0].mxu0
          %2082 = vmatprep.mubr.bf16.mxu0 0
          %2083 = vmatmul.mubr.bf16.gmra.mrb[0].mxu0 %v1973
          %v2084 = vpop.f32.mrb[0].mxu0
          %v2085 = vadd.f32 0.0, %v2084
          %v2086 = vpop.f32.mrb[0].mxu0
          %v2087 = vpop.f32.mrb[0].mxu0
          %v2088 = vadd.f32 0.0, %v2087
          %v2089 = vpop.f32.mrb[0].mxu0
          %2090 = vmatprep.mubr.bf16.mxu0 0
          %2091 = vmatmul.mubr.bf16.gmra.mrb[0].mxu0 %v1974
          %v2092 = vpop.f32.mrb[0].mxu0
          %v2093 = vadd.f32 0.0, %v2092
          %v2094 = vpop.f32.mrb[0].mxu0
          %v2095 = vpop.f32.mrb[0].mxu0
          %v2096 = vadd.f32 0.0, %v2095
          %v2097 = vpop.f32.mrb[0].mxu0
          %2098 = vmatprep.mubr.bf16.mxu0 0
          %2099 = vmatmul.mubr.bf16.gmra.mrb[0].mxu0 %v1975
          %v2100 = vpop.f32.mrb[0].mxu0
          %v2101 = vadd.f32 0.0, %v2100
          %v2102 = vpop.f32.mrb[0].mxu0
          %v2103 = vpop.f32.mrb[0].mxu0
          %v2104 = vadd.f32 0.0, %v2103
          %v2105 = vpop.f32.mrb[0].mxu0
          %2106 = vmatprep.mubr.bf16.mxu0 0
          %2107 = vmatmul.mubr.bf16.gmra.mrb[0].mxu0 %v1976
          %v2108 = vpop.f32.mrb[0].mxu0
          %v2109 = vadd.f32 0.0, %v2108
          %v2110 = vpop.f32.mrb[0].mxu0
          %v2111 = vpop.f32.mrb[0].mxu0
          %v2112 = vadd.f32 0.0, %v2111
          %v2113 = vpop.f32.mrb[0].mxu0
          %2114 = vmatprep.mubr.bf16.mxu0 0
          %2115 = vmatmul.mubr.bf16.gmra.mrb[0].mxu0 %v1977
          %v2116 = vpop.f32.mrb[0].mxu0
          %v2117 = vadd.f32 0.0, %v2116
          %v2118 = vpop.f32.mrb[0].mxu0
          %v2119 = vpop.f32.mrb[0].mxu0
          %v2120 = vadd.f32 0.0, %v2119
          %v2121 = vpop.f32.mrb[0].mxu0
          %2122 = vmatprep.mubr.bf16.mxu0 0
          %2123 = vmatmul.mubr.bf16.gmra.mrb[0].mxu0 %v1978
          %v2124 = vpop.f32.mrb[0].mxu0
          %v2125 = vadd.f32 0.0, %v2124
          %v2126 = vpop.f32.mrb[0].mxu0
          %v2127 = vpop.f32.mrb[0].mxu0
          %v2128 = vadd.f32 0.0, %v2127
          %v2129 = vpop.f32.mrb[0].mxu0
          %2130 = vmatprep.mubr.bf16.mxu0 0
          %2131 = vmatmul.mubr.bf16.gmra.mrb[0].mxu0 %v1979
          %v2132 = vpop.f32.mrb[0].mxu0
          %v2133 = vadd.f32 0.0, %v2132
          %v2134 = vpop.f32.mrb[0].mxu0
          %v2135 = vpop.f32.mrb[0].mxu0
          %v2136 = vadd.f32 0.0, %v2135
          %v2137 = vpop.f32.mrb[0].mxu0
          %2138 = vmatprep.mubr.bf16.mxu0 0
          %2139 = vmatmul.mubr.bf16.gmra.mrb[0].mxu0 %v1980
          %v2140 = vpop.f32.mrb[0].mxu0
          %v2141 = vadd.f32 0.0, %v2140
          %v2142 = vpop.f32.mrb[0].mxu0
          %v2143 = vpop.f32.mrb[0].mxu0
          %v2144 = vadd.f32 0.0, %v2143
          %v2145 = vpop.f32.mrb[0].mxu0
          %2146 = vmatprep.mubr.bf16.mxu0 0
          %2147 = vmatmul.mubr.bf16.gmra.mrb[0].mxu0 %v1981
          %v2148 = vpop.f32.mrb[0].mxu0
          %v2149 = vadd.f32 0.0, %v2148
          %v2150 = vpop.f32.mrb[0].mxu0
          %v2151 = vpop.f32.mrb[0].mxu0
          %v2152 = vadd.f32 0.0, %v2151
          %v2153 = vpop.f32.mrb[0].mxu0
          %2154 = vdwg.mxu0
          %v2155 = vadd.f32 %v1934, %v2029
          %v2156 = vadd.f32 %v1935, %v2032
          %v2157 = vadd.f32 %v1936, %v2037
          %v2158 = vadd.f32 %v1937, %v2040
          %v2159 = vadd.f32 %v1938, %v2045
          %v2160 = vadd.f32 %v1939, %v2048
          %v2161 = vadd.f32 %v1940, %v2053
          %v2162 = vadd.f32 %v1941, %v2056
          %v2163 = vadd.f32 %v1942, %v2061
          %v2164 = vadd.f32 %v1943, %v2064
          %v2165 = vadd.f32 %v1944, %v2069
          %v2166 = vadd.f32 %v1945, %v2072
          %v2167 = vadd.f32 %v1946, %v2077
          %v2168 = vadd.f32 %v1947, %v2080
          %v2169 = vadd.f32 %v1948, %v2085
          %v2170 = vadd.f32 %v1949, %v2088
          %v2171 = vadd.f32 %v1950, %v2093
          %v2172 = vadd.f32 %v1951, %v2096
          %v2173 = vadd.f32 %v1952, %v2101
          %v2174 = vadd.f32 %v1953, %v2104
          %v2175 = vadd.f32 %v1954, %v2109
          %v2176 = vadd.f32 %v1955, %v2112
          %v2177 = vadd.f32 %v1956, %v2117
          %v2178 = vadd.f32 %v1957, %v2120
          %v2179 = vadd.f32 %v1958, %v2125
          %v2180 = vadd.f32 %v1959, %v2128
          %v2181 = vadd.f32 %v1960, %v2133
          %v2182 = vadd.f32 %v1961, %v2136
          %v2183 = vadd.f32 %v1962, %v2141
          %v2184 = vadd.f32 %v1963, %v2144
          %v2185 = vadd.f32 %v1964, %v2149
          %v2186 = vadd.f32 %v1965, %v2152
          %2187 = vst [vmem:[#allocation4] sm:$0xff] %v2155
          %2188 = vst [vmem:[#allocation4 + $0x8] sm:$0xff] %v2156
          %2189 = vst [vmem:[#allocation4 + $0x10] sm:$0xff] %v2157
          %2190 = vst [vmem:[#allocation4 + $0x18] sm:$0xff] %v2158
          %2191 = vst [vmem:[#allocation4 + $0x20] sm:$0xff] %v2159
          %2192 = vst [vmem:[#allocation4 + $0x28] sm:$0xff] %v2160
          %2193 = vst [vmem:[#allocation4 + $0x30] sm:$0xff] %v2161
          %2194 = vst [vmem:[#allocation4 + $0x38] sm:$0xff] %v2162
          %2195 = vst [vmem:[#allocation4 + $0x40] sm:$0xff] %v2163
          %2196 = vst [vmem:[#allocation4 + $0x48] sm:$0xff] %v2164
          %2197 = vst [vmem:[#allocation4 + $0x50] sm:$0xff] %v2165
          %2198 = vst [vmem:[#allocation4 + $0x58] sm:$0xff] %v2166
          %2199 = vst [vmem:[#allocation4 + $0x60] sm:$0xff] %v2167
          %2200 = vst [vmem:[#allocation4 + $0x68] sm:$0xff] %v2168
          %2201 = vst [vmem:[#allocation4 + $0x70] sm:$0xff] %v2169
          %2202 = vst [vmem:[#allocation4 + $0x78] sm:$0xff] %v2170
          %2203 = vst [vmem:[#allocation4 + $0x80] sm:$0xff] %v2171
          %2204 = vst [vmem:[#allocation4 + $0x88] sm:$0xff] %v2172
          %2205 = vst [vmem:[#allocation4 + $0x90] sm:$0xff] %v2173
          %2206 = vst [vmem:[#allocation4 + $0x98] sm:$0xff] %v2174
          %2207 = vst [vmem:[#allocation4 + $0xa0] sm:$0xff] %v2175
          %2208 = vst [vmem:[#allocation4 + $0xa8] sm:$0xff] %v2176
          %2209 = vst [vmem:[#allocation4 + $0xb0] sm:$0xff] %v2177
          %2210 = vst [vmem:[#allocation4 + $0xb8] sm:$0xff] %v2178
          %2211 = vst [vmem:[#allocation4 + $0xc0] sm:$0xff] %v2179
          %2212 = vst [vmem:[#allocation4 + $0xc8] sm:$0xff] %v2180
          %2213 = vst [vmem:[#allocation4 + $0xd0] sm:$0xff] %v2181
          %2214 = vst [vmem:[#allocation4 + $0xd8] sm:$0xff] %v2182
          %2215 = vst [vmem:[#allocation4 + $0xe0] sm:$0xff] %v2183
          %2216 = vst [vmem:[#allocation4 + $0xe8] sm:$0xff] %v2184
          %2217 = vst [vmem:[#allocation4 + $0xf0] sm:$0xff] %v2185
          %2218 = vst [vmem:[#allocation4 + $0xf8] sm:$0xff] %v2186
          %p2219 = scmp.eq.s32.totalorder %s26, 3
          // Predicated region
          $region103: #{tpu_custom_call.1} parent=97 // pred_check
            %p2220 = pneg %p2219
          $region104: #{tpu_custom_call.1} parent=97 // pred_check_branch
            %2222 = sbr.rel (%p2220) target = $region106
          $region105: #{tpu_custom_call.1} parent=97 // pred_region
            %v2223 = vld [vmem:[#allocation3] sm:$0xff]
            %v2224 = vld [vmem:[#allocation3 + $0x8] sm:$0xff]
            %v2225 = vld [vmem:[#allocation3 + $0x10] sm:$0xff]
            %v2226 = vld [vmem:[#allocation3 + $0x18] sm:$0xff]
            %v2227 = vld [vmem:[#allocation3 + $0x20] sm:$0xff]
            %v2228 = vld [vmem:[#allocation3 + $0x28] sm:$0xff]
            %v2229 = vld [vmem:[#allocation3 + $0x30] sm:$0xff]
            %v2230 = vld [vmem:[#allocation3 + $0x38] sm:$0xff]
            %v2231 = vld [vmem:[#allocation3 + $0x40] sm:$0xff]
            %v2232 = vld [vmem:[#allocation3 + $0x48] sm:$0xff]
            %v2233 = vld [vmem:[#allocation3 + $0x50] sm:$0xff]
            %v2234 = vld [vmem:[#allocation3 + $0x58] sm:$0xff]
            %v2235 = vld [vmem:[#allocation3 + $0x60] sm:$0xff]
            %v2236 = vld [vmem:[#allocation3 + $0x68] sm:$0xff]
            %v2237 = vld [vmem:[#allocation3 + $0x70] sm:$0xff]
            %v2238 = vld [vmem:[#allocation3 + $0x78] sm:$0xff]
            %v2239 = vld [vmem:[#allocation3 + $0x80] sm:$0xff]
            %v2240 = vld [vmem:[#allocation3 + $0x88] sm:$0xff]
            %v2241 = vld [vmem:[#allocation3 + $0x90] sm:$0xff]
            %v2242 = vld [vmem:[#allocation3 + $0x98] sm:$0xff]
            %v2243 = vld [vmem:[#allocation3 + $0xa0] sm:$0xff]
            %v2244 = vld [vmem:[#allocation3 + $0xa8] sm:$0xff]
            %v2245 = vld [vmem:[#allocation3 + $0xb0] sm:$0xff]
            %v2246 = vld [vmem:[#allocation3 + $0xb8] sm:$0xff]
            %v2247 = vld [vmem:[#allocation3 + $0xc0] sm:$0xff]
            %v2248 = vld [vmem:[#allocation3 + $0xc8] sm:$0xff]
            %v2249 = vld [vmem:[#allocation3 + $0xd0] sm:$0xff]
            %v2250 = vld [vmem:[#allocation3 + $0xd8] sm:$0xff]
            %v2251 = vld [vmem:[#allocation3 + $0xe0] sm:$0xff]
            %v2252 = vld [vmem:[#allocation3 + $0xe8] sm:$0xff]
            %v2253 = vld [vmem:[#allocation3 + $0xf0] sm:$0xff]
            %v2254 = vld [vmem:[#allocation3 + $0xf8] sm:$0xff]
            %v2255 = vmax.f32 %v2223, 1e-08
            %v2256 = vmax.f32 %v2224, 1e-08
            %v2257 = vmax.f32 %v2225, 1e-08
            %v2258 = vmax.f32 %v2226, 1e-08
            %v2259 = vmax.f32 %v2227, 1e-08
            %v2260 = vmax.f32 %v2228, 1e-08
            %v2261 = vmax.f32 %v2229, 1e-08
            %v2262 = vmax.f32 %v2230, 1e-08
            %v2263 = vmax.f32 %v2231, 1e-08
            %v2264 = vmax.f32 %v2232, 1e-08
            %v2265 = vmax.f32 %v2233, 1e-08
            %v2266 = vmax.f32 %v2234, 1e-08
            %v2267 = vmax.f32 %v2235, 1e-08
            %v2268 = vmax.f32 %v2236, 1e-08
            %v2269 = vmax.f32 %v2237, 1e-08
            %v2270 = vmax.f32 %v2238, 1e-08
            %v2271 = vmax.f32 %v2239, 1e-08
            %v2272 = vmax.f32 %v2240, 1e-08
            %v2273 = vmax.f32 %v2241, 1e-08
            %v2274 = vmax.f32 %v2242, 1e-08
            %v2275 = vmax.f32 %v2243, 1e-08
            %v2276 = vmax.f32 %v2244, 1e-08
            %v2277 = vmax.f32 %v2245, 1e-08
            %v2278 = vmax.f32 %v2246, 1e-08
            %v2279 = vmax.f32 %v2247, 1e-08
            %v2280 = vmax.f32 %v2248, 1e-08
            %v2281 = vmax.f32 %v2249, 1e-08
            %v2282 = vmax.f32 %v2250, 1e-08
            %v2283 = vmax.f32 %v2251, 1e-08
            %v2284 = vmax.f32 %v2252, 1e-08
            %v2285 = vmax.f32 %v2253, 1e-08
            %v2286 = vmax.f32 %v2254, 1e-08
            %v2287 = vmul.f32 %v2255, 0.007874016
            %v2288 = vmul.f32 %v2256, 0.007874016
            %v2289 = vmul.f32 %v2257, 0.007874016
            %v2290 = vmul.f32 %v2258, 0.007874016
            %v2291 = vmul.f32 %v2259, 0.007874016
            %v2292 = vmul.f32 %v2260, 0.007874016
            %v2293 = vmul.f32 %v2261, 0.007874016
            %v2294 = vmul.f32 %v2262, 0.007874016
            %v2295 = vmul.f32 %v2263, 0.007874016
            %v2296 = vmul.f32 %v2264, 0.007874016
            %v2297 = vmul.f32 %v2265, 0.007874016
            %v2298 = vmul.f32 %v2266, 0.007874016
            %v2299 = vmul.f32 %v2267, 0.007874016
            %v2300 = vmul.f32 %v2268, 0.007874016
            %v2301 = vmul.f32 %v2269, 0.007874016
            %v2302 = vmul.f32 %v2270, 0.007874016
            %v2303 = vmul.f32 %v2271, 0.007874016
            %v2304 = vmul.f32 %v2272, 0.007874016
            %v2305 = vmul.f32 %v2273, 0.007874016
            %v2306 = vmul.f32 %v2274, 0.007874016
            %v2307 = vmul.f32 %v2275, 0.007874016
            %v2308 = vmul.f32 %v2276, 0.007874016
            %v2309 = vmul.f32 %v2277, 0.007874016
            %v2310 = vmul.f32 %v2278, 0.007874016
            %v2311 = vmul.f32 %v2279, 0.007874016
            %v2312 = vmul.f32 %v2280, 0.007874016
            %v2313 = vmul.f32 %v2281, 0.007874016
            %v2314 = vmul.f32 %v2282, 0.007874016
            %v2315 = vmul.f32 %v2283, 0.007874016
            %v2316 = vmul.f32 %v2284, 0.007874016
            %v2317 = vmul.f32 %v2285, 0.007874016
            %v2318 = vmul.f32 %v2286, 0.007874016
            %v2319 = vld [vmem:[#allocation4] sm:$0xff]
            %v2320 = vld [vmem:[#allocation4 + $0x8] sm:$0xff]
            %v2321 = vld [vmem:[#allocation4 + $0x10] sm:$0xff]
            %v2322 = vld [vmem:[#allocation4 + $0x18] sm:$0xff]
            %v2323 = vld [vmem:[#allocation4 + $0x20] sm:$0xff]
            %v2324 = vld [vmem:[#allocation4 + $0x28] sm:$0xff]
            %v2325 = vld [vmem:[#allocation4 + $0x30] sm:$0xff]
            %v2326 = vld [vmem:[#allocation4 + $0x38] sm:$0xff]
            %v2327 = vld [vmem:[#allocation4 + $0x40] sm:$0xff]
            %v2328 = vld [vmem:[#allocation4 + $0x48] sm:$0xff]
            %v2329 = vld [vmem:[#allocation4 + $0x50] sm:$0xff]
            %v2330 = vld [vmem:[#allocation4 + $0x58] sm:$0xff]
            %v2331 = vld [vmem:[#allocation4 + $0x60] sm:$0xff]
            %v2332 = vld [vmem:[#allocation4 + $0x68] sm:$0xff]
            %v2333 = vld [vmem:[#allocation4 + $0x70] sm:$0xff]
            %v2334 = vld [vmem:[#allocation4 + $0x78] sm:$0xff]
            %v2335 = vld [vmem:[#allocation4 + $0x80] sm:$0xff]
            %v2336 = vld [vmem:[#allocation4 + $0x88] sm:$0xff]
            %v2337 = vld [vmem:[#allocation4 + $0x90] sm:$0xff]
            %v2338 = vld [vmem:[#allocation4 + $0x98] sm:$0xff]
            %v2339 = vld [vmem:[#allocation4 + $0xa0] sm:$0xff]
            %v2340 = vld [vmem:[#allocation4 + $0xa8] sm:$0xff]
            %v2341 = vld [vmem:[#allocation4 + $0xb0] sm:$0xff]
            %v2342 = vld [vmem:[#allocation4 + $0xb8] sm:$0xff]
            %v2343 = vld [vmem:[#allocation4 + $0xc0] sm:$0xff]
            %v2344 = vld [vmem:[#allocation4 + $0xc8] sm:$0xff]
            %v2345 = vld [vmem:[#allocation4 + $0xd0] sm:$0xff]
            %v2346 = vld [vmem:[#allocation4 + $0xd8] sm:$0xff]
            %v2347 = vld [vmem:[#allocation4 + $0xe0] sm:$0xff]
            %v2348 = vld [vmem:[#allocation4 + $0xe8] sm:$0xff]
            %v2349 = vld [vmem:[#allocation4 + $0xf0] sm:$0xff]
            %v2350 = vld [vmem:[#allocation4 + $0xf8] sm:$0xff]
            %2352 = vset.pattern.permute.xlu0 0
            %2353 = vperm.xlu0 %2352, %v2287
            %v2354 = vpop.permute.xlu0 %2353
            %2357 = vset.pattern.permute.xlu0 0
            %2358 = vperm.xlu0 %2357, %v2288
            %v2359 = vpop.permute.xlu0 %2358
            %2362 = vset.pattern.permute.xlu0 0
            %2363 = vperm.xlu0 %2362, %v2289
            %v2364 = vpop.permute.xlu0 %2363
            %2367 = vset.pattern.permute.xlu0 0
            %2368 = vperm.xlu0 %2367, %v2290
            %v2369 = vpop.permute.xlu0 %2368
            %2372 = vset.pattern.permute.xlu0 0
            %2373 = vperm.xlu0 %2372, %v2291
            %v2374 = vpop.permute.xlu0 %2373
            %2377 = vset.pattern.permute.xlu0 0
            %2378 = vperm.xlu0 %2377, %v2292
            %v2379 = vpop.permute.xlu0 %2378
            %2382 = vset.pattern.permute.xlu0 0
            %2383 = vperm.xlu0 %2382, %v2293
            %v2384 = vpop.permute.xlu0 %2383
            %2387 = vset.pattern.permute.xlu0 0
            %2388 = vperm.xlu0 %2387, %v2294
            %v2389 = vpop.permute.xlu0 %2388
            %2392 = vset.pattern.permute.xlu0 0
            %2393 = vperm.xlu0 %2392, %v2295
            %v2394 = vpop.permute.xlu0 %2393
            %2397 = vset.pattern.permute.xlu0 0
            %2398 = vperm.xlu0 %2397, %v2296
            %v2399 = vpop.permute.xlu0 %2398
            %2402 = vset.pattern.permute.xlu0 0
            %2403 = vperm.xlu0 %2402, %v2297
            %v2404 = vpop.permute.xlu0 %2403
            %2407 = vset.pattern.permute.xlu0 0
            %2408 = vperm.xlu0 %2407, %v2298
            %v2409 = vpop.permute.xlu0 %2408
            %2412 = vset.pattern.permute.xlu0 0
            %2413 = vperm.xlu0 %2412, %v2299
            %v2414 = vpop.permute.xlu0 %2413
            %2417 = vset.pattern.permute.xlu0 0
            %2418 = vperm.xlu0 %2417, %v2300
            %v2419 = vpop.permute.xlu0 %2418
            %2422 = vset.pattern.permute.xlu0 0
            %2423 = vperm.xlu0 %2422, %v2301
            %v2424 = vpop.permute.xlu0 %2423
            %2427 = vset.pattern.permute.xlu0 0
            %2428 = vperm.xlu0 %2427, %v2302
            %v2429 = vpop.permute.xlu0 %2428
            %2432 = vset.pattern.permute.xlu0 0
            %2433 = vperm.xlu0 %2432, %v2303
            %v2434 = vpop.permute.xlu0 %2433
            %2437 = vset.pattern.permute.xlu0 0
            %2438 = vperm.xlu0 %2437, %v2304
            %v2439 = vpop.permute.xlu0 %2438
            %2442 = vset.pattern.permute.xlu0 0
            %2443 = vperm.xlu0 %2442, %v2305
            %v2444 = vpop.permute.xlu0 %2443
            %2447 = vset.pattern.permute.xlu0 0
            %2448 = vperm.xlu0 %2447, %v2306
            %v2449 = vpop.permute.xlu0 %2448
            %2452 = vset.pattern.permute.xlu0 0
            %2453 = vperm.xlu0 %2452, %v2307
            %v2454 = vpop.permute.xlu0 %2453
            %2457 = vset.pattern.permute.xlu0 0
            %2458 = vperm.xlu0 %2457, %v2308
            %v2459 = vpop.permute.xlu0 %2458
            %2462 = vset.pattern.permute.xlu0 0
            %2463 = vperm.xlu0 %2462, %v2309
            %v2464 = vpop.permute.xlu0 %2463
            %2467 = vset.pattern.permute.xlu0 0
            %2468 = vperm.xlu0 %2467, %v2310
            %v2469 = vpop.permute.xlu0 %2468
            %2472 = vset.pattern.permute.xlu0 0
            %2473 = vperm.xlu0 %2472, %v2311
            %v2474 = vpop.permute.xlu0 %2473
            %2477 = vset.pattern.permute.xlu0 0
            %2478 = vperm.xlu0 %2477, %v2312
            %v2479 = vpop.permute.xlu0 %2478
            %2482 = vset.pattern.permute.xlu0 0
            %2483 = vperm.xlu0 %2482, %v2313
            %v2484 = vpop.permute.xlu0 %2483
            %2487 = vset.pattern.permute.xlu0 0
            %2488 = vperm.xlu0 %2487, %v2314
            %v2489 = vpop.permute.xlu0 %2488
            %2492 = vset.pattern.permute.xlu0 0
            %2493 = vperm.xlu0 %2492, %v2315
            %v2494 = vpop.permute.xlu0 %2493
            %2497 = vset.pattern.permute.xlu0 0
            %2498 = vperm.xlu0 %2497, %v2316
            %v2499 = vpop.permute.xlu0 %2498
            %2502 = vset.pattern.permute.xlu0 0
            %2503 = vperm.xlu0 %2502, %v2317
            %v2504 = vpop.permute.xlu0 %2503
            %2507 = vset.pattern.permute.xlu0 0
            %2508 = vperm.xlu0 %2507, %v2318
            %v2509 = vpop.permute.xlu0 %2508
            %v2511 = vmul.f32 %v2319, %v2354
            %v2512 = vmul.f32 %v2320, %v2359
            %v2513 = vmul.f32 %v2321, %v2364
            %v2514 = vmul.f32 %v2322, %v2369
            %v2515 = vmul.f32 %v2323, %v2374
            %v2516 = vmul.f32 %v2324, %v2379
            %v2517 = vmul.f32 %v2325, %v2384
            %v2518 = vmul.f32 %v2326, %v2389
            %v2519 = vmul.f32 %v2327, %v2394
            %v2520 = vmul.f32 %v2328, %v2399
            %v2521 = vmul.f32 %v2329, %v2404
            %v2522 = vmul.f32 %v2330, %v2409
            %v2523 = vmul.f32 %v2331, %v2414
            %v2524 = vmul.f32 %v2332, %v2419
            %v2525 = vmul.f32 %v2333, %v2424
            %v2526 = vmul.f32 %v2334, %v2429
            %v2527 = vmul.f32 %v2335, %v2434
            %v2528 = vmul.f32 %v2336, %v2439
            %v2529 = vmul.f32 %v2337, %v2444
            %v2530 = vmul.f32 %v2338, %v2449
            %v2531 = vmul.f32 %v2339, %v2454
            %v2532 = vmul.f32 %v2340, %v2459
            %v2533 = vmul.f32 %v2341, %v2464
            %v2534 = vmul.f32 %v2342, %v2469
            %v2535 = vmul.f32 %v2343, %v2474
            %v2536 = vmul.f32 %v2344, %v2479
            %v2537 = vmul.f32 %v2345, %v2484
            %v2538 = vmul.f32 %v2346, %v2489
            %v2539 = vmul.f32 %v2347, %v2494
            %v2540 = vmul.f32 %v2348, %v2499
            %v2541 = vmul.f32 %v2349, %v2504
            %v2542 = vmul.f32 %v2350, %v2509
            %v2543 = vld [vmem:[%s5] sm:$0x1]
            %v2545 = vlaneseq
            %v2546 = vshrl.u32 %v2545, 7
            %v2547 = vsub.s32 0, %v2546
            %v2548 = vrot.slane %v2543, %v2547
            %v2550 = vmul.f32 %v2511, %v2548
            %v2551 = vmul.f32 %v2512, %v2548
            %v2552 = vmul.f32 %v2513, %v2548
            %v2553 = vmul.f32 %v2514, %v2548
            %v2554 = vmul.f32 %v2515, %v2548
            %v2555 = vmul.f32 %v2516, %v2548
            %v2556 = vmul.f32 %v2517, %v2548
            %v2557 = vmul.f32 %v2518, %v2548
            %v2558 = vmul.f32 %v2519, %v2548
            %v2559 = vmul.f32 %v2520, %v2548
            %v2560 = vmul.f32 %v2521, %v2548
            %v2561 = vmul.f32 %v2522, %v2548
            %v2562 = vmul.f32 %v2523, %v2548
            %v2563 = vmul.f32 %v2524, %v2548
            %v2564 = vmul.f32 %v2525, %v2548
            %v2565 = vmul.f32 %v2526, %v2548
            %v2566 = vmul.f32 %v2527, %v2548
            %v2567 = vmul.f32 %v2528, %v2548
            %v2568 = vmul.f32 %v2529, %v2548
            %v2569 = vmul.f32 %v2530, %v2548
            %v2570 = vmul.f32 %v2531, %v2548
            %v2571 = vmul.f32 %v2532, %v2548
            %v2572 = vmul.f32 %v2533, %v2548
            %v2573 = vmul.f32 %v2534, %v2548
            %v2574 = vmul.f32 %v2535, %v2548
            %v2575 = vmul.f32 %v2536, %v2548
            %v2576 = vmul.f32 %v2537, %v2548
            %v2577 = vmul.f32 %v2538, %v2548
            %v2578 = vmul.f32 %v2539, %v2548
            %v2579 = vmul.f32 %v2540, %v2548
            %v2580 = vmul.f32 %v2541, %v2548
            %v2581 = vmul.f32 %v2542, %v2548
            %v2582 = vpack.c.bf16 %v2551, %v2550
            %v2583 = vpack.c.bf16 %v2553, %v2552
            %v2584 = vpack.c.bf16 %v2555, %v2554
            %v2585 = vpack.c.bf16 %v2557, %v2556
            %v2586 = vpack.c.bf16 %v2559, %v2558
            %v2587 = vpack.c.bf16 %v2561, %v2560
            %v2588 = vpack.c.bf16 %v2563, %v2562
            %v2589 = vpack.c.bf16 %v2565, %v2564
            %v2590 = vpack.c.bf16 %v2567, %v2566
            %v2591 = vpack.c.bf16 %v2569, %v2568
            %v2592 = vpack.c.bf16 %v2571, %v2570
            %v2593 = vpack.c.bf16 %v2573, %v2572
            %v2594 = vpack.c.bf16 %v2575, %v2574
            %v2595 = vpack.c.bf16 %v2577, %v2576
            %v2596 = vpack.c.bf16 %v2579, %v2578
            %v2597 = vpack.c.bf16 %v2581, %v2580
            %v2614 = vunpack.c.l.b16 %v2582
            %v2615 = vunpack.c.h.b16 %v2582
            %v2616 = vunpack.c.l.b16 %v2583
            %v2617 = vunpack.c.h.b16 %v2583
            %v2618 = vunpack.c.l.b16 %v2584
            %v2619 = vunpack.c.h.b16 %v2584
            %v2620 = vunpack.c.l.b16 %v2585
            %v2621 = vunpack.c.h.b16 %v2585
            %v2622 = vunpack.c.l.b16 %v2586
            %v2623 = vunpack.c.h.b16 %v2586
            %v2624 = vunpack.c.l.b16 %v2587
            %v2625 = vunpack.c.h.b16 %v2587
            %v2626 = vunpack.c.l.b16 %v2588
            %v2627 = vunpack.c.h.b16 %v2588
            %v2628 = vunpack.c.l.b16 %v2589
            %v2629 = vunpack.c.h.b16 %v2589
            %v2630 = vunpack.c.l.b16 %v2590
            %v2631 = vunpack.c.h.b16 %v2590
            %v2632 = vunpack.c.l.b16 %v2591
            %v2633 = vunpack.c.h.b16 %v2591
            %v2634 = vunpack.c.l.b16 %v2592
            %v2635 = vunpack.c.h.b16 %v2592
            %v2636 = vunpack.c.l.b16 %v2593
            %v2637 = vunpack.c.h.b16 %v2593
            %v2638 = vunpack.c.l.b16 %v2594
            %v2639 = vunpack.c.h.b16 %v2594
            %v2640 = vunpack.c.l.b16 %v2595
            %v2641 = vunpack.c.h.b16 %v2595
            %v2642 = vunpack.c.l.b16 %v2596
            %v2643 = vunpack.c.h.b16 %v2596
            %v2644 = vunpack.c.l.b16 %v2597
            %v2645 = vunpack.c.h.b16 %v2597
            %v2646 = vpack.c.b16 %v2614, %v2614
            %v2647 = vpack.c.b16 %v2615, %v2615
            %v2648 = vpack.c.b16 %v2616, %v2616
            %v2649 = vpack.c.b16 %v2617, %v2617
            %v2650 = vpack.c.b16 %v2618, %v2618
            %v2651 = vpack.c.b16 %v2619, %v2619
            %v2652 = vpack.c.b16 %v2620, %v2620
            %v2653 = vpack.c.b16 %v2621, %v2621
            %v2654 = vpack.c.b16 %v2622, %v2622
            %v2655 = vpack.c.b16 %v2623, %v2623
            %v2656 = vpack.c.b16 %v2624, %v2624
            %v2657 = vpack.c.b16 %v2625, %v2625
            %v2658 = vpack.c.b16 %v2626, %v2626
            %v2659 = vpack.c.b16 %v2627, %v2627
            %v2660 = vpack.c.b16 %v2628, %v2628
            %v2661 = vpack.c.b16 %v2629, %v2629
            %v2662 = vpack.c.b16 %v2630, %v2630
            %v2663 = vpack.c.b16 %v2631, %v2631
            %v2664 = vpack.c.b16 %v2632, %v2632
            %v2665 = vpack.c.b16 %v2633, %v2633
            %v2666 = vpack.c.b16 %v2634, %v2634
            %v2667 = vpack.c.b16 %v2635, %v2635
            %v2668 = vpack.c.b16 %v2636, %v2636
            %v2669 = vpack.c.b16 %v2637, %v2637
            %v2670 = vpack.c.b16 %v2638, %v2638
            %v2671 = vpack.c.b16 %v2639, %v2639
            %v2672 = vpack.c.b16 %v2640, %v2640
            %v2673 = vpack.c.b16 %v2641, %v2641
            %v2674 = vpack.c.b16 %v2642, %v2642
            %v2675 = vpack.c.b16 %v2643, %v2643
            %v2676 = vpack.c.b16 %v2644, %v2644
            %v2677 = vpack.c.b16 %v2645, %v2645
            %2710 = vst [vmem:[#allocation9] sm:$0xf] %v2646
            %2711 = vst [vmem:[#allocation9 + $0x4] sm:$0xf] %v2647
            %2712 = vst [vmem:[#allocation9 + $0x8] sm:$0xf] %v2648
            %2713 = vst [vmem:[#allocation9 + $0xc] sm:$0xf] %v2649
            %2714 = vst [vmem:[#allocation9 + $0x10] sm:$0xf] %v2650
            %2715 = vst [vmem:[#allocation9 + $0x14] sm:$0xf] %v2651
            %2716 = vst [vmem:[#allocation9 + $0x18] sm:$0xf] %v2652
            %2717 = vst [vmem:[#allocation9 + $0x1c] sm:$0xf] %v2653
            %2718 = vst [vmem:[#allocation9 + $0x20] sm:$0xf] %v2654
            %2719 = vst [vmem:[#allocation9 + $0x24] sm:$0xf] %v2655
            %2720 = vst [vmem:[#allocation9 + $0x28] sm:$0xf] %v2656
            %2721 = vst [vmem:[#allocation9 + $0x2c] sm:$0xf] %v2657
            %2722 = vst [vmem:[#allocation9 + $0x30] sm:$0xf] %v2658
            %2723 = vst [vmem:[#allocation9 + $0x34] sm:$0xf] %v2659
            %2724 = vst [vmem:[#allocation9 + $0x38] sm:$0xf] %v2660
            %2725 = vst [vmem:[#allocation9 + $0x3c] sm:$0xf] %v2661
            %2726 = vst [vmem:[#allocation9 + $0x40] sm:$0xf] %v2662
            %2727 = vst [vmem:[#allocation9 + $0x44] sm:$0xf] %v2663
            %2728 = vst [vmem:[#allocation9 + $0x48] sm:$0xf] %v2664
            %2729 = vst [vmem:[#allocation9 + $0x4c] sm:$0xf] %v2665
            %2730 = vst [vmem:[#allocation9 + $0x50] sm:$0xf] %v2666
            %2731 = vst [vmem:[#allocation9 + $0x54] sm:$0xf] %v2667
            %2732 = vst [vmem:[#allocation9 + $0x58] sm:$0xf] %v2668
            %2733 = vst [vmem:[#allocation9 + $0x5c] sm:$0xf] %v2669
            %2734 = vst [vmem:[#allocation9 + $0x60] sm:$0xf] %v2670
            %2735 = vst [vmem:[#allocation9 + $0x64] sm:$0xf] %v2671
            %2736 = vst [vmem:[#allocation9 + $0x68] sm:$0xf] %v2672
            %2737 = vst [vmem:[#allocation9 + $0x6c] sm:$0xf] %v2673
            %2738 = vst [vmem:[#allocation9 + $0x70] sm:$0xf] %v2674
            %2739 = vst [vmem:[#allocation9 + $0x74] sm:$0xf] %v2675
            %2740 = vst [vmem:[#allocation9 + $0x78] sm:$0xf] %v2676
            %2741 = vst [vmem:[#allocation9 + $0x7c] sm:$0xf] %v2677
          $region106: #{tpu_custom_call.1} parent=97 // pred_fallthru
            _
        $region98: #{tpu_custom_call.1} parent=77 // pred_fallthru
          _
        // Predicated region
        $region107: #{tpu_custom_call.1} parent=77 // pred_check
          %p2742 = pneg %p219
        $region108: #{tpu_custom_call.1} parent=77 // pred_check_branch
          %2744 = sbr.rel (%p2742) target = $region110
        $region109: #{tpu_custom_call.1} parent=77 // pred_region
          %s2745 = smul.u32 32, %s24
          %s2747 = ssub.s32 2048, 2048
          %2748 = vsyncadd [#allocation7], %s2747
          %s2749 = smul.addr %s2745, 64
          %s2750 = scalar_lea.hbm %s6, %s2749
          %s2751 = sshll.u32 [#allocation9], 4
          %s2752 = int_to_ptr.vmem [resolvable:$true] %s2751
          %2757 = dma.vmem_to_hbm [thread:$0]  %s2752, 2048, %s2750, [#allocation7], 64, 64, 4
        $region110: #{tpu_custom_call.1} parent=77 // pred_fallthru
          _
        // Predicated region
        $region111: #{tpu_custom_call.1} parent=77 // pred_check
          %p2758 = pneg %p219
        $region112: #{tpu_custom_call.1} parent=77 // pred_check_branch
          %2760 = sbr.rel (%p2758) target = $region114
        $region113: #{tpu_custom_call.1} parent=77 // pred_region
          %2761 = dma.done [#allocation7], 2048
        $region114: #{tpu_custom_call.1} parent=77 // pred_fallthru
          _
      $region78: #{tpu_custom_call.1} parent=5 // pred_fallthru
        _
      %p2762 = scmp.le.s32.totalorder 2, %s14
      // Predicated region
      $region115: #{tpu_custom_call.1} parent=5 // pred_check
        %p2763 = pneg %p2762
      $region116: #{tpu_custom_call.1} parent=5 // pred_check_branch
        %2765 = sbr.rel (%p2763) target = $region118
      $region117: #{tpu_custom_call.1} parent=5 // pred_region
        %s2766 = ssub.s32 %s14, 2
      $region118: #{tpu_custom_call.1} parent=5 // pred_fallthru
        _
    $region6: #{tpu_custom_call.1} parent=1 // loop_footer
      %s18 = sadd.s32 1, %s14
    $region7: #{tpu_custom_call.1} parent=1 // loop_footer_branch
      %13 = sbr.rel target = $region3
    $region8: #{tpu_custom_call.1} parent=1 // loop_exit
      _
    %2767 = vsyncpa [#allocation6], 1
    %s2768 = scalar_lea.sflag [#allocation6], 1
    %2769 = vsyncpa %s2768, 1
    %2770 = vsyncpa [#allocation7], 1
    %s2771 = scalar_lea.sflag [#allocation7], 1
    %2772 = vsyncpa %s2771, 1

// kernel: tpu_custom_call.1
$region0: #{tpu_custom_call.1}
  #allocation0 [shape = 'u32[]', space=smem, size = 0x4, offset = 0x4, fixed_abs, tag = 'smem constant byte address 0x4 - core index']
  #allocation1 [shape = 'u32[144,128]{1,0:T(1,128)}', space=vmem, size = 0x12000, scoped, tag = 'internal scratch']
  #allocation2 [shape = 'f32[4,256,128]{2,1,0:T(8,128)}', space=vmem, size = 0x80000, scoped, tag = 'scratch operand']
  #allocation3 [shape = 'f32[256,1]{1,0:T(8,128)}', space=vmem, size = 0x20000, scoped, tag = 'scratch operand']
  #allocation4 [shape = 'f32[256,128]{1,0:T(8,128)}', space=vmem, size = 0x20000, scoped, tag = 'scratch operand']
  %s0 = inlined_call_operand.hbm [shape: s8[256,128], index: 0, kind: input, shape index: {}]
  %s1 = inlined_call_operand.vmem [shape: f32[256,1], index: 1, kind: input, shape index: {}]
  %s2 = inlined_call_operand.vmem [shape: s8[128,512], index: 2, kind: input, shape index: {}]
  %s3 = inlined_call_operand.vmem [shape: f32[1,512], index: 3, kind: input, shape index: {}]
  %s4 = inlined_call_operand.vmem [shape: s8[512,128], index: 4, kind: input, shape index: {}]
  %s5 = inlined_call_operand.vmem [shape: f32[1,128], index: 5, kind: input, shape index: {}]
  %s6 = inlined_call_operand.hbm [shape: bf16[256,128], index: 6, kind: output, shape index: {}]
  %s7 = sld [smem:[#allocation0]]
  $region119: #{tpu_custom_call.1} parent=0
    _
  %s9 = ssub.s32 1, %s7
  %s10 = scalar_select 0, %s9, %s7
  $region1: #{tpu_custom_call.1} parent=0
    #allocation5 [shape = 'u8[32768]{0}', space=vmem, size = 0x8000, scoped, tag = 'input window, operand 0, single buffered']
    #allocation6 [shape = 's32[2]{0}', space=sflag, size = 0x8, scoped, tag = 'scoped memory for tpu_custom_call.1']
    #allocation7 [shape = 's32[2]{0}', space=sflag, size = 0x8, scoped, tag = 'scoped memory for tpu_custom_call.1']
    #allocation8 [shape = 'u8[32768]{0}', space=vmem, size = 0x8000, scoped, tag = 'input window, operand 2']
    #allocation9 [shape = 'u8[65536]{0}', space=vmem, size = 0x10000, scoped, tag = 'output window, operand 0, single buffered']
    %11 = vsyncpa [#allocation6], 0
    %12 = vsyncpa [#allocation7], 0
    loop: start=0, step=1, limit=10
    $region2: #{tpu_custom_call.1} parent=1 // loop_pre_header
      _
    $region3: #{tpu_custom_call.1} parent=1 // loop_header
      %s14 = sphi 0, %s18
      %p15 = scmp.ge.s32.totalorder %s14, 10
      %s21 = sphi 0, %s40
      %s22 = sphi 0, %s36
      %s23 = sphi 0, %s32
      %s24 = sphi 0, %s21
      %s25 = sphi 0, %s22
      %s26 = sphi 0, %s23
      %s27 = sphi 0, %s24
      %s28 = sphi 0, %s25
      %s29 = sphi 0, %s26
      %s43 = sphi 0, %s45
      %s46 = sphi 0, %s43
      %s47 = sphi 0, %s46
      %s63 = sphi 0, %s47
      %s69 = sphi 0, %s71
      %s72 = sphi 0, %s69
      %s73 = sphi 0, %s72
      %s89 = sphi 0, %s73
      %s99 = sphi 0, %s101
      %s102 = sphi 0, %s99
      %s103 = sphi 0, %s102
      %s119 = sphi 0, %s103
      %s129 = sphi 0, %s131
      %s132 = sphi 0, %s129
      %s133 = sphi 0, %s132
      %s149 = sphi 0, %s133
      %s159 = sphi 0, %s161
      %s162 = sphi 0, %s159
      %s163 = sphi 0, %s162
      %s179 = sphi 0, %s163
      %s183 = sphi 0, %s183
      %s185 = sphi 0, %s183
      %s186 = sphi 0, %s185
      %s200 = sphi 0, %s186
      %s206 = sphi 0, %s208
      %s209 = sphi 0, %s206
      %s210 = sphi 0, %s209
      %s226 = sphi 0, %s210
    $region4: #{tpu_custom_call.1} parent=1 // loop_header_branch
      %17 = sbr.rel (%p15) target = $region8
    $region5: #{tpu_custom_call.1} parent=1 // loop_body
      %s19 = ssub.s32 %s14, 1
      %s20 = ssub.s32 %s14, 2
      %s30 = sadd.s32 1, %s23
      %p31 = scmp.ge.s32.totalorder %s30, 4
      %s32 = scalar_select %p31, 0, %s30
      %s33 = sadd.s32 1, %s22
      %s34 = scalar_select %p31, %s33, %s22
      %p35 = scmp.ge.s32.totalorder %s34, 2
      %s36 = scalar_select %p35, 0, %s34
      %s37 = sadd.s32 1, %s21
      %s38 = scalar_select %p35, %s37, %s21
      %p39 = scmp.ge.s32.totalorder %s38, 1
      %s40 = scalar_select %p39, 0, %s38
      %s41 = ssub.s32 %s21, %s40
      %p42 = scmp.eq.s32.totalorder %s41, 0
      %s44 = sadd.s32 %s43, 1
      %s45 = scalar_select %p42, %s43, %s44
      %p48 = pneg %p42
      %p49 = scmp.eq.s32.totalorder %s14, 7
      %p50 = por %p48, %p49
      %p51 = scmp.ne.s32.totalorder %s43, %s46
      %p52 = scmp.eq.s32.totalorder %s14, 0
      %p53 = por %p51, %p52
      %p54 = scmp.ne.s32.totalorder %s43, %s46
      %p55 = scmp.eq.s32.totalorder %s19, 7
      %p56 = por %p54, %p55
      %p57 = scmp.ne.s32.totalorder %s46, %s47
      %p58 = scmp.eq.s32.totalorder %s19, 0
      %p59 = por %p57, %p58
      %p60 = scmp.ne.s32.totalorder %s46, %s47
      %p61 = scmp.eq.s32.totalorder %s20, 7
      %p62 = por %p60, %p61
      %p64 = scmp.ne.s32.totalorder %s47, %s63
      %p65 = scmp.eq.s32.totalorder %s20, 0
      %p66 = por %p64, %p65
      %s67 = ssub.s32 %s21, %s40
      %p68 = scmp.eq.s32.totalorder %s67, 0
      %s70 = sadd.s32 %s69, 1
      %s71 = scalar_select %p68, %s69, %s70
      %p74 = pneg %p68
      %p75 = scmp.eq.s32.totalorder %s14, 7
      %p76 = por %p74, %p75
      %p77 = scmp.ne.s32.totalorder %s69, %s72
      %p78 = scmp.eq.s32.totalorder %s14, 0
      %p79 = por %p77, %p78
      %p80 = scmp.ne.s32.totalorder %s69, %s72
      %p81 = scmp.eq.s32.totalorder %s19, 7
      %p82 = por %p80, %p81
      %p83 = scmp.ne.s32.totalorder %s72, %s73
      %p84 = scmp.eq.s32.totalorder %s19, 0
      %p85 = por %p83, %p84
      %p86 = scmp.ne.s32.totalorder %s72, %s73
      %p87 = scmp.eq.s32.totalorder %s20, 7
      %p88 = por %p86, %p87
      %p90 = scmp.ne.s32.totalorder %s73, %s89
      %p91 = scmp.eq.s32.totalorder %s20, 0
      %p92 = por %p90, %p91
      %p93 = scmp.eq.s32.totalorder %s22, 0
      %s94 = scalar_select %p93, %s23, 3
      %p95 = scmp.eq.s32.totalorder %s36, 0
      %s96 = scalar_select %p95, %s32, 3
      %s97 = ssub.s32 %s94, %s96
      %p98 = scmp.eq.s32.totalorder %s97, 0
      %s100 = sadd.s32 %s99, 1
      %s101 = scalar_select %p98, %s99, %s100
      %p104 = pneg %p98
      %p105 = scmp.eq.s32.totalorder %s14, 7
      %p106 = por %p104, %p105
      %p107 = scmp.ne.s32.totalorder %s99, %s102
      %p108 = scmp.eq.s32.totalorder %s14, 0
      %p109 = por %p107, %p108
      %p110 = scmp.ne.s32.totalorder %s99, %s102
      %p111 = scmp.eq.s32.totalorder %s19, 7
      %p112 = por %p110, %p111
      %p113 = scmp.ne.s32.totalorder %s102, %s103
      %p114 = scmp.eq.s32.totalorder %s19, 0
      %p115 = por %p113, %p114
      %p116 = scmp.ne.s32.totalorder %s102, %s103
      %p117 = scmp.eq.s32.totalorder %s20, 7
      %p118 = por %p116, %p117
      %p120 = scmp.ne.s32.totalorder %s103, %s119
      %p121 = scmp.eq.s32.totalorder %s20, 0
      %p122 = por %p120, %p121
      %p123 = scmp.eq.s32.totalorder %s22, 0
      %s124 = scalar_select %p123, %s23, 3
      %p125 = scmp.eq.s32.totalorder %s36, 0
      %s126 = scalar_select %p125, %s32, 3
      %s127 = ssub.s32 %s124, %s126
      %p128 = scmp.eq.s32.totalorder %s127, 0
      %s130 = sadd.s32 %s129, 1
      %s131 = scalar_select %p128, %s129, %s130
      %p134 = pneg %p128
      %p135 = scmp.eq.s32.totalorder %s14, 7
      %p136 = por %p134, %p135
      %p137 = scmp.ne.s32.totalorder %s129, %s132
      %p138 = scmp.eq.s32.totalorder %s14, 0
      %p139 = por %p137, %p138
      %p140 = scmp.ne.s32.totalorder %s129, %s132
      %p141 = scmp.eq.s32.totalorder %s19, 7
      %p142 = por %p140, %p141
      %p143 = scmp.ne.s32.totalorder %s132, %s133
      %p144 = scmp.eq.s32.totalorder %s19, 0
      %p145 = por %p143, %p144
      %p146 = scmp.ne.s32.totalorder %s132, %s133
      %p147 = scmp.eq.s32.totalorder %s20, 7
      %p148 = por %p146, %p147
      %p150 = scmp.ne.s32.totalorder %s133, %s149
      %p151 = scmp.eq.s32.totalorder %s20, 0
      %p152 = por %p150, %p151
      %p153 = scmp.eq.s32.totalorder %s22, 0
      %s154 = scalar_select %p153, 0, %s23
      %p155 = scmp.eq.s32.totalorder %s36, 0
      %s156 = scalar_select %p155, 0, %s32
      %s157 = ssub.s32 %s154, %s156
      %p158 = scmp.eq.s32.totalorder %s157, 0
      %s160 = sadd.s32 %s159, 1
      %s161 = scalar_select %p158, %s159, %s160
      %p164 = pneg %p158
      %p165 = scmp.eq.s32.totalorder %s14, 7
      %p166 = por %p164, %p165
      %p167 = scmp.ne.s32.totalorder %s159, %s162
      %p168 = scmp.eq.s32.totalorder %s14, 0
      %p169 = por %p167, %p168
      %p170 = scmp.ne.s32.totalorder %s159, %s162
      %p171 = scmp.eq.s32.totalorder %s19, 7
      %p172 = por %p170, %p171
      %p173 = scmp.ne.s32.totalorder %s162, %s163
      %p174 = scmp.eq.s32.totalorder %s19, 0
      %p175 = por %p173, %p174
      %p176 = scmp.ne.s32.totalorder %s162, %s163
      %p177 = scmp.eq.s32.totalorder %s20, 7
      %p178 = por %p176, %p177
      %p180 = scmp.ne.s32.totalorder %s163, %s179
      %p181 = scmp.eq.s32.totalorder %s20, 0
      %p182 = por %p180, %p181
      %s184 = sadd.s32 %s183, 1
      %p187 = scmp.eq.s32.totalorder %s14, 7
      %p188 = scmp.ne.s32.totalorder %s183, %s185
      %p189 = scmp.eq.s32.totalorder %s14, 0
      %p190 = por %p188, %p189
      %p191 = scmp.ne.s32.totalorder %s183, %s185
      %p192 = scmp.eq.s32.totalorder %s19, 7
      %p193 = por %p191, %p192
      %p194 = scmp.ne.s32.totalorder %s185, %s186
      %p195 = scmp.eq.s32.totalorder %s19, 0
      %p196 = por %p194, %p195
      %p197 = scmp.ne.s32.totalorder %s185, %s186
      %p198 = scmp.eq.s32.totalorder %s20, 7
      %p199 = por %p197, %p198
      %p201 = scmp.ne.s32.totalorder %s186, %s200
      %p202 = scmp.eq.s32.totalorder %s20, 0
      %p203 = por %p201, %p202
      %s204 = ssub.s32 %s21, %s40
      %p205 = scmp.eq.s32.totalorder %s204, 0
      %s207 = sadd.s32 %s206, 1
      %s208 = scalar_select %p205, %s206, %s207
      %p211 = pneg %p205
      %p212 = scmp.eq.s32.totalorder %s14, 7
      %p213 = por %p211, %p212
      %p214 = scmp.ne.s32.totalorder %s206, %s209
      %p215 = scmp.eq.s32.totalorder %s14, 0
      %p216 = por %p214, %p215
      %p217 = scmp.ne.s32.totalorder %s206, %s209
      %p218 = scmp.eq.s32.totalorder %s19, 7
      %p219 = por %p217, %p218
      %p220 = scmp.ne.s32.totalorder %s209, %s210
      %p221 = scmp.eq.s32.totalorder %s19, 0
      %p222 = por %p220, %p221
      %p223 = scmp.ne.s32.totalorder %s209, %s210
      %p224 = scmp.eq.s32.totalorder %s20, 7
      %p225 = por %p223, %p224
      %p227 = scmp.ne.s32.totalorder %s210, %s226
      %p228 = scmp.eq.s32.totalorder %s20, 0
      %p229 = por %p227, %p228
      %p230 = scmp.le.s32.totalorder 1, %s14
      %p231 = scmp.lt.s32.totalorder %s14, 9
      %p232 = pnand %p230, %p231
      %p233 = pneg %p232
      // Predicated region
      $region9: #{tpu_custom_call.1} parent=5 // pred_check
        _
      $region10: #{tpu_custom_call.1} parent=5 // pred_check_branch
        %235 = sbr.rel (%p232) target = $region12
      $region11: #{tpu_custom_call.1} parent=5 // pred_region
        %s236 = ssub.s32 %s14, 1
        // Predicated region
        $region13: #{tpu_custom_call.1} parent=11 // pred_check
          %p237 = pneg %p59
        $region14: #{tpu_custom_call.1} parent=11 // pred_check_branch
          %239 = sbr.rel (%p237) target = $region16
        $region15: #{tpu_custom_call.1} parent=11 // pred_region
          %s240 = smul.u32 8, %s24
          %s242 = ssub.s32 1024, 1024
          %243 = vsyncadd [#allocation6], %s242
          %s244 = smul.addr %s240, 128
          %s245 = scalar_lea.hbm %s0, %s244
          %s246 = sshll.u32 [#allocation5], 4
          %s247 = int_to_ptr.vmem [resolvable:$true] %s246
          %252 = dma.hbm_to_vmem [thread:$0]  %s245, 1024, %s247, [#allocation6], 128, 128, 8
        $region16: #{tpu_custom_call.1} parent=11 // pred_fallthru
          _
        // Predicated region
        $region17: #{tpu_custom_call.1} parent=11 // pred_check
          %p253 = pneg %p85
        $region18: #{tpu_custom_call.1} parent=11 // pred_check_branch
          %255 = sbr.rel (%p253) target = $region20
        $region19: #{tpu_custom_call.1} parent=11 // pred_region
          %s256 = smul.u32 32, %s24
          %p257 = scmp.lt.s32.totalorder %s256, 31
          %s258 = scalar_select %p257, %s256, 31
          %s259 = smul.addr %s258, 8
          %s260 = scalar_lea.vmem %s1, %s259
          %s261 = smul.u32 32, %s24
        $region20: #{tpu_custom_call.1} parent=11 // pred_fallthru
          _
        // Predicated region
        $region21: #{tpu_custom_call.1} parent=11 // pred_check
          %p262 = pneg %p196
        $region22: #{tpu_custom_call.1} parent=11 // pred_check_branch
          %264 = sbr.rel (%p262) target = $region24
        $region23: #{tpu_custom_call.1} parent=11 // pred_region
          _
        $region24: #{tpu_custom_call.1} parent=11 // pred_fallthru
          _
      $region12: #{tpu_custom_call.1} parent=5 // pred_fallthru
        _
      %p265 = scmp.lt.s32.totalorder %s14, 8
      // Predicated region
      $region25: #{tpu_custom_call.1} parent=5 // pred_check
        %p266 = pneg %p265
      $region26: #{tpu_custom_call.1} parent=5 // pred_check_branch
        %268 = sbr.rel (%p266) target = $region28
      $region27: #{tpu_custom_call.1} parent=5 // pred_region
        // Predicated region
        $region29: #{tpu_custom_call.1} parent=27 // pred_check
          %p269 = pneg %p109
        $region30: #{tpu_custom_call.1} parent=27 // pred_check_branch
          %271 = sbr.rel (%p269) target = $region32
        $region31: #{tpu_custom_call.1} parent=27 // pred_region
          %s272 = sand.u32 %s99, 1
          %s273 = sand.u32 %s99, 1
          %s274 = smul.addr %s273, 32
          %s275 = scalar_lea.vmem [#allocation8], %s274
          %p276 = scmp.eq.s32.totalorder %s22, 0
          %s277 = scalar_select %p276, %s23, 3
          %s278 = smul.addr %s277, 8
          %s279 = scalar_lea.vmem %s2, %s278
          // Predicated region
          $region33: #{tpu_custom_call.1} parent=31 // pred_check
            _
          $region34: #{tpu_custom_call.1} parent=31 // pred_check_branch
            %281 = sbr.rel (0) target = $region36
          $region35: #{tpu_custom_call.1} parent=31 // pred_region
            // Predicated region
            $region37: #{tpu_custom_call.1} parent=35 // pred_check
              _
            $region38: #{tpu_custom_call.1} parent=35 // pred_check_branch
              %283 = sbr.rel (0) target = $region40
            $region39: #{tpu_custom_call.1} parent=35 // pred_region
              // Predicated region
              $region52: #{tpu_custom_call.1} parent=39 // pred_check
                _
              $region53: #{tpu_custom_call.1} parent=39 // pred_check_branch
                %304 = sbr.rel (0) target = $region55
              $region54: #{tpu_custom_call.1} parent=39 // pred_region
                loop: start=0, step=1, limit=1
                $region56: #{tpu_custom_call.1} parent=54 // loop_pre_header
                  _
                $region57: #{tpu_custom_call.1} parent=54 // loop_header
                  %s306 = sphi 0, %s310
                  %p307 = scmp.ge.s32.totalorder %s306, 1
                  %s311 = sphi %s279, %s279
                  %s312 = sphi %s275, %s275
                $region58: #{tpu_custom_call.1} parent=54 // loop_header_branch
                  %309 = sbr.rel (%p307) target = $region62
                $region59: #{tpu_custom_call.1} parent=54 // loop_body
                  %v313 = vld [vmem:[%s311] sm:$0xff]
                  %314 = vst [vmem:[%s312] sm:$0xff] %v313
                  %v315 = vld [vmem:[%s311 + $0x20] sm:$0xff]
                  %316 = vst [vmem:[%s312 + $0x8] sm:$0xff] %v315
                  %v317 = vld [vmem:[%s311 + $0x40] sm:$0xff]
                  %318 = vst [vmem:[%s312 + $0x10] sm:$0xff] %v317
                  %v319 = vld [vmem:[%s311 + $0x60] sm:$0xff]
                  %320 = vst [vmem:[%s312 + $0x18] sm:$0xff] %v319
                $region60: #{tpu_custom_call.1} parent=54 // loop_footer
                  %s310 = sadd.s32 1, %s306
                $region61: #{tpu_custom_call.1} parent=54 // loop_footer_branch
                  %305 = sbr.rel target = $region57
                $region62: #{tpu_custom_call.1} parent=54 // loop_exit
                  _
              $region55: #{tpu_custom_call.1} parent=39 // pred_fallthru
                _
              // Predicated region
              $region63: #{tpu_custom_call.1} parent=39 // pred_check
                _
              $region64: #{tpu_custom_call.1} parent=39 // pred_check_branch
                %322 = sbr.rel target = $region66
              $region65: #{tpu_custom_call.1} parent=39 // pred_region
                _
              $region66: #{tpu_custom_call.1} parent=39 // pred_fallthru
                _
            $region40: #{tpu_custom_call.1} parent=35 // pred_fallthru
              _
            // Predicated region
            $region41: #{tpu_custom_call.1} parent=35 // pred_check
              _
            $region42: #{tpu_custom_call.1} parent=35 // pred_check_branch
              %285 = sbr.rel target = $region44
            $region43: #{tpu_custom_call.1} parent=35 // pred_region
              loop: start=0, step=1, limit=1
              $region45: #{tpu_custom_call.1} parent=43 // loop_pre_header
                _
              $region46: #{tpu_custom_call.1} parent=43 // loop_header
                %s288 = sphi 0, %s292
                %p289 = scmp.ge.s32.totalorder %s288, 1
                %s293 = sphi %s279, %s279
                %s294 = sphi %s275, %s275
              $region47: #{tpu_custom_call.1} parent=43 // loop_header_branch
                %291 = sbr.rel (%p289) target = $region51
              $region48: #{tpu_custom_call.1} parent=43 // loop_body
                %v295 = vld [vmem:[%s293] sm:$0xff]
                %296 = vst [vmem:[%s294] sm:$0xff] %v295
                %v297 = vld [vmem:[%s293 + $0x20] sm:$0xff]
                %298 = vst [vmem:[%s294 + $0x8] sm:$0xff] %v297
                %v299 = vld [vmem:[%s293 + $0x40] sm:$0xff]
                %300 = vst [vmem:[%s294 + $0x10] sm:$0xff] %v299
                %v301 = vld [vmem:[%s293 + $0x60] sm:$0xff]
                %302 = vst [vmem:[%s294 + $0x18] sm:$0xff] %v301
              $region49: #{tpu_custom_call.1} parent=43 // loop_footer
                %s292 = sadd.s32 1, %s288
              $region50: #{tpu_custom_call.1} parent=43 // loop_footer_branch
                %287 = sbr.rel target = $region46
              $region51: #{tpu_custom_call.1} parent=43 // loop_exit
                _
            $region44: #{tpu_custom_call.1} parent=35 // pred_fallthru
              _
          $region36: #{tpu_custom_call.1} parent=31 // pred_fallthru
            _
          %323 = vnop
        $region32: #{tpu_custom_call.1} parent=27 // pred_fallthru
          _
        // Predicated region
        $region67: #{tpu_custom_call.1} parent=27 // pred_check
          %p324 = pneg %p139
        $region68: #{tpu_custom_call.1} parent=27 // pred_check_branch
          %326 = sbr.rel (%p324) target = $region70
        $region69: #{tpu_custom_call.1} parent=27 // pred_region
          %p327 = scmp.eq.s32.totalorder %s22, 0
          %s328 = scalar_select %p327, %s23, 3
          %p329 = scmp.lt.s32.totalorder %s328, 3
          %s330 = scalar_select %p329, %s328, 3
          %s331 = scalar_lea.vmem %s3, %s330
          %p332 = scmp.eq.s32.totalorder %s22, 0
          %s333 = scalar_select %p332, %s23, 3
        $region70: #{tpu_custom_call.1} parent=27 // pred_fallthru
          _
        // Predicated region
        $region71: #{tpu_custom_call.1} parent=27 // pred_check
          %p334 = pneg %p169
        $region72: #{tpu_custom_call.1} parent=27 // pred_check_branch
          %336 = sbr.rel (%p334) target = $region74
        $region73: #{tpu_custom_call.1} parent=27 // pred_region
          %p337 = scmp.eq.s32.totalorder %s22, 0
          %s338 = scalar_select %p337, 0, %s23
          %s339 = smul.u32 4, %s338
          %p340 = scmp.lt.s32.totalorder %s339, 15
          %s341 = scalar_select %p340, %s339, 15
          %s342 = smul.addr %s341, 8
          %s343 = scalar_lea.vmem %s4, %s342
          %p344 = scmp.eq.s32.totalorder %s22, 0
          %s345 = scalar_select %p344, 0, %s23
          %s346 = smul.u32 4, %s345
        $region74: #{tpu_custom_call.1} parent=27 // pred_fallthru
          _
      $region28: #{tpu_custom_call.1} parent=5 // pred_fallthru
        _
      %p347 = scmp.le.s32.totalorder 1, %s14
      %p348 = scmp.lt.s32.totalorder %s14, 9
      %p349 = pnand %p347, %p348
      %p350 = pneg %p349
      // Predicated region
      $region75: #{tpu_custom_call.1} parent=5 // pred_check
        _
      $region76: #{tpu_custom_call.1} parent=5 // pred_check_branch
        %352 = sbr.rel (%p349) target = $region78
      $region77: #{tpu_custom_call.1} parent=5 // pred_region
        %s353 = ssub.s32 %s14, 1
        // Predicated region
        $region79: #{tpu_custom_call.1} parent=77 // pred_check
          %p354 = pneg %p59
        $region80: #{tpu_custom_call.1} parent=77 // pred_check_branch
          %356 = sbr.rel (%p354) target = $region82
        $region81: #{tpu_custom_call.1} parent=77 // pred_region
          %357 = dma.done [#allocation6], 1024
        $region82: #{tpu_custom_call.1} parent=77 // pred_fallthru
          _
        %s358 = sand.u32 %s102, 1
        %s359 = sand.u32 %s102, 1
        %s360 = smul.addr %s359, 32
        %s361 = scalar_lea.vmem [#allocation8], %s360
        // Predicated region
        $region83: #{tpu_custom_call.1} parent=77 // pred_check
          %p362 = pneg %p115
        $region84: #{tpu_custom_call.1} parent=77 // pred_check_branch
          %364 = sbr.rel (%p362) target = $region86
        $region85: #{tpu_custom_call.1} parent=77 // pred_region
          _
        $region86: #{tpu_custom_call.1} parent=77 // pred_fallthru
          _
        %p365 = pneg %p59
        %p366 = pneg %p56
        %s367 = smul.u32 32, %s24
        %p368 = scmp.lt.s32.totalorder %s367, 31
        %s369 = scalar_select %p368, %s367, 31
        %s370 = smul.addr %s369, 8
        %s371 = scalar_lea.vmem %s1, %s370
        %p372 = pneg %p85
        %p373 = pneg %p82
        %s374 = sand.u32 %s102, 1
        %s375 = sand.u32 %s102, 1
        %s376 = smul.addr %s375, 32
        %s377 = scalar_lea.vmem [#allocation8], %s376
        %p378 = pneg %p115
        %p379 = pneg %p112
        %p380 = scmp.eq.s32.totalorder %s25, 0
        %s381 = scalar_select %p380, %s26, 3
        %p382 = scmp.lt.s32.totalorder %s381, 3
        %s383 = scalar_select %p382, %s381, 3
        %s384 = scalar_lea.vmem %s3, %s383
        %p385 = pneg %p145
        %p386 = pneg %p142
        %p387 = scmp.eq.s32.totalorder %s25, 0
        %s388 = scalar_select %p387, 0, %s26
        %s389 = smul.u32 4, %s388
        %p390 = scmp.lt.s32.totalorder %s389, 15
        %s391 = scalar_select %p390, %s389, 15
        %s392 = smul.addr %s391, 8
        %s393 = scalar_lea.vmem %s4, %s392
        %p394 = pneg %p175
        %p395 = pneg %p172
        %p396 = pneg %p196
        %p397 = pneg %p193
        %p398 = pneg %p222
        %p399 = pneg %p219
        %s400 = smul.u32 8, %s24
        %s401 = smul.u32 32, %s24
        %p402 = scmp.lt.s32.totalorder %s401, 31
        %s403 = scalar_select %p402, %s401, 31
        %s404 = smul.addr %s403, 8
        %s405 = scalar_lea.vmem %s1, %s404
        %s406 = smul.u32 32, %s24
        %p407 = scmp.eq.s32.totalorder %s25, 0
        %s408 = scalar_select %p407, %s26, 3
        %p409 = scmp.eq.s32.totalorder %s25, 0
        %s410 = scalar_select %p409, %s26, 3
        %p411 = scmp.lt.s32.totalorder %s410, 3
        %s412 = scalar_select %p411, %s410, 3
        %s413 = scalar_lea.vmem %s3, %s412
        %p414 = scmp.eq.s32.totalorder %s25, 0
        %s415 = scalar_select %p414, %s26, 3
        %p416 = scmp.eq.s32.totalorder %s25, 0
        %s417 = scalar_select %p416, 0, %s26
        %s418 = smul.u32 4, %s417
        %p419 = scmp.lt.s32.totalorder %s418, 15
        %s420 = scalar_select %p419, %s418, 15
        %s421 = smul.addr %s420, 8
        %s422 = scalar_lea.vmem %s4, %s421
        %p423 = scmp.eq.s32.totalorder %s25, 0
        %s424 = scalar_select %p423, 0, %s26
        %s425 = smul.u32 4, %s424
        %s426 = smul.u32 32, %s24
        %p428 = scmp.eq.s32.totalorder %s25, 0
        // Predicated region
        $region87: #{tpu_custom_call.1} parent=77 // pred_check
          %p429 = pneg %p428
        $region88: #{tpu_custom_call.1} parent=77 // pred_check_branch
          %431 = sbr.rel (%p429) target = $region90
        $region89: #{tpu_custom_call.1} parent=77 // pred_region
          %p432 = scmp.eq.s32.totalorder %s26, 0
          // Predicated region
          $region91: #{tpu_custom_call.1} parent=89 // pred_check
            %p433 = pneg %p432
          $region92: #{tpu_custom_call.1} parent=89 // pred_check_branch
            %435 = sbr.rel (%p433) target = $region94
          $region93: #{tpu_custom_call.1} parent=89 // pred_region
            %vm436 = vcmask 7168
            %437 = vst.msk [vmem:[#allocation3] sm:$0xff] %vm436, 0.0
            %438 = vst.msk [vmem:[#allocation3 + $0x8] sm:$0xff] %vm436, 0.0
            %439 = vst.msk [vmem:[#allocation3 + $0x10] sm:$0xff] %vm436, 0.0
            %440 = vst.msk [vmem:[#allocation3 + $0x18] sm:$0xff] %vm436, 0.0
            %441 = vst.msk [vmem:[#allocation3 + $0x20] sm:$0xff] %vm436, 0.0
            %442 = vst.msk [vmem:[#allocation3 + $0x28] sm:$0xff] %vm436, 0.0
            %443 = vst.msk [vmem:[#allocation3 + $0x30] sm:$0xff] %vm436, 0.0
            %444 = vst.msk [vmem:[#allocation3 + $0x38] sm:$0xff] %vm436, 0.0
            %445 = vst.msk [vmem:[#allocation3 + $0x40] sm:$0xff] %vm436, 0.0
            %446 = vst.msk [vmem:[#allocation3 + $0x48] sm:$0xff] %vm436, 0.0
            %447 = vst.msk [vmem:[#allocation3 + $0x50] sm:$0xff] %vm436, 0.0
            %448 = vst.msk [vmem:[#allocation3 + $0x58] sm:$0xff] %vm436, 0.0
            %449 = vst.msk [vmem:[#allocation3 + $0x60] sm:$0xff] %vm436, 0.0
            %450 = vst.msk [vmem:[#allocation3 + $0x68] sm:$0xff] %vm436, 0.0
            %451 = vst.msk [vmem:[#allocation3 + $0x70] sm:$0xff] %vm436, 0.0
            %452 = vst.msk [vmem:[#allocation3 + $0x78] sm:$0xff] %vm436, 0.0
            %453 = vst.msk [vmem:[#allocation3 + $0x80] sm:$0xff] %vm436, 0.0
            %454 = vst.msk [vmem:[#allocation3 + $0x88] sm:$0xff] %vm436, 0.0
            %455 = vst.msk [vmem:[#allocation3 + $0x90] sm:$0xff] %vm436, 0.0
            %456 = vst.msk [vmem:[#allocation3 + $0x98] sm:$0xff] %vm436, 0.0
            %457 = vst.msk [vmem:[#allocation3 + $0xa0] sm:$0xff] %vm436, 0.0
            %458 = vst.msk [vmem:[#allocation3 + $0xa8] sm:$0xff] %vm436, 0.0
            %459 = vst.msk [vmem:[#allocation3 + $0xb0] sm:$0xff] %vm436, 0.0
            %460 = vst.msk [vmem:[#allocation3 + $0xb8] sm:$0xff] %vm436, 0.0
            %461 = vst.msk [vmem:[#allocation3 + $0xc0] sm:$0xff] %vm436, 0.0
            %462 = vst.msk [vmem:[#allocation3 + $0xc8] sm:$0xff] %vm436, 0.0
            %463 = vst.msk [vmem:[#allocation3 + $0xd0] sm:$0xff] %vm436, 0.0
            %464 = vst.msk [vmem:[#allocation3 + $0xd8] sm:$0xff] %vm436, 0.0
            %465 = vst.msk [vmem:[#allocation3 + $0xe0] sm:$0xff] %vm436, 0.0
            %466 = vst.msk [vmem:[#allocation3 + $0xe8] sm:$0xff] %vm436, 0.0
            %467 = vst.msk [vmem:[#allocation3 + $0xf0] sm:$0xff] %vm436, 0.0
            %468 = vst.msk [vmem:[#allocation3 + $0xf8] sm:$0xff] %vm436, 0.0
          $region94: #{tpu_custom_call.1} parent=89 // pred_fallthru
            _
          %v469 = vld [vmem:[#allocation5] sm:$0xff]
          %v470 = vld [vmem:[#allocation5 + $0x8] sm:$0xff]
          %v471 = vld [vmem:[#allocation5 + $0x10] sm:$0xff]
          %v472 = vld [vmem:[#allocation5 + $0x18] sm:$0xff]
          %v473 = vld [vmem:[#allocation5 + $0x20] sm:$0xff]
          %v474 = vld [vmem:[#allocation5 + $0x28] sm:$0xff]
          %v475 = vld [vmem:[#allocation5 + $0x30] sm:$0xff]
          %v476 = vld [vmem:[#allocation5 + $0x38] sm:$0xff]
          %v477 = vunpack.c.l.s8.bf16 %v469
          %v478 = vunpack.c.h.s8.bf16 %v469
          %v479 = vunpack.c.l.s8.bf16 %v470
          %v480 = vunpack.c.h.s8.bf16 %v470
          %v481 = vunpack.c.l.s8.bf16 %v471
          %v482 = vunpack.c.h.s8.bf16 %v471
          %v483 = vunpack.c.l.s8.bf16 %v472
          %v484 = vunpack.c.h.s8.bf16 %v472
          %v485 = vunpack.c.l.s8.bf16 %v473
          %v486 = vunpack.c.h.s8.bf16 %v473
          %v487 = vunpack.c.l.s8.bf16 %v474
          %v488 = vunpack.c.h.s8.bf16 %v474
          %v489 = vunpack.c.l.s8.bf16 %v475
          %v490 = vunpack.c.h.s8.bf16 %v475
          %v491 = vunpack.c.l.s8.bf16 %v476
          %v492 = vunpack.c.h.s8.bf16 %v476
          %v493 = vld [vmem:[%s361] sm:$0xff]
          %v494 = vld [vmem:[%s361 + $0x8] sm:$0xff]
          %v495 = vld [vmem:[%s361 + $0x10] sm:$0xff]
          %v496 = vld [vmem:[%s361 + $0x18] sm:$0xff]
          %v497 = vunpack.c.l.s8.bf16 %v493
          %v498 = vunpack.c.h.s8.bf16 %v493
          %v499 = vunpack.c.l.s8.bf16 %v494
          %v500 = vunpack.c.h.s8.bf16 %v494
          %v501 = vunpack.c.l.s8.bf16 %v495
          %v502 = vunpack.c.h.s8.bf16 %v495
          %v503 = vunpack.c.l.s8.bf16 %v496
          %v504 = vunpack.c.h.s8.bf16 %v496
          %505 = vmatprep.subr.bf16.mxu0 0
          %506 = vmatpush1.bf16.msra.mxu0 %v497
          %507 = vmatprep.subr.bf16.mxu0 0
          %508 = vmatpush1.bf16.msra.mxu0 %v498
          %509 = vmatprep.subr.bf16.mxu0 0
          %510 = vmatpush1.bf16.msra.mxu0 %v499
          %511 = vmatprep.subr.bf16.mxu0 0
          %512 = vmatpush1.bf16.msra.mxu0 %v500
          %513 = vmatprep.subr.bf16.mxu0 0
          %514 = vmatpush1.bf16.msra.mxu0 %v501
          %515 = vmatprep.subr.bf16.mxu0 0
          %516 = vmatpush1.bf16.msra.mxu0 %v502
          %517 = vmatprep.subr.bf16.mxu0 0
          %518 = vmatpush1.bf16.msra.mxu0 %v503
          %519 = vmatprep.subr.bf16.mxu0 0
          %520 = vmatpush1.bf16.msra.mxu0 %v504
          %521 = vmatprep.subr.bf16.mxu0 0
          %522 = vmatpush1.bf16.msra.mxu0 0
          %523 = vmatprep.subr.bf16.mxu0 0
          %524 = vmatpush1.bf16.msra.mxu0 0
          %525 = vmatprep.subr.bf16.mxu0 0
          %526 = vmatpush1.bf16.msra.mxu0 0
          %527 = vmatprep.subr.bf16.mxu0 0
          %528 = vmatpush1.bf16.msra.mxu0 0
          %529 = vmatprep.subr.bf16.mxu0 0
          %530 = vmatpush1.bf16.msra.mxu0 0
          %531 = vmatprep.subr.bf16.mxu0 0
          %532 = vmatpush1.bf16.msra.mxu0 0
          %533 = vmatprep.subr.bf16.mxu0 0
          %534 = vmatpush1.bf16.msra.mxu0 0
          %535 = vmatprep.subr.bf16.mxu0 0
          %536 = vmatpush1.bf16.msra.mxu0 0
          %537 = vmatprep.mubr.bf16.mxu0 0
          %538 = vmatmul.mubr.bf16.gmra.mrb[0].mxu0 %v477
          %v539 = vpop.f32.mrb[0].mxu0
          %v540 = vadd.f32 0.0, %v539
          %v541 = vpop.f32.mrb[0].mxu0
          %v542 = vpop.f32.mrb[0].mxu0
          %v543 = vadd.f32 0.0, %v542
          %v544 = vpop.f32.mrb[0].mxu0
          %545 = vmatprep.mubr.bf16.mxu0 0
          %546 = vmatmul.mubr.bf16.gmra.mrb[0].mxu0 %v478
          %v547 = vpop.f32.mrb[0].mxu0
          %v548 = vadd.f32 0.0, %v547
          %v549 = vpop.f32.mrb[0].mxu0
          %v550 = vpop.f32.mrb[0].mxu0
          %v551 = vadd.f32 0.0, %v550
          %v552 = vpop.f32.mrb[0].mxu0
          %553 = vmatprep.mubr.bf16.mxu0 0
          %554 = vmatmul.mubr.bf16.gmra.mrb[0].mxu0 %v479
          %v555 = vpop.f32.mrb[0].mxu0
          %v556 = vadd.f32 0.0, %v555
          %v557 = vpop.f32.mrb[0].mxu0
          %v558 = vpop.f32.mrb[0].mxu0
          %v559 = vadd.f32 0.0, %v558
          %v560 = vpop.f32.mrb[0].mxu0
          %561 = vmatprep.mubr.bf16.mxu0 0
          %562 = vmatmul.mubr.bf16.gmra.mrb[0].mxu0 %v480
          %v563 = vpop.f32.mrb[0].mxu0
          %v564 = vadd.f32 0.0, %v563
          %v565 = vpop.f32.mrb[0].mxu0
          %v566 = vpop.f32.mrb[0].mxu0
          %v567 = vadd.f32 0.0, %v566
          %v568 = vpop.f32.mrb[0].mxu0
          %569 = vmatprep.mubr.bf16.mxu0 0
          %570 = vmatmul.mubr.bf16.gmra.mrb[0].mxu0 %v481
          %v571 = vpop.f32.mrb[0].mxu0
          %v572 = vadd.f32 0.0, %v571
          %v573 = vpop.f32.mrb[0].mxu0
          %v574 = vpop.f32.mrb[0].mxu0
          %v575 = vadd.f32 0.0, %v574
          %v576 = vpop.f32.mrb[0].mxu0
          %577 = vmatprep.mubr.bf16.mxu0 0
          %578 = vmatmul.mubr.bf16.gmra.mrb[0].mxu0 %v482
          %v579 = vpop.f32.mrb[0].mxu0
          %v580 = vadd.f32 0.0, %v579
          %v581 = vpop.f32.mrb[0].mxu0
          %v582 = vpop.f32.mrb[0].mxu0
          %v583 = vadd.f32 0.0, %v582
          %v584 = vpop.f32.mrb[0].mxu0
          %585 = vmatprep.mubr.bf16.mxu0 0
          %586 = vmatmul.mubr.bf16.gmra.mrb[0].mxu0 %v483
          %v587 = vpop.f32.mrb[0].mxu0
          %v588 = vadd.f32 0.0, %v587
          %v589 = vpop.f32.mrb[0].mxu0
          %v590 = vpop.f32.mrb[0].mxu0
          %v591 = vadd.f32 0.0, %v590
          %v592 = vpop.f32.mrb[0].mxu0
          %593 = vmatprep.mubr.bf16.mxu0 0
          %594 = vmatmul.mubr.bf16.gmra.mrb[0].mxu0 %v484
          %v595 = vpop.f32.mrb[0].mxu0
          %v596 = vadd.f32 0.0, %v595
          %v597 = vpop.f32.mrb[0].mxu0
          %v598 = vpop.f32.mrb[0].mxu0
          %v599 = vadd.f32 0.0, %v598
          %v600 = vpop.f32.mrb[0].mxu0
          %601 = vmatprep.mubr.bf16.mxu0 0
          %602 = vmatmul.mubr.bf16.gmra.mrb[0].mxu0 %v485
          %v603 = vpop.f32.mrb[0].mxu0
          %v604 = vadd.f32 0.0, %v603
          %v605 = vpop.f32.mrb[0].mxu0
          %v606 = vpop.f32.mrb[0].mxu0
          %v607 = vadd.f32 0.0, %v606
          %v608 = vpop.f32.mrb[0].mxu0
          %609 = vmatprep.mubr.bf16.mxu0 0
          %610 = vmatmul.mubr.bf16.gmra.mrb[0].mxu0 %v486
          %v611 = vpop.f32.mrb[0].mxu0
          %v612 = vadd.f32 0.0, %v611
          %v613 = vpop.f32.mrb[0].mxu0
          %v614 = vpop.f32.mrb[0].mxu0
          %v615 = vadd.f32 0.0, %v614
          %v616 = vpop.f32.mrb[0].mxu0
          %617 = vmatprep.mubr.bf16.mxu0 0
          %618 = vmatmul.mubr.bf16.gmra.mrb[0].mxu0 %v487
          %v619 = vpop.f32.mrb[0].mxu0
          %v620 = vadd.f32 0.0, %v619
          %v621 = vpop.f32.mrb[0].mxu0
          %v622 = vpop.f32.mrb[0].mxu0
          %v623 = vadd.f32 0.0, %v622
          %v624 = vpop.f32.mrb[0].mxu0
          %625 = vmatprep.mubr.bf16.mxu0 0
          %626 = vmatmul.mubr.bf16.gmra.mrb[0].mxu0 %v488
          %v627 = vpop.f32.mrb[0].mxu0
          %v628 = vadd.f32 0.0, %v627
          %v629 = vpop.f32.mrb[0].mxu0
          %v630 = vpop.f32.mrb[0].mxu0
          %v631 = vadd.f32 0.0, %v630
          %v632 = vpop.f32.mrb[0].mxu0
          %633 = vmatprep.mubr.bf16.mxu0 0
          %634 = vmatmul.mubr.bf16.gmra.mrb[0].mxu0 %v489
          %v635 = vpop.f32.mrb[0].mxu0
          %v636 = vadd.f32 0.0, %v635
          %v637 = vpop.f32.mrb[0].mxu0
          %v638 = vpop.f32.mrb[0].mxu0
          %v639 = vadd.f32 0.0, %v638
          %v640 = vpop.f32.mrb[0].mxu0
          %641 = vmatprep.mubr.bf16.mxu0 0
          %642 = vmatmul.mubr.bf16.gmra.mrb[0].mxu0 %v490
          %v643 = vpop.f32.mrb[0].mxu0
          %v644 = vadd.f32 0.0, %v643
          %v645 = vpop.f32.mrb[0].mxu0
          %v646 = vpop.f32.mrb[0].mxu0
          %v647 = vadd.f32 0.0, %v646
          %v648 = vpop.f32.mrb[0].mxu0
          %649 = vmatprep.mubr.bf16.mxu0 0
          %650 = vmatmul.mubr.bf16.gmra.mrb[0].mxu0 %v491
          %v651 = vpop.f32.mrb[0].mxu0
          %v652 = vadd.f32 0.0, %v651
          %v653 = vpop.f32.mrb[0].mxu0
          %v654 = vpop.f32.mrb[0].mxu0
          %v655 = vadd.f32 0.0, %v654
          %v656 = vpop.f32.mrb[0].mxu0
          %657 = vmatprep.mubr.bf16.mxu0 0
          %658 = vmatmul.mubr.bf16.gmra.mrb[0].mxu0 %v492
          %v659 = vpop.f32.mrb[0].mxu0
          %v660 = vadd.f32 0.0, %v659
          %v661 = vpop.f32.mrb[0].mxu0
          %v662 = vpop.f32.mrb[0].mxu0
          %v663 = vadd.f32 0.0, %v662
          %v664 = vpop.f32.mrb[0].mxu0
          %665 = vdwg.mxu0
          %v666 = vld [vmem:[%s405] sm:$0xff]
          %v667 = vld [vmem:[%s405 + $0x8] sm:$0xff]
          %v668 = vld [vmem:[%s405 + $0x10] sm:$0xff]
          %v669 = vld [vmem:[%s405 + $0x18] sm:$0xff]
          %v670 = vld [vmem:[%s405 + $0x20] sm:$0xff]
          %v671 = vld [vmem:[%s405 + $0x28] sm:$0xff]
          %v672 = vld [vmem:[%s405 + $0x30] sm:$0xff]
          %v673 = vld [vmem:[%s405 + $0x38] sm:$0xff]
          %v674 = vld [vmem:[%s405 + $0x40] sm:$0xff]
          %v675 = vld [vmem:[%s405 + $0x48] sm:$0xff]
          %v676 = vld [vmem:[%s405 + $0x50] sm:$0xff]
          %v677 = vld [vmem:[%s405 + $0x58] sm:$0xff]
          %v678 = vld [vmem:[%s405 + $0x60] sm:$0xff]
          %v679 = vld [vmem:[%s405 + $0x68] sm:$0xff]
          %v680 = vld [vmem:[%s405 + $0x70] sm:$0xff]
          %v681 = vld [vmem:[%s405 + $0x78] sm:$0xff]
          %v682 = vld [vmem:[%s405 + $0x80] sm:$0xff]
          %v683 = vld [vmem:[%s405 + $0x88] sm:$0xff]
          %v684 = vld [vmem:[%s405 + $0x90] sm:$0xff]
          %v685 = vld [vmem:[%s405 + $0x98] sm:$0xff]
          %v686 = vld [vmem:[%s405 + $0xa0] sm:$0xff]
          %v687 = vld [vmem:[%s405 + $0xa8] sm:$0xff]
          %v688 = vld [vmem:[%s405 + $0xb0] sm:$0xff]
          %v689 = vld [vmem:[%s405 + $0xb8] sm:$0xff]
          %v690 = vld [vmem:[%s405 + $0xc0] sm:$0xff]
          %v691 = vld [vmem:[%s405 + $0xc8] sm:$0xff]
          %v692 = vld [vmem:[%s405 + $0xd0] sm:$0xff]
          %v693 = vld [vmem:[%s405 + $0xd8] sm:$0xff]
          %v694 = vld [vmem:[%s405 + $0xe0] sm:$0xff]
          %v695 = vld [vmem:[%s405 + $0xe8] sm:$0xff]
          %v696 = vld [vmem:[%s405 + $0xf0] sm:$0xff]
          %v697 = vld [vmem:[%s405 + $0xf8] sm:$0xff]
          %699 = vset.pattern.permute.xlu0 0
          %700 = vperm.xlu0 %699, %v666
          %v701 = vpop.permute.xlu0 %700
          %704 = vset.pattern.permute.xlu0 0
          %705 = vperm.xlu0 %704, %v667
          %v706 = vpop.permute.xlu0 %705
          %709 = vset.pattern.permute.xlu0 0
          %710 = vperm.xlu0 %709, %v668
          %v711 = vpop.permute.xlu0 %710
          %714 = vset.pattern.permute.xlu0 0
          %715 = vperm.xlu0 %714, %v669
          %v716 = vpop.permute.xlu0 %715
          %719 = vset.pattern.permute.xlu0 0
          %720 = vperm.xlu0 %719, %v670
          %v721 = vpop.permute.xlu0 %720
          %724 = vset.pattern.permute.xlu0 0
          %725 = vperm.xlu0 %724, %v671
          %v726 = vpop.permute.xlu0 %725
          %729 = vset.pattern.permute.xlu0 0
          %730 = vperm.xlu0 %729, %v672
          %v731 = vpop.permute.xlu0 %730
          %734 = vset.pattern.permute.xlu0 0
          %735 = vperm.xlu0 %734, %v673
          %v736 = vpop.permute.xlu0 %735
          %739 = vset.pattern.permute.xlu0 0
          %740 = vperm.xlu0 %739, %v674
          %v741 = vpop.permute.xlu0 %740
          %744 = vset.pattern.permute.xlu0 0
          %745 = vperm.xlu0 %744, %v675
          %v746 = vpop.permute.xlu0 %745
          %749 = vset.pattern.permute.xlu0 0
          %750 = vperm.xlu0 %749, %v676
          %v751 = vpop.permute.xlu0 %750
          %754 = vset.pattern.permute.xlu0 0
          %755 = vperm.xlu0 %754, %v677
          %v756 = vpop.permute.xlu0 %755
          %759 = vset.pattern.permute.xlu0 0
          %760 = vperm.xlu0 %759, %v678
          %v761 = vpop.permute.xlu0 %760
          %764 = vset.pattern.permute.xlu0 0
          %765 = vperm.xlu0 %764, %v679
          %v766 = vpop.permute.xlu0 %765
          %769 = vset.pattern.permute.xlu0 0
          %770 = vperm.xlu0 %769, %v680
          %v771 = vpop.permute.xlu0 %770
          %774 = vset.pattern.permute.xlu0 0
          %775 = vperm.xlu0 %774, %v681
          %v776 = vpop.permute.xlu0 %775
          %779 = vset.pattern.permute.xlu0 0
          %780 = vperm.xlu0 %779, %v682
          %v781 = vpop.permute.xlu0 %780
          %784 = vset.pattern.permute.xlu0 0
          %785 = vperm.xlu0 %784, %v683
          %v786 = vpop.permute.xlu0 %785
          %789 = vset.pattern.permute.xlu0 0
          %790 = vperm.xlu0 %789, %v684
          %v791 = vpop.permute.xlu0 %790
          %794 = vset.pattern.permute.xlu0 0
          %795 = vperm.xlu0 %794, %v685
          %v796 = vpop.permute.xlu0 %795
          %799 = vset.pattern.permute.xlu0 0
          %800 = vperm.xlu0 %799, %v686
          %v801 = vpop.permute.xlu0 %800
          %804 = vset.pattern.permute.xlu0 0
          %805 = vperm.xlu0 %804, %v687
          %v806 = vpop.permute.xlu0 %805
          %809 = vset.pattern.permute.xlu0 0
          %810 = vperm.xlu0 %809, %v688
          %v811 = vpop.permute.xlu0 %810
          %814 = vset.pattern.permute.xlu0 0
          %815 = vperm.xlu0 %814, %v689
          %v816 = vpop.permute.xlu0 %815
          %819 = vset.pattern.permute.xlu0 0
          %820 = vperm.xlu0 %819, %v690
          %v821 = vpop.permute.xlu0 %820
          %824 = vset.pattern.permute.xlu0 0
          %825 = vperm.xlu0 %824, %v691
          %v826 = vpop.permute.xlu0 %825
          %829 = vset.pattern.permute.xlu0 0
          %830 = vperm.xlu0 %829, %v692
          %v831 = vpop.permute.xlu0 %830
          %834 = vset.pattern.permute.xlu0 0
          %835 = vperm.xlu0 %834, %v693
          %v836 = vpop.permute.xlu0 %835
          %839 = vset.pattern.permute.xlu0 0
          %840 = vperm.xlu0 %839, %v694
          %v841 = vpop.permute.xlu0 %840
          %844 = vset.pattern.permute.xlu0 0
          %845 = vperm.xlu0 %844, %v695
          %v846 = vpop.permute.xlu0 %845
          %849 = vset.pattern.permute.xlu0 0
          %850 = vperm.xlu0 %849, %v696
          %v851 = vpop.permute.xlu0 %850
          %854 = vset.pattern.permute.xlu0 0
          %855 = vperm.xlu0 %854, %v697
          %v856 = vpop.permute.xlu0 %855
          %v858 = vmul.f32 %v540, %v701
          %v859 = vmul.f32 %v543, %v706
          %v860 = vmul.f32 %v548, %v711
          %v861 = vmul.f32 %v551, %v716
          %v862 = vmul.f32 %v556, %v721
          %v863 = vmul.f32 %v559, %v726
          %v864 = vmul.f32 %v564, %v731
          %v865 = vmul.f32 %v567, %v736
          %v866 = vmul.f32 %v572, %v741
          %v867 = vmul.f32 %v575, %v746
          %v868 = vmul.f32 %v580, %v751
          %v869 = vmul.f32 %v583, %v756
          %v870 = vmul.f32 %v588, %v761
          %v871 = vmul.f32 %v591, %v766
          %v872 = vmul.f32 %v596, %v771
          %v873 = vmul.f32 %v599, %v776
          %v874 = vmul.f32 %v604, %v781
          %v875 = vmul.f32 %v607, %v786
          %v876 = vmul.f32 %v612, %v791
          %v877 = vmul.f32 %v615, %v796
          %v878 = vmul.f32 %v620, %v801
          %v879 = vmul.f32 %v623, %v806
          %v880 = vmul.f32 %v628, %v811
          %v881 = vmul.f32 %v631, %v816
          %v882 = vmul.f32 %v636, %v821
          %v883 = vmul.f32 %v639, %v826
          %v884 = vmul.f32 %v644, %v831
          %v885 = vmul.f32 %v647, %v836
          %v886 = vmul.f32 %v652, %v841
          %v887 = vmul.f32 %v655, %v846
          %v888 = vmul.f32 %v660, %v851
          %v889 = vmul.f32 %v663, %v856
          %v890 = vld [vmem:[%s413] sm:$0x1]
          %v892 = vlaneseq
          %v893 = vshrl.u32 %v892, 7
          %v894 = vsub.s32 0, %v893
          %v895 = vrot.slane %v890, %v894
          %v897 = vmul.f32 %v858, %v895
          %v898 = vmul.f32 %v859, %v895
          %v899 = vmul.f32 %v860, %v895
          %v900 = vmul.f32 %v861, %v895
          %v901 = vmul.f32 %v862, %v895
          %v902 = vmul.f32 %v863, %v895
          %v903 = vmul.f32 %v864, %v895
          %v904 = vmul.f32 %v865, %v895
          %v905 = vmul.f32 %v866, %v895
          %v906 = vmul.f32 %v867, %v895
          %v907 = vmul.f32 %v868, %v895
          %v908 = vmul.f32 %v869, %v895
          %v909 = vmul.f32 %v870, %v895
          %v910 = vmul.f32 %v871, %v895
          %v911 = vmul.f32 %v872, %v895
          %v912 = vmul.f32 %v873, %v895
          %v913 = vmul.f32 %v874, %v895
          %v914 = vmul.f32 %v875, %v895
          %v915 = vmul.f32 %v876, %v895
          %v916 = vmul.f32 %v877, %v895
          %v917 = vmul.f32 %v878, %v895
          %v918 = vmul.f32 %v879, %v895
          %v919 = vmul.f32 %v880, %v895
          %v920 = vmul.f32 %v881, %v895
          %v921 = vmul.f32 %v882, %v895
          %v922 = vmul.f32 %v883, %v895
          %v923 = vmul.f32 %v884, %v895
          %v924 = vmul.f32 %v885, %v895
          %v925 = vmul.f32 %v886, %v895
          %v926 = vmul.f32 %v887, %v895
          %v927 = vmul.f32 %v888, %v895
          %v928 = vmul.f32 %v889, %v895
          %v929 = vmul.f32 %v897, %v897
          %v930 = vmul.f32 %v898, %v898
          %v931 = vmul.f32 %v899, %v899
          %v932 = vmul.f32 %v900, %v900
          %v933 = vmul.f32 %v901, %v901
          %v934 = vmul.f32 %v902, %v902
          %v935 = vmul.f32 %v903, %v903
          %v936 = vmul.f32 %v904, %v904
          %v937 = vmul.f32 %v905, %v905
          %v938 = vmul.f32 %v906, %v906
          %v939 = vmul.f32 %v907, %v907
          %v940 = vmul.f32 %v908, %v908
          %v941 = vmul.f32 %v909, %v909
          %v942 = vmul.f32 %v910, %v910
          %v943 = vmul.f32 %v911, %v911
          %v944 = vmul.f32 %v912, %v912
          %v945 = vmul.f32 %v913, %v913
          %v946 = vmul.f32 %v914, %v914
          %v947 = vmul.f32 %v915, %v915
          %v948 = vmul.f32 %v916, %v916
          %v949 = vmul.f32 %v917, %v917
          %v950 = vmul.f32 %v918, %v918
          %v951 = vmul.f32 %v919, %v919
          %v952 = vmul.f32 %v920, %v920
          %v953 = vmul.f32 %v921, %v921
          %v954 = vmul.f32 %v922, %v922
          %v955 = vmul.f32 %v923, %v923
          %v956 = vmul.f32 %v924, %v924
          %v957 = vmul.f32 %v925, %v925
          %v958 = vmul.f32 %v926, %v926
          %v959 = vmul.f32 %v927, %v927
          %v960 = vmul.f32 %v928, %v928
          %v961 = vmul.f32 %v897, %v929
          %v962 = vmul.f32 %v898, %v930
          %v963 = vmul.f32 %v899, %v931
          %v964 = vmul.f32 %v900, %v932
          %v965 = vmul.f32 %v901, %v933
          %v966 = vmul.f32 %v902, %v934
          %v967 = vmul.f32 %v903, %v935
          %v968 = vmul.f32 %v904, %v936
          %v969 = vmul.f32 %v905, %v937
          %v970 = vmul.f32 %v906, %v938
          %v971 = vmul.f32 %v907, %v939
          %v972 = vmul.f32 %v908, %v940
          %v973 = vmul.f32 %v909, %v941
          %v974 = vmul.f32 %v910, %v942
          %v975 = vmul.f32 %v911, %v943
          %v976 = vmul.f32 %v912, %v944
          %v977 = vmul.f32 %v913, %v945
          %v978 = vmul.f32 %v914, %v946
          %v979 = vmul.f32 %v915, %v947
          %v980 = vmul.f32 %v916, %v948
          %v981 = vmul.f32 %v917, %v949
          %v982 = vmul.f32 %v918, %v950
          %v983 = vmul.f32 %v919, %v951
          %v984 = vmul.f32 %v920, %v952
          %v985 = vmul.f32 %v921, %v953
          %v986 = vmul.f32 %v922, %v954
          %v987 = vmul.f32 %v923, %v955
          %v988 = vmul.f32 %v924, %v956
          %v989 = vmul.f32 %v925, %v957
          %v990 = vmul.f32 %v926, %v958
          %v991 = vmul.f32 %v927, %v959
          %v992 = vmul.f32 %v928, %v960
          %v993 = vmul.f32 %v961, 0.044715
          %v994 = vmul.f32 %v962, 0.044715
          %v995 = vmul.f32 %v963, 0.044715
          %v996 = vmul.f32 %v964, 0.044715
          %v997 = vmul.f32 %v965, 0.044715
          %v998 = vmul.f32 %v966, 0.044715
          %v999 = vmul.f32 %v967, 0.044715
          %v1000 = vmul.f32 %v968, 0.044715
          %v1001 = vmul.f32 %v969, 0.044715
          %v1002 = vmul.f32 %v970, 0.044715
          %v1003 = vmul.f32 %v971, 0.044715
          %v1004 = vmul.f32 %v972, 0.044715
          %v1005 = vmul.f32 %v973, 0.044715
          %v1006 = vmul.f32 %v974, 0.044715
          %v1007 = vmul.f32 %v975, 0.044715
          %v1008 = vmul.f32 %v976, 0.044715
          %v1009 = vmul.f32 %v977, 0.044715
          %v1010 = vmul.f32 %v978, 0.044715
          %v1011 = vmul.f32 %v979, 0.044715
          %v1012 = vmul.f32 %v980, 0.044715
          %v1013 = vmul.f32 %v981, 0.044715
          %v1014 = vmul.f32 %v982, 0.044715
          %v1015 = vmul.f32 %v983, 0.044715
          %v1016 = vmul.f32 %v984, 0.044715
          %v1017 = vmul.f32 %v985, 0.044715
          %v1018 = vmul.f32 %v986, 0.044715
          %v1019 = vmul.f32 %v987, 0.044715
          %v1020 = vmul.f32 %v988, 0.044715
          %v1021 = vmul.f32 %v989, 0.044715
          %v1022 = vmul.f32 %v990, 0.044715
          %v1023 = vmul.f32 %v991, 0.044715
          %v1024 = vmul.f32 %v992, 0.044715
          %v1025 = vadd.f32 %v897, %v993
          %v1026 = vadd.f32 %v898, %v994
          %v1027 = vadd.f32 %v899, %v995
          %v1028 = vadd.f32 %v900, %v996
          %v1029 = vadd.f32 %v901, %v997
          %v1030 = vadd.f32 %v902, %v998
          %v1031 = vadd.f32 %v903, %v999
          %v1032 = vadd.f32 %v904, %v1000
          %v1033 = vadd.f32 %v905, %v1001
          %v1034 = vadd.f32 %v906, %v1002
          %v1035 = vadd.f32 %v907, %v1003
          %v1036 = vadd.f32 %v908, %v1004
          %v1037 = vadd.f32 %v909, %v1005
          %v1038 = vadd.f32 %v910, %v1006
          %v1039 = vadd.f32 %v911, %v1007
          %v1040 = vadd.f32 %v912, %v1008
          %v1041 = vadd.f32 %v913, %v1009
          %v1042 = vadd.f32 %v914, %v1010
          %v1043 = vadd.f32 %v915, %v1011
          %v1044 = vadd.f32 %v916, %v1012
          %v1045 = vadd.f32 %v917, %v1013
          %v1046 = vadd.f32 %v918, %v1014
          %v1047 = vadd.f32 %v919, %v1015
          %v1048 = vadd.f32 %v920, %v1016
          %v1049 = vadd.f32 %v921, %v1017
          %v1050 = vadd.f32 %v922, %v1018
          %v1051 = vadd.f32 %v923, %v1019
          %v1052 = vadd.f32 %v924, %v1020
          %v1053 = vadd.f32 %v925, %v1021
          %v1054 = vadd.f32 %v926, %v1022
          %v1055 = vadd.f32 %v927, %v1023
          %v1056 = vadd.f32 %v928, %v1024
          %v1057 = vmul.f32 %v1025, 0.7978846
          %v1058 = vmul.f32 %v1026, 0.7978846
          %v1059 = vmul.f32 %v1027, 0.7978846
          %v1060 = vmul.f32 %v1028, 0.7978846
          %v1061 = vmul.f32 %v1029, 0.7978846
          %v1062 = vmul.f32 %v1030, 0.7978846
          %v1063 = vmul.f32 %v1031, 0.7978846
          %v1064 = vmul.f32 %v1032, 0.7978846
          %v1065 = vmul.f32 %v1033, 0.7978846
          %v1066 = vmul.f32 %v1034, 0.7978846
          %v1067 = vmul.f32 %v1035, 0.7978846
          %v1068 = vmul.f32 %v1036, 0.7978846
          %v1069 = vmul.f32 %v1037, 0.7978846
          %v1070 = vmul.f32 %v1038, 0.7978846
          %v1071 = vmul.f32 %v1039, 0.7978846
          %v1072 = vmul.f32 %v1040, 0.7978846
          %v1073 = vmul.f32 %v1041, 0.7978846
          %v1074 = vmul.f32 %v1042, 0.7978846
          %v1075 = vmul.f32 %v1043, 0.7978846
          %v1076 = vmul.f32 %v1044, 0.7978846
          %v1077 = vmul.f32 %v1045, 0.7978846
          %v1078 = vmul.f32 %v1046, 0.7978846
          %v1079 = vmul.f32 %v1047, 0.7978846
          %v1080 = vmul.f32 %v1048, 0.7978846
          %v1081 = vmul.f32 %v1049, 0.7978846
          %v1082 = vmul.f32 %v1050, 0.7978846
          %v1083 = vmul.f32 %v1051, 0.7978846
          %v1084 = vmul.f32 %v1052, 0.7978846
          %v1085 = vmul.f32 %v1053, 0.7978846
          %v1086 = vmul.f32 %v1054, 0.7978846
          %v1087 = vmul.f32 %v1055, 0.7978846
          %v1088 = vmul.f32 %v1056, 0.7978846
          %v1089 = vtanh.pop %v1057
          %v1090 = vtanh.pop %v1058
          %v1091 = vtanh.pop %v1059
          %v1092 = vtanh.pop %v1060
          %v1093 = vtanh.pop %v1061
          %v1094 = vtanh.pop %v1062
          %v1095 = vtanh.pop %v1063
          %v1096 = vtanh.pop %v1064
          %v1097 = vtanh.pop %v1065
          %v1098 = vtanh.pop %v1066
          %v1099 = vtanh.pop %v1067
          %v1100 = vtanh.pop %v1068
          %v1101 = vtanh.pop %v1069
          %v1102 = vtanh.pop %v1070
          %v1103 = vtanh.pop %v1071
          %v1104 = vtanh.pop %v1072
          %v1105 = vtanh.pop %v1073
          %v1106 = vtanh.pop %v1074
          %v1107 = vtanh.pop %v1075
          %v1108 = vtanh.pop %v1076
          %v1109 = vtanh.pop %v1077
          %v1110 = vtanh.pop %v1078
          %v1111 = vtanh.pop %v1079
          %v1112 = vtanh.pop %v1080
          %v1113 = vtanh.pop %v1081
          %v1114 = vtanh.pop %v1082
          %v1115 = vtanh.pop %v1083
          %v1116 = vtanh.pop %v1084
          %v1117 = vtanh.pop %v1085
          %v1118 = vtanh.pop %v1086
          %v1119 = vtanh.pop %v1087
          %v1120 = vtanh.pop %v1088
          %v1121 = vadd.f32 %v1089, 1.0
          %v1122 = vadd.f32 %v1090, 1.0
          %v1123 = vadd.f32 %v1091, 1.0
          %v1124 = vadd.f32 %v1092, 1.0
          %v1125 = vadd.f32 %v1093, 1.0
          %v1126 = vadd.f32 %v1094, 1.0
          %v1127 = vadd.f32 %v1095, 1.0
          %v1128 = vadd.f32 %v1096, 1.0
          %v1129 = vadd.f32 %v1097, 1.0
          %v1130 = vadd.f32 %v1098, 1.0
          %v1131 = vadd.f32 %v1099, 1.0
          %v1132 = vadd.f32 %v1100, 1.0
          %v1133 = vadd.f32 %v1101, 1.0
          %v1134 = vadd.f32 %v1102, 1.0
          %v1135 = vadd.f32 %v1103, 1.0
          %v1136 = vadd.f32 %v1104, 1.0
          %v1137 = vadd.f32 %v1105, 1.0
          %v1138 = vadd.f32 %v1106, 1.0
          %v1139 = vadd.f32 %v1107, 1.0
          %v1140 = vadd.f32 %v1108, 1.0
          %v1141 = vadd.f32 %v1109, 1.0
          %v1142 = vadd.f32 %v1110, 1.0
          %v1143 = vadd.f32 %v1111, 1.0
          %v1144 = vadd.f32 %v1112, 1.0
          %v1145 = vadd.f32 %v1113, 1.0
          %v1146 = vadd.f32 %v1114, 1.0
          %v1147 = vadd.f32 %v1115, 1.0
          %v1148 = vadd.f32 %v1116, 1.0
          %v1149 = vadd.f32 %v1117, 1.0
          %v1150 = vadd.f32 %v1118, 1.0
          %v1151 = vadd.f32 %v1119, 1.0
          %v1152 = vadd.f32 %v1120, 1.0
          %v1153 = vmul.f32 %v1121, 0.5
          %v1154 = vmul.f32 %v1122, 0.5
          %v1155 = vmul.f32 %v1123, 0.5
          %v1156 = vmul.f32 %v1124, 0.5
          %v1157 = vmul.f32 %v1125, 0.5
          %v1158 = vmul.f32 %v1126, 0.5
          %v1159 = vmul.f32 %v1127, 0.5
          %v1160 = vmul.f32 %v1128, 0.5
          %v1161 = vmul.f32 %v1129, 0.5
          %v1162 = vmul.f32 %v1130, 0.5
          %v1163 = vmul.f32 %v1131, 0.5
          %v1164 = vmul.f32 %v1132, 0.5
          %v1165 = vmul.f32 %v1133, 0.5
          %v1166 = vmul.f32 %v1134, 0.5
          %v1167 = vmul.f32 %v1135, 0.5
          %v1168 = vmul.f32 %v1136, 0.5
          %v1169 = vmul.f32 %v1137, 0.5
          %v1170 = vmul.f32 %v1138, 0.5
          %v1171 = vmul.f32 %v1139, 0.5
          %v1172 = vmul.f32 %v1140, 0.5
          %v1173 = vmul.f32 %v1141, 0.5
          %v1174 = vmul.f32 %v1142, 0.5
          %v1175 = vmul.f32 %v1143, 0.5
          %v1176 = vmul.f32 %v1144, 0.5
          %v1177 = vmul.f32 %v1145, 0.5
          %v1178 = vmul.f32 %v1146, 0.5
          %v1179 = vmul.f32 %v1147, 0.5
          %v1180 = vmul.f32 %v1148, 0.5
          %v1181 = vmul.f32 %v1149, 0.5
          %v1182 = vmul.f32 %v1150, 0.5
          %v1183 = vmul.f32 %v1151, 0.5
          %v1184 = vmul.f32 %v1152, 0.5
          %v1185 = vmul.f32 %v897, %v1153
          %v1186 = vmul.f32 %v898, %v1154
          %v1187 = vmul.f32 %v899, %v1155
          %v1188 = vmul.f32 %v900, %v1156
          %v1189 = vmul.f32 %v901, %v1157
          %v1190 = vmul.f32 %v902, %v1158
          %v1191 = vmul.f32 %v903, %v1159
          %v1192 = vmul.f32 %v904, %v1160
          %v1193 = vmul.f32 %v905, %v1161
          %v1194 = vmul.f32 %v906, %v1162
          %v1195 = vmul.f32 %v907, %v1163
          %v1196 = vmul.f32 %v908, %v1164
          %v1197 = vmul.f32 %v909, %v1165
          %v1198 = vmul.f32 %v910, %v1166
          %v1199 = vmul.f32 %v911, %v1167
          %v1200 = vmul.f32 %v912, %v1168
          %v1201 = vmul.f32 %v913, %v1169
          %v1202 = vmul.f32 %v914, %v1170
          %v1203 = vmul.f32 %v915, %v1171
          %v1204 = vmul.f32 %v916, %v1172
          %v1205 = vmul.f32 %v917, %v1173
          %v1206 = vmul.f32 %v918, %v1174
          %v1207 = vmul.f32 %v919, %v1175
          %v1208 = vmul.f32 %v920, %v1176
          %v1209 = vmul.f32 %v921, %v1177
          %v1210 = vmul.f32 %v922, %v1178
          %v1211 = vmul.f32 %v923, %v1179
          %v1212 = vmul.f32 %v924, %v1180
          %v1213 = vmul.f32 %v925, %v1181
          %v1214 = vmul.f32 %v926, %v1182
          %v1215 = vmul.f32 %v927, %v1183
          %v1216 = vmul.f32 %v928, %v1184
          %s1217 = smul.u32 %s26, 256
          %s1218 = scalar_lea.vmem [#allocation2], %s1217
          %1219 = vst [vmem:[%s1218] sm:$0xff] %v1185
          %1220 = vst [vmem:[%s1218 + $0x8] sm:$0xff] %v1186
          %1221 = vst [vmem:[%s1218 + $0x10] sm:$0xff] %v1187
          %1222 = vst [vmem:[%s1218 + $0x18] sm:$0xff] %v1188
          %1223 = vst [vmem:[%s1218 + $0x20] sm:$0xff] %v1189
          %1224 = vst [vmem:[%s1218 + $0x28] sm:$0xff] %v1190
          %1225 = vst [vmem:[%s1218 + $0x30] sm:$0xff] %v1191
          %1226 = vst [vmem:[%s1218 + $0x38] sm:$0xff] %v1192
          %1227 = vst [vmem:[%s1218 + $0x40] sm:$0xff] %v1193
          %1228 = vst [vmem:[%s1218 + $0x48] sm:$0xff] %v1194
          %1229 = vst [vmem:[%s1218 + $0x50] sm:$0xff] %v1195
          %1230 = vst [vmem:[%s1218 + $0x58] sm:$0xff] %v1196
          %1231 = vst [vmem:[%s1218 + $0x60] sm:$0xff] %v1197
          %1232 = vst [vmem:[%s1218 + $0x68] sm:$0xff] %v1198
          %1233 = vst [vmem:[%s1218 + $0x70] sm:$0xff] %v1199
          %1234 = vst [vmem:[%s1218 + $0x78] sm:$0xff] %v1200
          %1235 = vst [vmem:[%s1218 + $0x80] sm:$0xff] %v1201
          %1236 = vst [vmem:[%s1218 + $0x88] sm:$0xff] %v1202
          %1237 = vst [vmem:[%s1218 + $0x90] sm:$0xff] %v1203
          %1238 = vst [vmem:[%s1218 + $0x98] sm:$0xff] %v1204
          %1239 = vst [vmem:[%s1218 + $0xa0] sm:$0xff] %v1205
          %1240 = vst [vmem:[%s1218 + $0xa8] sm:$0xff] %v1206
          %1241 = vst [vmem:[%s1218 + $0xb0] sm:$0xff] %v1207
          %1242 = vst [vmem:[%s1218 + $0xb8] sm:$0xff] %v1208
          %1243 = vst [vmem:[%s1218 + $0xc0] sm:$0xff] %v1209
          %1244 = vst [vmem:[%s1218 + $0xc8] sm:$0xff] %v1210
          %1245 = vst [vmem:[%s1218 + $0xd0] sm:$0xff] %v1211
          %1246 = vst [vmem:[%s1218 + $0xd8] sm:$0xff] %v1212
          %1247 = vst [vmem:[%s1218 + $0xe0] sm:$0xff] %v1213
          %1248 = vst [vmem:[%s1218 + $0xe8] sm:$0xff] %v1214
          %1249 = vst [vmem:[%s1218 + $0xf0] sm:$0xff] %v1215
          %1250 = vst [vmem:[%s1218 + $0xf8] sm:$0xff] %v1216
          %v1251 = vld [vmem:[#allocation3] sm:$0xff]
          %v1252 = vld [vmem:[#allocation3 + $0x8] sm:$0xff]
          %v1253 = vld [vmem:[#allocation3 + $0x10] sm:$0xff]
          %v1254 = vld [vmem:[#allocation3 + $0x18] sm:$0xff]
          %v1255 = vld [vmem:[#allocation3 + $0x20] sm:$0xff]
          %v1256 = vld [vmem:[#allocation3 + $0x28] sm:$0xff]
          %v1257 = vld [vmem:[#allocation3 + $0x30] sm:$0xff]
          %v1258 = vld [vmem:[#allocation3 + $0x38] sm:$0xff]
          %v1259 = vld [vmem:[#allocation3 + $0x40] sm:$0xff]
          %v1260 = vld [vmem:[#allocation3 + $0x48] sm:$0xff]
          %v1261 = vld [vmem:[#allocation3 + $0x50] sm:$0xff]
          %v1262 = vld [vmem:[#allocation3 + $0x58] sm:$0xff]
          %v1263 = vld [vmem:[#allocation3 + $0x60] sm:$0xff]
          %v1264 = vld [vmem:[#allocation3 + $0x68] sm:$0xff]
          %v1265 = vld [vmem:[#allocation3 + $0x70] sm:$0xff]
          %v1266 = vld [vmem:[#allocation3 + $0x78] sm:$0xff]
          %v1267 = vld [vmem:[#allocation3 + $0x80] sm:$0xff]
          %v1268 = vld [vmem:[#allocation3 + $0x88] sm:$0xff]
          %v1269 = vld [vmem:[#allocation3 + $0x90] sm:$0xff]
          %v1270 = vld [vmem:[#allocation3 + $0x98] sm:$0xff]
          %v1271 = vld [vmem:[#allocation3 + $0xa0] sm:$0xff]
          %v1272 = vld [vmem:[#allocation3 + $0xa8] sm:$0xff]
          %v1273 = vld [vmem:[#allocation3 + $0xb0] sm:$0xff]
          %v1274 = vld [vmem:[#allocation3 + $0xb8] sm:$0xff]
          %v1275 = vld [vmem:[#allocation3 + $0xc0] sm:$0xff]
          %v1276 = vld [vmem:[#allocation3 + $0xc8] sm:$0xff]
          %v1277 = vld [vmem:[#allocation3 + $0xd0] sm:$0xff]
          %v1278 = vld [vmem:[#allocation3 + $0xd8] sm:$0xff]
          %v1279 = vld [vmem:[#allocation3 + $0xe0] sm:$0xff]
          %v1280 = vld [vmem:[#allocation3 + $0xe8] sm:$0xff]
          %v1281 = vld [vmem:[#allocation3 + $0xf0] sm:$0xff]
          %v1282 = vld [vmem:[#allocation3 + $0xf8] sm:$0xff]
          %v1283 = vand.u32 2147483647, %v1185
          %v1284 = vand.u32 2147483647, %v1186
          %v1285 = vand.u32 2147483647, %v1187
          %v1286 = vand.u32 2147483647, %v1188
          %v1287 = vand.u32 2147483647, %v1189
          %v1288 = vand.u32 2147483647, %v1190
          %v1289 = vand.u32 2147483647, %v1191
          %v1290 = vand.u32 2147483647, %v1192
          %v1291 = vand.u32 2147483647, %v1193
          %v1292 = vand.u32 2147483647, %v1194
          %v1293 = vand.u32 2147483647, %v1195
          %v1294 = vand.u32 2147483647, %v1196
          %v1295 = vand.u32 2147483647, %v1197
          %v1296 = vand.u32 2147483647, %v1198
          %v1297 = vand.u32 2147483647, %v1199
          %v1298 = vand.u32 2147483647, %v1200
          %v1299 = vand.u32 2147483647, %v1201
          %v1300 = vand.u32 2147483647, %v1202
          %v1301 = vand.u32 2147483647, %v1203
          %v1302 = vand.u32 2147483647, %v1204
          %v1303 = vand.u32 2147483647, %v1205
          %v1304 = vand.u32 2147483647, %v1206
          %v1305 = vand.u32 2147483647, %v1207
          %v1306 = vand.u32 2147483647, %v1208
          %v1307 = vand.u32 2147483647, %v1209
          %v1308 = vand.u32 2147483647, %v1210
          %v1309 = vand.u32 2147483647, %v1211
          %v1310 = vand.u32 2147483647, %v1212
          %v1311 = vand.u32 2147483647, %v1213
          %v1312 = vand.u32 2147483647, %v1214
          %v1313 = vand.u32 2147483647, %v1215
          %v1314 = vand.u32 2147483647, %v1216
          %1315 = vmax.xlane.f32.xlu0 %v1283
          %v1316 = vpop.xlane.xlu0 %1315
          %1317 = vmax.xlane.f32.xlu0 %v1284
          %v1318 = vpop.xlane.xlu0 %1317
          %1319 = vmax.xlane.f32.xlu0 %v1285
          %v1320 = vpop.xlane.xlu0 %1319
          %1321 = vmax.xlane.f32.xlu0 %v1286
          %v1322 = vpop.xlane.xlu0 %1321
          %1323 = vmax.xlane.f32.xlu0 %v1287
          %v1324 = vpop.xlane.xlu0 %1323
          %1325 = vmax.xlane.f32.xlu0 %v1288
          %v1326 = vpop.xlane.xlu0 %1325
          %1327 = vmax.xlane.f32.xlu0 %v1289
          %v1328 = vpop.xlane.xlu0 %1327
          %1329 = vmax.xlane.f32.xlu0 %v1290
          %v1330 = vpop.xlane.xlu0 %1329
          %1331 = vmax.xlane.f32.xlu0 %v1291
          %v1332 = vpop.xlane.xlu0 %1331
          %1333 = vmax.xlane.f32.xlu0 %v1292
          %v1334 = vpop.xlane.xlu0 %1333
          %1335 = vmax.xlane.f32.xlu0 %v1293
          %v1336 = vpop.xlane.xlu0 %1335
          %1337 = vmax.xlane.f32.xlu0 %v1294
          %v1338 = vpop.xlane.xlu0 %1337
          %1339 = vmax.xlane.f32.xlu0 %v1295
          %v1340 = vpop.xlane.xlu0 %1339
          %1341 = vmax.xlane.f32.xlu0 %v1296
          %v1342 = vpop.xlane.xlu0 %1341
          %1343 = vmax.xlane.f32.xlu0 %v1297
          %v1344 = vpop.xlane.xlu0 %1343
          %1345 = vmax.xlane.f32.xlu0 %v1298
          %v1346 = vpop.xlane.xlu0 %1345
          %1347 = vmax.xlane.f32.xlu0 %v1299
          %v1348 = vpop.xlane.xlu0 %1347
          %1349 = vmax.xlane.f32.xlu0 %v1300
          %v1350 = vpop.xlane.xlu0 %1349
          %1351 = vmax.xlane.f32.xlu0 %v1301
          %v1352 = vpop.xlane.xlu0 %1351
          %1353 = vmax.xlane.f32.xlu0 %v1302
          %v1354 = vpop.xlane.xlu0 %1353
          %1355 = vmax.xlane.f32.xlu0 %v1303
          %v1356 = vpop.xlane.xlu0 %1355
          %1357 = vmax.xlane.f32.xlu0 %v1304
          %v1358 = vpop.xlane.xlu0 %1357
          %1359 = vmax.xlane.f32.xlu0 %v1305
          %v1360 = vpop.xlane.xlu0 %1359
          %1361 = vmax.xlane.f32.xlu0 %v1306
          %v1362 = vpop.xlane.xlu0 %1361
          %1363 = vmax.xlane.f32.xlu0 %v1307
          %v1364 = vpop.xlane.xlu0 %1363
          %1365 = vmax.xlane.f32.xlu0 %v1308
          %v1366 = vpop.xlane.xlu0 %1365
          %1367 = vmax.xlane.f32.xlu0 %v1309
          %v1368 = vpop.xlane.xlu0 %1367
          %1369 = vmax.xlane.f32.xlu0 %v1310
          %v1370 = vpop.xlane.xlu0 %1369
          %1371 = vmax.xlane.f32.xlu0 %v1311
          %v1372 = vpop.xlane.xlu0 %1371
          %1373 = vmax.xlane.f32.xlu0 %v1312
          %v1374 = vpop.xlane.xlu0 %1373
          %1375 = vmax.xlane.f32.xlu0 %v1313
          %v1376 = vpop.xlane.xlu0 %1375
          %1377 = vmax.xlane.f32.xlu0 %v1314
          %v1378 = vpop.xlane.xlu0 %1377
          %v1379 = vmax.f32 %v1251, %v1316
          %v1380 = vmax.f32 %v1252, %v1318
          %v1381 = vmax.f32 %v1253, %v1320
          %v1382 = vmax.f32 %v1254, %v1322
          %v1383 = vmax.f32 %v1255, %v1324
          %v1384 = vmax.f32 %v1256, %v1326
          %v1385 = vmax.f32 %v1257, %v1328
          %v1386 = vmax.f32 %v1258, %v1330
          %v1387 = vmax.f32 %v1259, %v1332
          %v1388 = vmax.f32 %v1260, %v1334
          %v1389 = vmax.f32 %v1261, %v1336
          %v1390 = vmax.f32 %v1262, %v1338
          %v1391 = vmax.f32 %v1263, %v1340
          %v1392 = vmax.f32 %v1264, %v1342
          %v1393 = vmax.f32 %v1265, %v1344
          %v1394 = vmax.f32 %v1266, %v1346
          %v1395 = vmax.f32 %v1267, %v1348
          %v1396 = vmax.f32 %v1268, %v1350
          %v1397 = vmax.f32 %v1269, %v1352
          %v1398 = vmax.f32 %v1270, %v1354
          %v1399 = vmax.f32 %v1271, %v1356
          %v1400 = vmax.f32 %v1272, %v1358
          %v1401 = vmax.f32 %v1273, %v1360
          %v1402 = vmax.f32 %v1274, %v1362
          %v1403 = vmax.f32 %v1275, %v1364
          %v1404 = vmax.f32 %v1276, %v1366
          %v1405 = vmax.f32 %v1277, %v1368
          %v1406 = vmax.f32 %v1278, %v1370
          %v1407 = vmax.f32 %v1279, %v1372
          %v1408 = vmax.f32 %v1280, %v1374
          %v1409 = vmax.f32 %v1281, %v1376
          %v1410 = vmax.f32 %v1282, %v1378
          %vm1411 = vcmask 7168
          %1412 = vst.msk [vmem:[#allocation3] sm:$0xff] %vm1411, %v1379
          %1413 = vst.msk [vmem:[#allocation3 + $0x8] sm:$0xff] %vm1411, %v1380
          %1414 = vst.msk [vmem:[#allocation3 + $0x10] sm:$0xff] %vm1411, %v1381
          %1415 = vst.msk [vmem:[#allocation3 + $0x18] sm:$0xff] %vm1411, %v1382
          %1416 = vst.msk [vmem:[#allocation3 + $0x20] sm:$0xff] %vm1411, %v1383
          %1417 = vst.msk [vmem:[#allocation3 + $0x28] sm:$0xff] %vm1411, %v1384
          %1418 = vst.msk [vmem:[#allocation3 + $0x30] sm:$0xff] %vm1411, %v1385
          %1419 = vst.msk [vmem:[#allocation3 + $0x38] sm:$0xff] %vm1411, %v1386
          %1420 = vst.msk [vmem:[#allocation3 + $0x40] sm:$0xff] %vm1411, %v1387
          %1421 = vst.msk [vmem:[#allocation3 + $0x48] sm:$0xff] %vm1411, %v1388
          %1422 = vst.msk [vmem:[#allocation3 + $0x50] sm:$0xff] %vm1411, %v1389
          %1423 = vst.msk [vmem:[#allocation3 + $0x58] sm:$0xff] %vm1411, %v1390
          %1424 = vst.msk [vmem:[#allocation3 + $0x60] sm:$0xff] %vm1411, %v1391
          %1425 = vst.msk [vmem:[#allocation3 + $0x68] sm:$0xff] %vm1411, %v1392
          %1426 = vst.msk [vmem:[#allocation3 + $0x70] sm:$0xff] %vm1411, %v1393
          %1427 = vst.msk [vmem:[#allocation3 + $0x78] sm:$0xff] %vm1411, %v1394
          %1428 = vst.msk [vmem:[#allocation3 + $0x80] sm:$0xff] %vm1411, %v1395
          %1429 = vst.msk [vmem:[#allocation3 + $0x88] sm:$0xff] %vm1411, %v1396
          %1430 = vst.msk [vmem:[#allocation3 + $0x90] sm:$0xff] %vm1411, %v1397
          %1431 = vst.msk [vmem:[#allocation3 + $0x98] sm:$0xff] %vm1411, %v1398
          %1432 = vst.msk [vmem:[#allocation3 + $0xa0] sm:$0xff] %vm1411, %v1399
          %1433 = vst.msk [vmem:[#allocation3 + $0xa8] sm:$0xff] %vm1411, %v1400
          %1434 = vst.msk [vmem:[#allocation3 + $0xb0] sm:$0xff] %vm1411, %v1401
          %1435 = vst.msk [vmem:[#allocation3 + $0xb8] sm:$0xff] %vm1411, %v1402
          %1436 = vst.msk [vmem:[#allocation3 + $0xc0] sm:$0xff] %vm1411, %v1403
          %1437 = vst.msk [vmem:[#allocation3 + $0xc8] sm:$0xff] %vm1411, %v1404
          %1438 = vst.msk [vmem:[#allocation3 + $0xd0] sm:$0xff] %vm1411, %v1405
          %1439 = vst.msk [vmem:[#allocation3 + $0xd8] sm:$0xff] %vm1411, %v1406
          %1440 = vst.msk [vmem:[#allocation3 + $0xe0] sm:$0xff] %vm1411, %v1407
          %1441 = vst.msk [vmem:[#allocation3 + $0xe8] sm:$0xff] %vm1411, %v1408
          %1442 = vst.msk [vmem:[#allocation3 + $0xf0] sm:$0xff] %vm1411, %v1409
          %1443 = vst.msk [vmem:[#allocation3 + $0xf8] sm:$0xff] %vm1411, %v1410
        $region90: #{tpu_custom_call.1} parent=77 // pred_fallthru
          _
        %p1444 = scmp.eq.s32.totalorder %s25, 1
        // Predicated region
        $region95: #{tpu_custom_call.1} parent=77 // pred_check
          %p1445 = pneg %p1444
        $region96: #{tpu_custom_call.1} parent=77 // pred_check_branch
          %1447 = sbr.rel (%p1445) target = $region98
        $region97: #{tpu_custom_call.1} parent=77 // pred_region
          %p1448 = scmp.eq.s32.totalorder %s26, 0
          // Predicated region
          $region99: #{tpu_custom_call.1} parent=97 // pred_check
            %p1449 = pneg %p1448
          $region100: #{tpu_custom_call.1} parent=97 // pred_check_branch
            %1451 = sbr.rel (%p1449) target = $region102
          $region101: #{tpu_custom_call.1} parent=97 // pred_region
            %1452 = vst [vmem:[#allocation4] sm:$0xff] 0.0
            %1453 = vst [vmem:[#allocation4 + $0x8] sm:$0xff] 0.0
            %1454 = vst [vmem:[#allocation4 + $0x10] sm:$0xff] 0.0
            %1455 = vst [vmem:[#allocation4 + $0x18] sm:$0xff] 0.0
            %1456 = vst [vmem:[#allocation4 + $0x20] sm:$0xff] 0.0
            %1457 = vst [vmem:[#allocation4 + $0x28] sm:$0xff] 0.0
            %1458 = vst [vmem:[#allocation4 + $0x30] sm:$0xff] 0.0
            %1459 = vst [vmem:[#allocation4 + $0x38] sm:$0xff] 0.0
            %1460 = vst [vmem:[#allocation4 + $0x40] sm:$0xff] 0.0
            %1461 = vst [vmem:[#allocation4 + $0x48] sm:$0xff] 0.0
            %1462 = vst [vmem:[#allocation4 + $0x50] sm:$0xff] 0.0
            %1463 = vst [vmem:[#allocation4 + $0x58] sm:$0xff] 0.0
            %1464 = vst [vmem:[#allocation4 + $0x60] sm:$0xff] 0.0
            %1465 = vst [vmem:[#allocation4 + $0x68] sm:$0xff] 0.0
            %1466 = vst [vmem:[#allocation4 + $0x70] sm:$0xff] 0.0
            %1467 = vst [vmem:[#allocation4 + $0x78] sm:$0xff] 0.0
            %1468 = vst [vmem:[#allocation4 + $0x80] sm:$0xff] 0.0
            %1469 = vst [vmem:[#allocation4 + $0x88] sm:$0xff] 0.0
            %1470 = vst [vmem:[#allocation4 + $0x90] sm:$0xff] 0.0
            %1471 = vst [vmem:[#allocation4 + $0x98] sm:$0xff] 0.0
            %1472 = vst [vmem:[#allocation4 + $0xa0] sm:$0xff] 0.0
            %1473 = vst [vmem:[#allocation4 + $0xa8] sm:$0xff] 0.0
            %1474 = vst [vmem:[#allocation4 + $0xb0] sm:$0xff] 0.0
            %1475 = vst [vmem:[#allocation4 + $0xb8] sm:$0xff] 0.0
            %1476 = vst [vmem:[#allocation4 + $0xc0] sm:$0xff] 0.0
            %1477 = vst [vmem:[#allocation4 + $0xc8] sm:$0xff] 0.0
            %1478 = vst [vmem:[#allocation4 + $0xd0] sm:$0xff] 0.0
            %1479 = vst [vmem:[#allocation4 + $0xd8] sm:$0xff] 0.0
            %1480 = vst [vmem:[#allocation4 + $0xe0] sm:$0xff] 0.0
            %1481 = vst [vmem:[#allocation4 + $0xe8] sm:$0xff] 0.0
            %1482 = vst [vmem:[#allocation4 + $0xf0] sm:$0xff] 0.0
            %1483 = vst [vmem:[#allocation4 + $0xf8] sm:$0xff] 0.0
          $region102: #{tpu_custom_call.1} parent=97 // pred_fallthru
            _
          %v1484 = vld [vmem:[#allocation3] sm:$0xff]
          %v1485 = vld [vmem:[#allocation3 + $0x8] sm:$0xff]
          %v1486 = vld [vmem:[#allocation3 + $0x10] sm:$0xff]
          %v1487 = vld [vmem:[#allocation3 + $0x18] sm:$0xff]
          %v1488 = vld [vmem:[#allocation3 + $0x20] sm:$0xff]
          %v1489 = vld [vmem:[#allocation3 + $0x28] sm:$0xff]
          %v1490 = vld [vmem:[#allocation3 + $0x30] sm:$0xff]
          %v1491 = vld [vmem:[#allocation3 + $0x38] sm:$0xff]
          %v1492 = vld [vmem:[#allocation3 + $0x40] sm:$0xff]
          %v1493 = vld [vmem:[#allocation3 + $0x48] sm:$0xff]
          %v1494 = vld [vmem:[#allocation3 + $0x50] sm:$0xff]
          %v1495 = vld [vmem:[#allocation3 + $0x58] sm:$0xff]
          %v1496 = vld [vmem:[#allocation3 + $0x60] sm:$0xff]
          %v1497 = vld [vmem:[#allocation3 + $0x68] sm:$0xff]
          %v1498 = vld [vmem:[#allocation3 + $0x70] sm:$0xff]
          %v1499 = vld [vmem:[#allocation3 + $0x78] sm:$0xff]
          %v1500 = vld [vmem:[#allocation3 + $0x80] sm:$0xff]
          %v1501 = vld [vmem:[#allocation3 + $0x88] sm:$0xff]
          %v1502 = vld [vmem:[#allocation3 + $0x90] sm:$0xff]
          %v1503 = vld [vmem:[#allocation3 + $0x98] sm:$0xff]
          %v1504 = vld [vmem:[#allocation3 + $0xa0] sm:$0xff]
          %v1505 = vld [vmem:[#allocation3 + $0xa8] sm:$0xff]
          %v1506 = vld [vmem:[#allocation3 + $0xb0] sm:$0xff]
          %v1507 = vld [vmem:[#allocation3 + $0xb8] sm:$0xff]
          %v1508 = vld [vmem:[#allocation3 + $0xc0] sm:$0xff]
          %v1509 = vld [vmem:[#allocation3 + $0xc8] sm:$0xff]
          %v1510 = vld [vmem:[#allocation3 + $0xd0] sm:$0xff]
          %v1511 = vld [vmem:[#allocation3 + $0xd8] sm:$0xff]
          %v1512 = vld [vmem:[#allocation3 + $0xe0] sm:$0xff]
          %v1513 = vld [vmem:[#allocation3 + $0xe8] sm:$0xff]
          %v1514 = vld [vmem:[#allocation3 + $0xf0] sm:$0xff]
          %v1515 = vld [vmem:[#allocation3 + $0xf8] sm:$0xff]
          %v1516 = vmax.f32 %v1484, 1e-08
          %v1517 = vmax.f32 %v1485, 1e-08
          %v1518 = vmax.f32 %v1486, 1e-08
          %v1519 = vmax.f32 %v1487, 1e-08
          %v1520 = vmax.f32 %v1488, 1e-08
          %v1521 = vmax.f32 %v1489, 1e-08
          %v1522 = vmax.f32 %v1490, 1e-08
          %v1523 = vmax.f32 %v1491, 1e-08
          %v1524 = vmax.f32 %v1492, 1e-08
          %v1525 = vmax.f32 %v1493, 1e-08
          %v1526 = vmax.f32 %v1494, 1e-08
          %v1527 = vmax.f32 %v1495, 1e-08
          %v1528 = vmax.f32 %v1496, 1e-08
          %v1529 = vmax.f32 %v1497, 1e-08
          %v1530 = vmax.f32 %v1498, 1e-08
          %v1531 = vmax.f32 %v1499, 1e-08
          %v1532 = vmax.f32 %v1500, 1e-08
          %v1533 = vmax.f32 %v1501, 1e-08
          %v1534 = vmax.f32 %v1502, 1e-08
          %v1535 = vmax.f32 %v1503, 1e-08
          %v1536 = vmax.f32 %v1504, 1e-08
          %v1537 = vmax.f32 %v1505, 1e-08
          %v1538 = vmax.f32 %v1506, 1e-08
          %v1539 = vmax.f32 %v1507, 1e-08
          %v1540 = vmax.f32 %v1508, 1e-08
          %v1541 = vmax.f32 %v1509, 1e-08
          %v1542 = vmax.f32 %v1510, 1e-08
          %v1543 = vmax.f32 %v1511, 1e-08
          %v1544 = vmax.f32 %v1512, 1e-08
          %v1545 = vmax.f32 %v1513, 1e-08
          %v1546 = vmax.f32 %v1514, 1e-08
          %v1547 = vmax.f32 %v1515, 1e-08
          %v1548 = vrcp.pop %v1516
          %v1549 = vrcp.pop %v1517
          %v1550 = vrcp.pop %v1518
          %v1551 = vrcp.pop %v1519
          %v1552 = vrcp.pop %v1520
          %v1553 = vrcp.pop %v1521
          %v1554 = vrcp.pop %v1522
          %v1555 = vrcp.pop %v1523
          %v1556 = vrcp.pop %v1524
          %v1557 = vrcp.pop %v1525
          %v1558 = vrcp.pop %v1526
          %v1559 = vrcp.pop %v1527
          %v1560 = vrcp.pop %v1528
          %v1561 = vrcp.pop %v1529
          %v1562 = vrcp.pop %v1530
          %v1563 = vrcp.pop %v1531
          %v1564 = vrcp.pop %v1532
          %v1565 = vrcp.pop %v1533
          %v1566 = vrcp.pop %v1534
          %v1567 = vrcp.pop %v1535
          %v1568 = vrcp.pop %v1536
          %v1569 = vrcp.pop %v1537
          %v1570 = vrcp.pop %v1538
          %v1571 = vrcp.pop %v1539
          %v1572 = vrcp.pop %v1540
          %v1573 = vrcp.pop %v1541
          %v1574 = vrcp.pop %v1542
          %v1575 = vrcp.pop %v1543
          %v1576 = vrcp.pop %v1544
          %v1577 = vrcp.pop %v1545
          %v1578 = vrcp.pop %v1546
          %v1579 = vrcp.pop %v1547
          %v1580 = vmul.f32 %v1548, 127.0
          %v1581 = vmul.f32 %v1549, 127.0
          %v1582 = vmul.f32 %v1550, 127.0
          %v1583 = vmul.f32 %v1551, 127.0
          %v1584 = vmul.f32 %v1552, 127.0
          %v1585 = vmul.f32 %v1553, 127.0
          %v1586 = vmul.f32 %v1554, 127.0
          %v1587 = vmul.f32 %v1555, 127.0
          %v1588 = vmul.f32 %v1556, 127.0
          %v1589 = vmul.f32 %v1557, 127.0
          %v1590 = vmul.f32 %v1558, 127.0
          %v1591 = vmul.f32 %v1559, 127.0
          %v1592 = vmul.f32 %v1560, 127.0
          %v1593 = vmul.f32 %v1561, 127.0
          %v1594 = vmul.f32 %v1562, 127.0
          %v1595 = vmul.f32 %v1563, 127.0
          %v1596 = vmul.f32 %v1564, 127.0
          %v1597 = vmul.f32 %v1565, 127.0
          %v1598 = vmul.f32 %v1566, 127.0
          %v1599 = vmul.f32 %v1567, 127.0
          %v1600 = vmul.f32 %v1568, 127.0
          %v1601 = vmul.f32 %v1569, 127.0
          %v1602 = vmul.f32 %v1570, 127.0
          %v1603 = vmul.f32 %v1571, 127.0
          %v1604 = vmul.f32 %v1572, 127.0
          %v1605 = vmul.f32 %v1573, 127.0
          %v1606 = vmul.f32 %v1574, 127.0
          %v1607 = vmul.f32 %v1575, 127.0
          %v1608 = vmul.f32 %v1576, 127.0
          %v1609 = vmul.f32 %v1577, 127.0
          %v1610 = vmul.f32 %v1578, 127.0
          %v1611 = vmul.f32 %v1579, 127.0
          %s1612 = smul.u32 %s26, 256
          %s1613 = scalar_lea.vmem [#allocation2], %s1612
          %v1614 = vld [vmem:[%s1613] sm:$0xff]
          %v1615 = vld [vmem:[%s1613 + $0x8] sm:$0xff]
          %v1616 = vld [vmem:[%s1613 + $0x10] sm:$0xff]
          %v1617 = vld [vmem:[%s1613 + $0x18] sm:$0xff]
          %v1618 = vld [vmem:[%s1613 + $0x20] sm:$0xff]
          %v1619 = vld [vmem:[%s1613 + $0x28] sm:$0xff]
          %v1620 = vld [vmem:[%s1613 + $0x30] sm:$0xff]
          %v1621 = vld [vmem:[%s1613 + $0x38] sm:$0xff]
          %v1622 = vld [vmem:[%s1613 + $0x40] sm:$0xff]
          %v1623 = vld [vmem:[%s1613 + $0x48] sm:$0xff]
          %v1624 = vld [vmem:[%s1613 + $0x50] sm:$0xff]
          %v1625 = vld [vmem:[%s1613 + $0x58] sm:$0xff]
          %v1626 = vld [vmem:[%s1613 + $0x60] sm:$0xff]
          %v1627 = vld [vmem:[%s1613 + $0x68] sm:$0xff]
          %v1628 = vld [vmem:[%s1613 + $0x70] sm:$0xff]
          %v1629 = vld [vmem:[%s1613 + $0x78] sm:$0xff]
          %v1630 = vld [vmem:[%s1613 + $0x80] sm:$0xff]
          %v1631 = vld [vmem:[%s1613 + $0x88] sm:$0xff]
          %v1632 = vld [vmem:[%s1613 + $0x90] sm:$0xff]
          %v1633 = vld [vmem:[%s1613 + $0x98] sm:$0xff]
          %v1634 = vld [vmem:[%s1613 + $0xa0] sm:$0xff]
          %v1635 = vld [vmem:[%s1613 + $0xa8] sm:$0xff]
          %v1636 = vld [vmem:[%s1613 + $0xb0] sm:$0xff]
          %v1637 = vld [vmem:[%s1613 + $0xb8] sm:$0xff]
          %v1638 = vld [vmem:[%s1613 + $0xc0] sm:$0xff]
          %v1639 = vld [vmem:[%s1613 + $0xc8] sm:$0xff]
          %v1640 = vld [vmem:[%s1613 + $0xd0] sm:$0xff]
          %v1641 = vld [vmem:[%s1613 + $0xd8] sm:$0xff]
          %v1642 = vld [vmem:[%s1613 + $0xe0] sm:$0xff]
          %v1643 = vld [vmem:[%s1613 + $0xe8] sm:$0xff]
          %v1644 = vld [vmem:[%s1613 + $0xf0] sm:$0xff]
          %v1645 = vld [vmem:[%s1613 + $0xf8] sm:$0xff]
          %1647 = vset.pattern.permute.xlu0 0
          %1648 = vperm.xlu0 %1647, %v1580
          %v1649 = vpop.permute.xlu0 %1648
          %1652 = vset.pattern.permute.xlu0 0
          %1653 = vperm.xlu0 %1652, %v1581
          %v1654 = vpop.permute.xlu0 %1653
          %1657 = vset.pattern.permute.xlu0 0
          %1658 = vperm.xlu0 %1657, %v1582
          %v1659 = vpop.permute.xlu0 %1658
          %1662 = vset.pattern.permute.xlu0 0
          %1663 = vperm.xlu0 %1662, %v1583
          %v1664 = vpop.permute.xlu0 %1663
          %1667 = vset.pattern.permute.xlu0 0
          %1668 = vperm.xlu0 %1667, %v1584
          %v1669 = vpop.permute.xlu0 %1668
          %1672 = vset.pattern.permute.xlu0 0
          %1673 = vperm.xlu0 %1672, %v1585
          %v1674 = vpop.permute.xlu0 %1673
          %1677 = vset.pattern.permute.xlu0 0
          %1678 = vperm.xlu0 %1677, %v1586
          %v1679 = vpop.permute.xlu0 %1678
          %1682 = vset.pattern.permute.xlu0 0
          %1683 = vperm.xlu0 %1682, %v1587
          %v1684 = vpop.permute.xlu0 %1683
          %1687 = vset.pattern.permute.xlu0 0
          %1688 = vperm.xlu0 %1687, %v1588
          %v1689 = vpop.permute.xlu0 %1688
          %1692 = vset.pattern.permute.xlu0 0
          %1693 = vperm.xlu0 %1692, %v1589
          %v1694 = vpop.permute.xlu0 %1693
          %1697 = vset.pattern.permute.xlu0 0
          %1698 = vperm.xlu0 %1697, %v1590
          %v1699 = vpop.permute.xlu0 %1698
          %1702 = vset.pattern.permute.xlu0 0
          %1703 = vperm.xlu0 %1702, %v1591
          %v1704 = vpop.permute.xlu0 %1703
          %1707 = vset.pattern.permute.xlu0 0
          %1708 = vperm.xlu0 %1707, %v1592
          %v1709 = vpop.permute.xlu0 %1708
          %1712 = vset.pattern.permute.xlu0 0
          %1713 = vperm.xlu0 %1712, %v1593
          %v1714 = vpop.permute.xlu0 %1713
          %1717 = vset.pattern.permute.xlu0 0
          %1718 = vperm.xlu0 %1717, %v1594
          %v1719 = vpop.permute.xlu0 %1718
          %1722 = vset.pattern.permute.xlu0 0
          %1723 = vperm.xlu0 %1722, %v1595
          %v1724 = vpop.permute.xlu0 %1723
          %1727 = vset.pattern.permute.xlu0 0
          %1728 = vperm.xlu0 %1727, %v1596
          %v1729 = vpop.permute.xlu0 %1728
          %1732 = vset.pattern.permute.xlu0 0
          %1733 = vperm.xlu0 %1732, %v1597
          %v1734 = vpop.permute.xlu0 %1733
          %1737 = vset.pattern.permute.xlu0 0
          %1738 = vperm.xlu0 %1737, %v1598
          %v1739 = vpop.permute.xlu0 %1738
          %1742 = vset.pattern.permute.xlu0 0
          %1743 = vperm.xlu0 %1742, %v1599
          %v1744 = vpop.permute.xlu0 %1743
          %1747 = vset.pattern.permute.xlu0 0
          %1748 = vperm.xlu0 %1747, %v1600
          %v1749 = vpop.permute.xlu0 %1748
          %1752 = vset.pattern.permute.xlu0 0
          %1753 = vperm.xlu0 %1752, %v1601
          %v1754 = vpop.permute.xlu0 %1753
          %1757 = vset.pattern.permute.xlu0 0
          %1758 = vperm.xlu0 %1757, %v1602
          %v1759 = vpop.permute.xlu0 %1758
          %1762 = vset.pattern.permute.xlu0 0
          %1763 = vperm.xlu0 %1762, %v1603
          %v1764 = vpop.permute.xlu0 %1763
          %1767 = vset.pattern.permute.xlu0 0
          %1768 = vperm.xlu0 %1767, %v1604
          %v1769 = vpop.permute.xlu0 %1768
          %1772 = vset.pattern.permute.xlu0 0
          %1773 = vperm.xlu0 %1772, %v1605
          %v1774 = vpop.permute.xlu0 %1773
          %1777 = vset.pattern.permute.xlu0 0
          %1778 = vperm.xlu0 %1777, %v1606
          %v1779 = vpop.permute.xlu0 %1778
          %1782 = vset.pattern.permute.xlu0 0
          %1783 = vperm.xlu0 %1782, %v1607
          %v1784 = vpop.permute.xlu0 %1783
          %1787 = vset.pattern.permute.xlu0 0
          %1788 = vperm.xlu0 %1787, %v1608
          %v1789 = vpop.permute.xlu0 %1788
          %1792 = vset.pattern.permute.xlu0 0
          %1793 = vperm.xlu0 %1792, %v1609
          %v1794 = vpop.permute.xlu0 %1793
          %1797 = vset.pattern.permute.xlu0 0
          %1798 = vperm.xlu0 %1797, %v1610
          %v1799 = vpop.permute.xlu0 %1798
          %1802 = vset.pattern.permute.xlu0 0
          %1803 = vperm.xlu0 %1802, %v1611
          %v1804 = vpop.permute.xlu0 %1803
          %v1806 = vmul.f32 %v1614, %v1649
          %v1807 = vmul.f32 %v1615, %v1654
          %v1808 = vmul.f32 %v1616, %v1659
          %v1809 = vmul.f32 %v1617, %v1664
          %v1810 = vmul.f32 %v1618, %v1669
          %v1811 = vmul.f32 %v1619, %v1674
          %v1812 = vmul.f32 %v1620, %v1679
          %v1813 = vmul.f32 %v1621, %v1684
          %v1814 = vmul.f32 %v1622, %v1689
          %v1815 = vmul.f32 %v1623, %v1694
          %v1816 = vmul.f32 %v1624, %v1699
          %v1817 = vmul.f32 %v1625, %v1704
          %v1818 = vmul.f32 %v1626, %v1709
          %v1819 = vmul.f32 %v1627, %v1714
          %v1820 = vmul.f32 %v1628, %v1719
          %v1821 = vmul.f32 %v1629, %v1724
          %v1822 = vmul.f32 %v1630, %v1729
          %v1823 = vmul.f32 %v1631, %v1734
          %v1824 = vmul.f32 %v1632, %v1739
          %v1825 = vmul.f32 %v1633, %v1744
          %v1826 = vmul.f32 %v1634, %v1749
          %v1827 = vmul.f32 %v1635, %v1754
          %v1828 = vmul.f32 %v1636, %v1759
          %v1829 = vmul.f32 %v1637, %v1764
          %v1830 = vmul.f32 %v1638, %v1769
          %v1831 = vmul.f32 %v1639, %v1774
          %v1832 = vmul.f32 %v1640, %v1779
          %v1833 = vmul.f32 %v1641, %v1784
          %v1834 = vmul.f32 %v1642, %v1789
          %v1835 = vmul.f32 %v1643, %v1794
          %v1836 = vmul.f32 %v1644, %v1799
          %v1837 = vmul.f32 %v1645, %v1804
          %v1838 = vround.ne.pseudo %v1806
          %v1839 = vround.ne.pseudo %v1807
          %v1840 = vround.ne.pseudo %v1808
          %v1841 = vround.ne.pseudo %v1809
          %v1842 = vround.ne.pseudo %v1810
          %v1843 = vround.ne.pseudo %v1811
          %v1844 = vround.ne.pseudo %v1812
          %v1845 = vround.ne.pseudo %v1813
          %v1846 = vround.ne.pseudo %v1814
          %v1847 = vround.ne.pseudo %v1815
          %v1848 = vround.ne.pseudo %v1816
          %v1849 = vround.ne.pseudo %v1817
          %v1850 = vround.ne.pseudo %v1818
          %v1851 = vround.ne.pseudo %v1819
          %v1852 = vround.ne.pseudo %v1820
          %v1853 = vround.ne.pseudo %v1821
          %v1854 = vround.ne.pseudo %v1822
          %v1855 = vround.ne.pseudo %v1823
          %v1856 = vround.ne.pseudo %v1824
          %v1857 = vround.ne.pseudo %v1825
          %v1858 = vround.ne.pseudo %v1826
          %v1859 = vround.ne.pseudo %v1827
          %v1860 = vround.ne.pseudo %v1828
          %v1861 = vround.ne.pseudo %v1829
          %v1862 = vround.ne.pseudo %v1830
          %v1863 = vround.ne.pseudo %v1831
          %v1864 = vround.ne.pseudo %v1832
          %v1865 = vround.ne.pseudo %v1833
          %v1866 = vround.ne.pseudo %v1834
          %v1867 = vround.ne.pseudo %v1835
          %v1868 = vround.ne.pseudo %v1836
          %v1869 = vround.ne.pseudo %v1837
          %v1870 = vmax.f32 %v1838, -127.0
          %v1871 = vmax.f32 %v1839, -127.0
          %v1872 = vmax.f32 %v1840, -127.0
          %v1873 = vmax.f32 %v1841, -127.0
          %v1874 = vmax.f32 %v1842, -127.0
          %v1875 = vmax.f32 %v1843, -127.0
          %v1876 = vmax.f32 %v1844, -127.0
          %v1877 = vmax.f32 %v1845, -127.0
          %v1878 = vmax.f32 %v1846, -127.0
          %v1879 = vmax.f32 %v1847, -127.0
          %v1880 = vmax.f32 %v1848, -127.0
          %v1881 = vmax.f32 %v1849, -127.0
          %v1882 = vmax.f32 %v1850, -127.0
          %v1883 = vmax.f32 %v1851, -127.0
          %v1884 = vmax.f32 %v1852, -127.0
          %v1885 = vmax.f32 %v1853, -127.0
          %v1886 = vmax.f32 %v1854, -127.0
          %v1887 = vmax.f32 %v1855, -127.0
          %v1888 = vmax.f32 %v1856, -127.0
          %v1889 = vmax.f32 %v1857, -127.0
          %v1890 = vmax.f32 %v1858, -127.0
          %v1891 = vmax.f32 %v1859, -127.0
          %v1892 = vmax.f32 %v1860, -127.0
          %v1893 = vmax.f32 %v1861, -127.0
          %v1894 = vmax.f32 %v1862, -127.0
          %v1895 = vmax.f32 %v1863, -127.0
          %v1896 = vmax.f32 %v1864, -127.0
          %v1897 = vmax.f32 %v1865, -127.0
          %v1898 = vmax.f32 %v1866, -127.0
          %v1899 = vmax.f32 %v1867, -127.0
          %v1900 = vmax.f32 %v1868, -127.0
          %v1901 = vmax.f32 %v1869, -127.0
          %v1902 = vmin.f32 %v1870, 127.0
          %v1903 = vmin.f32 %v1871, 127.0
          %v1904 = vmin.f32 %v1872, 127.0
          %v1905 = vmin.f32 %v1873, 127.0
          %v1906 = vmin.f32 %v1874, 127.0
          %v1907 = vmin.f32 %v1875, 127.0
          %v1908 = vmin.f32 %v1876, 127.0
          %v1909 = vmin.f32 %v1877, 127.0
          %v1910 = vmin.f32 %v1878, 127.0
          %v1911 = vmin.f32 %v1879, 127.0
          %v1912 = vmin.f32 %v1880, 127.0
          %v1913 = vmin.f32 %v1881, 127.0
          %v1914 = vmin.f32 %v1882, 127.0
          %v1915 = vmin.f32 %v1883, 127.0
          %v1916 = vmin.f32 %v1884, 127.0
          %v1917 = vmin.f32 %v1885, 127.0
          %v1918 = vmin.f32 %v1886, 127.0
          %v1919 = vmin.f32 %v1887, 127.0
          %v1920 = vmin.f32 %v1888, 127.0
          %v1921 = vmin.f32 %v1889, 127.0
          %v1922 = vmin.f32 %v1890, 127.0
          %v1923 = vmin.f32 %v1891, 127.0
          %v1924 = vmin.f32 %v1892, 127.0
          %v1925 = vmin.f32 %v1893, 127.0
          %v1926 = vmin.f32 %v1894, 127.0
          %v1927 = vmin.f32 %v1895, 127.0
          %v1928 = vmin.f32 %v1896, 127.0
          %v1929 = vmin.f32 %v1897, 127.0
          %v1930 = vmin.f32 %v1898, 127.0
          %v1931 = vmin.f32 %v1899, 127.0
          %v1932 = vmin.f32 %v1900, 127.0
          %v1933 = vmin.f32 %v1901, 127.0
          %v1934 = vld [vmem:[#allocation4] sm:$0xff]
          %v1935 = vld [vmem:[#allocation4 + $0x8] sm:$0xff]
          %v1936 = vld [vmem:[#allocation4 + $0x10] sm:$0xff]
          %v1937 = vld [vmem:[#allocation4 + $0x18] sm:$0xff]
          %v1938 = vld [vmem:[#allocation4 + $0x20] sm:$0xff]
          %v1939 = vld [vmem:[#allocation4 + $0x28] sm:$0xff]
          %v1940 = vld [vmem:[#allocation4 + $0x30] sm:$0xff]
          %v1941 = vld [vmem:[#allocation4 + $0x38] sm:$0xff]
          %v1942 = vld [vmem:[#allocation4 + $0x40] sm:$0xff]
          %v1943 = vld [vmem:[#allocation4 + $0x48] sm:$0xff]
          %v1944 = vld [vmem:[#allocation4 + $0x50] sm:$0xff]
          %v1945 = vld [vmem:[#allocation4 + $0x58] sm:$0xff]
          %v1946 = vld [vmem:[#allocation4 + $0x60] sm:$0xff]
          %v1947 = vld [vmem:[#allocation4 + $0x68] sm:$0xff]
          %v1948 = vld [vmem:[#allocation4 + $0x70] sm:$0xff]
          %v1949 = vld [vmem:[#allocation4 + $0x78] sm:$0xff]
          %v1950 = vld [vmem:[#allocation4 + $0x80] sm:$0xff]
          %v1951 = vld [vmem:[#allocation4 + $0x88] sm:$0xff]
          %v1952 = vld [vmem:[#allocation4 + $0x90] sm:$0xff]
          %v1953 = vld [vmem:[#allocation4 + $0x98] sm:$0xff]
          %v1954 = vld [vmem:[#allocation4 + $0xa0] sm:$0xff]
          %v1955 = vld [vmem:[#allocation4 + $0xa8] sm:$0xff]
          %v1956 = vld [vmem:[#allocation4 + $0xb0] sm:$0xff]
          %v1957 = vld [vmem:[#allocation4 + $0xb8] sm:$0xff]
          %v1958 = vld [vmem:[#allocation4 + $0xc0] sm:$0xff]
          %v1959 = vld [vmem:[#allocation4 + $0xc8] sm:$0xff]
          %v1960 = vld [vmem:[#allocation4 + $0xd0] sm:$0xff]
          %v1961 = vld [vmem:[#allocation4 + $0xd8] sm:$0xff]
          %v1962 = vld [vmem:[#allocation4 + $0xe0] sm:$0xff]
          %v1963 = vld [vmem:[#allocation4 + $0xe8] sm:$0xff]
          %v1964 = vld [vmem:[#allocation4 + $0xf0] sm:$0xff]
          %v1965 = vld [vmem:[#allocation4 + $0xf8] sm:$0xff]
          %v1966 = vpack.c.bf16 %v1903, %v1902
          %v1967 = vpack.c.bf16 %v1905, %v1904
          %v1968 = vpack.c.bf16 %v1907, %v1906
          %v1969 = vpack.c.bf16 %v1909, %v1908
          %v1970 = vpack.c.bf16 %v1911, %v1910
          %v1971 = vpack.c.bf16 %v1913, %v1912
          %v1972 = vpack.c.bf16 %v1915, %v1914
          %v1973 = vpack.c.bf16 %v1917, %v1916
          %v1974 = vpack.c.bf16 %v1919, %v1918
          %v1975 = vpack.c.bf16 %v1921, %v1920
          %v1976 = vpack.c.bf16 %v1923, %v1922
          %v1977 = vpack.c.bf16 %v1925, %v1924
          %v1978 = vpack.c.bf16 %v1927, %v1926
          %v1979 = vpack.c.bf16 %v1929, %v1928
          %v1980 = vpack.c.bf16 %v1931, %v1930
          %v1981 = vpack.c.bf16 %v1933, %v1932
          %v1982 = vld [vmem:[%s422] sm:$0xff]
          %v1983 = vld [vmem:[%s422 + $0x8] sm:$0xff]
          %v1984 = vld [vmem:[%s422 + $0x10] sm:$0xff]
          %v1985 = vld [vmem:[%s422 + $0x18] sm:$0xff]
          %v1986 = vunpack.c.l.s8.bf16 %v1982
          %v1987 = vunpack.c.h.s8.bf16 %v1982
          %v1988 = vunpack.c.l.s8.bf16 %v1983
          %v1989 = vunpack.c.h.s8.bf16 %v1983
          %v1990 = vunpack.c.l.s8.bf16 %v1984
          %v1991 = vunpack.c.h.s8.bf16 %v1984
          %v1992 = vunpack.c.l.s8.bf16 %v1985
          %v1993 = vunpack.c.h.s8.bf16 %v1985
          %1994 = vmatprep.subr.bf16.mxu0 0
          %1995 = vmatpush1.bf16.msra.mxu0 %v1986
          %1996 = vmatprep.subr.bf16.mxu0 0
          %1997 = vmatpush1.bf16.msra.mxu0 %v1987
          %1998 = vmatprep.subr.bf16.mxu0 0
          %1999 = vmatpush1.bf16.msra.mxu0 %v1988
          %2000 = vmatprep.subr.bf16.mxu0 0
          %2001 = vmatpush1.bf16.msra.mxu0 %v1989
          %2002 = vmatprep.subr.bf16.mxu0 0
          %2003 = vmatpush1.bf16.msra.mxu0 %v1990
          %2004 = vmatprep.subr.bf16.mxu0 0
          %2005 = vmatpush1.bf16.msra.mxu0 %v1991
          %2006 = vmatprep.subr.bf16.mxu0 0
          %2007 = vmatpush1.bf16.msra.mxu0 %v1992
          %2008 = vmatprep.subr.bf16.mxu0 0
          %2009 = vmatpush1.bf16.msra.mxu0 %v1993
          %2010 = vmatprep.subr.bf16.mxu0 0
          %2011 = vmatpush1.bf16.msra.mxu0 0
          %2012 = vmatprep.subr.bf16.mxu0 0
          %2013 = vmatpush1.bf16.msra.mxu0 0
          %2014 = vmatprep.subr.bf16.mxu0 0
          %2015 = vmatpush1.bf16.msra.mxu0 0
          %2016 = vmatprep.subr.bf16.mxu0 0
          %2017 = vmatpush1.bf16.msra.mxu0 0
          %2018 = vmatprep.subr.bf16.mxu0 0
          %2019 = vmatpush1.bf16.msra.mxu0 0
          %2020 = vmatprep.subr.bf16.mxu0 0
          %2021 = vmatpush1.bf16.msra.mxu0 0
          %2022 = vmatprep.subr.bf16.mxu0 0
          %2023 = vmatpush1.bf16.msra.mxu0 0
          %2024 = vmatprep.subr.bf16.mxu0 0
          %2025 = vmatpush1.bf16.msra.mxu0 0
          %2026 = vmatprep.mubr.bf16.mxu0 0
          %2027 = vmatmul.mubr.bf16.gmra.mrb[0].mxu0 %v1966
          %v2028 = vpop.f32.mrb[0].mxu0
          %v2029 = vadd.f32 0.0, %v2028
          %v2030 = vpop.f32.mrb[0].mxu0
          %v2031 = vpop.f32.mrb[0].mxu0
          %v2032 = vadd.f32 0.0, %v2031
          %v2033 = vpop.f32.mrb[0].mxu0
          %2034 = vmatprep.mubr.bf16.mxu0 0
          %2035 = vmatmul.mubr.bf16.gmra.mrb[0].mxu0 %v1967
          %v2036 = vpop.f32.mrb[0].mxu0
          %v2037 = vadd.f32 0.0, %v2036
          %v2038 = vpop.f32.mrb[0].mxu0
          %v2039 = vpop.f32.mrb[0].mxu0
          %v2040 = vadd.f32 0.0, %v2039
          %v2041 = vpop.f32.mrb[0].mxu0
          %2042 = vmatprep.mubr.bf16.mxu0 0
          %2043 = vmatmul.mubr.bf16.gmra.mrb[0].mxu0 %v1968
          %v2044 = vpop.f32.mrb[0].mxu0
          %v2045 = vadd.f32 0.0, %v2044
          %v2046 = vpop.f32.mrb[0].mxu0
          %v2047 = vpop.f32.mrb[0].mxu0
          %v2048 = vadd.f32 0.0, %v2047
          %v2049 = vpop.f32.mrb[0].mxu0
          %2050 = vmatprep.mubr.bf16.mxu0 0
          %2051 = vmatmul.mubr.bf16.gmra.mrb[0].mxu0 %v1969
          %v2052 = vpop.f32.mrb[0].mxu0
          %v2053 = vadd.f32 0.0, %v2052
          %v2054 = vpop.f32.mrb[0].mxu0
          %v2055 = vpop.f32.mrb[0].mxu0
          %v2056 = vadd.f32 0.0, %v2055
          %v2057 = vpop.f32.mrb[0].mxu0
          %2058 = vmatprep.mubr.bf16.mxu0 0
          %2059 = vmatmul.mubr.bf16.gmra.mrb[0].mxu0 %v1970
          %v2060 = vpop.f32.mrb[0].mxu0
          %v2061 = vadd.f32 0.0, %v2060
          %v2062 = vpop.f32.mrb[0].mxu0
          %v2063 = vpop.f32.mrb[0].mxu0
          %v2064 = vadd.f32 0.0, %v2063
          %v2065 = vpop.f32.mrb[0].mxu0
          %2066 = vmatprep.mubr.bf16.mxu0 0
          %2067 = vmatmul.mubr.bf16.gmra.mrb[0].mxu0 %v1971
          %v2068 = vpop.f32.mrb[0].mxu0
          %v2069 = vadd.f32 0.0, %v2068
          %v2070 = vpop.f32.mrb[0].mxu0
          %v2071 = vpop.f32.mrb[0].mxu0
          %v2072 = vadd.f32 0.0, %v2071
          %v2073 = vpop.f32.mrb[0].mxu0
          %2074 = vmatprep.mubr.bf16.mxu0 0
          %2075 = vmatmul.mubr.bf16.gmra.mrb[0].mxu0 %v1972
          %v2076 = vpop.f32.mrb[0].mxu0
          %v2077 = vadd.f32 0.0, %v2076
          %v2078 = vpop.f32.mrb[0].mxu0
          %v2079 = vpop.f32.mrb[0].mxu0
          %v2080 = vadd.f32 0.0, %v2079
          %v2081 = vpop.f32.mrb[0].mxu0
          %2082 = vmatprep.mubr.bf16.mxu0 0
          %2083 = vmatmul.mubr.bf16.gmra.mrb[0].mxu0 %v1973
          %v2084 = vpop.f32.mrb[0].mxu0
          %v2085 = vadd.f32 0.0, %v2084
          %v2086 = vpop.f32.mrb[0].mxu0
          %v2087 = vpop.f32.mrb[0].mxu0
          %v2088 = vadd.f32 0.0, %v2087
          %v2089 = vpop.f32.mrb[0].mxu0
          %2090 = vmatprep.mubr.bf16.mxu0 0
          %2091 = vmatmul.mubr.bf16.gmra.mrb[0].mxu0 %v1974
          %v2092 = vpop.f32.mrb[0].mxu0
          %v2093 = vadd.f32 0.0, %v2092
          %v2094 = vpop.f32.mrb[0].mxu0
          %v2095 = vpop.f32.mrb[0].mxu0
          %v2096 = vadd.f32 0.0, %v2095
          %v2097 = vpop.f32.mrb[0].mxu0
          %2098 = vmatprep.mubr.bf16.mxu0 0
          %2099 = vmatmul.mubr.bf16.gmra.mrb[0].mxu0 %v1975
          %v2100 = vpop.f32.mrb[0].mxu0
          %v2101 = vadd.f32 0.0, %v2100
          %v2102 = vpop.f32.mrb[0].mxu0
          %v2103 = vpop.f32.mrb[0].mxu0
          %v2104 = vadd.f32 0.0, %v2103
          %v2105 = vpop.f32.mrb[0].mxu0
          %2106 = vmatprep.mubr.bf16.mxu0 0
          %2107 = vmatmul.mubr.bf16.gmra.mrb[0].mxu0 %v1976
          %v2108 = vpop.f32.mrb[0].mxu0
          %v2109 = vadd.f32 0.0, %v2108
          %v2110 = vpop.f32.mrb[0].mxu0
          %v2111 = vpop.f32.mrb[0].mxu0
          %v2112 = vadd.f32 0.0, %v2111
          %v2113 = vpop.f32.mrb[0].mxu0
          %2114 = vmatprep.mubr.bf16.mxu0 0
          %2115 = vmatmul.mubr.bf16.gmra.mrb[0].mxu0 %v1977
          %v2116 = vpop.f32.mrb[0].mxu0
          %v2117 = vadd.f32 0.0, %v2116
          %v2118 = vpop.f32.mrb[0].mxu0
          %v2119 = vpop.f32.mrb[0].mxu0
          %v2120 = vadd.f32 0.0, %v2119
          %v2121 = vpop.f32.mrb[0].mxu0
          %2122 = vmatprep.mubr.bf16.mxu0 0
          %2123 = vmatmul.mubr.bf16.gmra.mrb[0].mxu0 %v1978
          %v2124 = vpop.f32.mrb[0].mxu0
          %v2125 = vadd.f32 0.0, %v2124
          %v2126 = vpop.f32.mrb[0].mxu0
          %v2127 = vpop.f32.mrb[0].mxu0
          %v2128 = vadd.f32 0.0, %v2127
          %v2129 = vpop.f32.mrb[0].mxu0
          %2130 = vmatprep.mubr.bf16.mxu0 0
          %2131 = vmatmul.mubr.bf16.gmra.mrb[0].mxu0 %v1979
          %v2132 = vpop.f32.mrb[0].mxu0
          %v2133 = vadd.f32 0.0, %v2132
          %v2134 = vpop.f32.mrb[0].mxu0
          %v2135 = vpop.f32.mrb[0].mxu0
          %v2136 = vadd.f32 0.0, %v2135
          %v2137 = vpop.f32.mrb[0].mxu0
          %2138 = vmatprep.mubr.bf16.mxu0 0
          %2139 = vmatmul.mubr.bf16.gmra.mrb[0].mxu0 %v1980
          %v2140 = vpop.f32.mrb[0].mxu0
          %v2141 = vadd.f32 0.0, %v2140
          %v2142 = vpop.f32.mrb[0].mxu0
          %v2143 = vpop.f32.mrb[0].mxu0
          %v2144 = vadd.f32 0.0, %v2143
          %v2145 = vpop.f32.mrb[0].mxu0
          %2146 = vmatprep.mubr.bf16.mxu0 0
          %2147 = vmatmul.mubr.bf16.gmra.mrb[0].mxu0 %v1981
          %v2148 = vpop.f32.mrb[0].mxu0
          %v2149 = vadd.f32 0.0, %v2148
          %v2150 = vpop.f32.mrb[0].mxu0
          %v2151 = vpop.f32.mrb[0].mxu0
          %v2152 = vadd.f32 0.0, %v2151
          %v2153 = vpop.f32.mrb[0].mxu0
          %2154 = vdwg.mxu0
          %v2155 = vadd.f32 %v1934, %v2029
          %v2156 = vadd.f32 %v1935, %v2032
          %v2157 = vadd.f32 %v1936, %v2037
          %v2158 = vadd.f32 %v1937, %v2040
          %v2159 = vadd.f32 %v1938, %v2045
          %v2160 = vadd.f32 %v1939, %v2048
          %v2161 = vadd.f32 %v1940, %v2053
          %v2162 = vadd.f32 %v1941, %v2056
          %v2163 = vadd.f32 %v1942, %v2061
          %v2164 = vadd.f32 %v1943, %v2064
          %v2165 = vadd.f32 %v1944, %v2069
          %v2166 = vadd.f32 %v1945, %v2072
          %v2167 = vadd.f32 %v1946, %v2077
          %v2168 = vadd.f32 %v1947, %v2080
          %v2169 = vadd.f32 %v1948, %v2085
          %v2170 = vadd.f32 %v1949, %v2088
          %v2171 = vadd.f32 %v1950, %v2093
          %v2172 = vadd.f32 %v1951, %v2096
          %v2173 = vadd.f32 %v1952, %v2101
          %v2174 = vadd.f32 %v1953, %v2104
          %v2175 = vadd.f32 %v1954, %v2109
          %v2176 = vadd.f32 %v1955, %v2112
          %v2177 = vadd.f32 %v1956, %v2117
          %v2178 = vadd.f32 %v1957, %v2120
          %v2179 = vadd.f32 %v1958, %v2125
          %v2180 = vadd.f32 %v1959, %v2128
          %v2181 = vadd.f32 %v1960, %v2133
          %v2182 = vadd.f32 %v1961, %v2136
          %v2183 = vadd.f32 %v1962, %v2141
          %v2184 = vadd.f32 %v1963, %v2144
          %v2185 = vadd.f32 %v1964, %v2149
          %v2186 = vadd.f32 %v1965, %v2152
          %2187 = vst [vmem:[#allocation4] sm:$0xff] %v2155
          %2188 = vst [vmem:[#allocation4 + $0x8] sm:$0xff] %v2156
          %2189 = vst [vmem:[#allocation4 + $0x10] sm:$0xff] %v2157
          %2190 = vst [vmem:[#allocation4 + $0x18] sm:$0xff] %v2158
          %2191 = vst [vmem:[#allocation4 + $0x20] sm:$0xff] %v2159
          %2192 = vst [vmem:[#allocation4 + $0x28] sm:$0xff] %v2160
          %2193 = vst [vmem:[#allocation4 + $0x30] sm:$0xff] %v2161
          %2194 = vst [vmem:[#allocation4 + $0x38] sm:$0xff] %v2162
          %2195 = vst [vmem:[#allocation4 + $0x40] sm:$0xff] %v2163
          %2196 = vst [vmem:[#allocation4 + $0x48] sm:$0xff] %v2164
          %2197 = vst [vmem:[#allocation4 + $0x50] sm:$0xff] %v2165
          %2198 = vst [vmem:[#allocation4 + $0x58] sm:$0xff] %v2166
          %2199 = vst [vmem:[#allocation4 + $0x60] sm:$0xff] %v2167
          %2200 = vst [vmem:[#allocation4 + $0x68] sm:$0xff] %v2168
          %2201 = vst [vmem:[#allocation4 + $0x70] sm:$0xff] %v2169
          %2202 = vst [vmem:[#allocation4 + $0x78] sm:$0xff] %v2170
          %2203 = vst [vmem:[#allocation4 + $0x80] sm:$0xff] %v2171
          %2204 = vst [vmem:[#allocation4 + $0x88] sm:$0xff] %v2172
          %2205 = vst [vmem:[#allocation4 + $0x90] sm:$0xff] %v2173
          %2206 = vst [vmem:[#allocation4 + $0x98] sm:$0xff] %v2174
          %2207 = vst [vmem:[#allocation4 + $0xa0] sm:$0xff] %v2175
          %2208 = vst [vmem:[#allocation4 + $0xa8] sm:$0xff] %v2176
          %2209 = vst [vmem:[#allocation4 + $0xb0] sm:$0xff] %v2177
          %2210 = vst [vmem:[#allocation4 + $0xb8] sm:$0xff] %v2178
          %2211 = vst [vmem:[#allocation4 + $0xc0] sm:$0xff] %v2179
          %2212 = vst [vmem:[#allocation4 + $0xc8] sm:$0xff] %v2180
          %2213 = vst [vmem:[#allocation4 + $0xd0] sm:$0xff] %v2181
          %2214 = vst [vmem:[#allocation4 + $0xd8] sm:$0xff] %v2182
          %2215 = vst [vmem:[#allocation4 + $0xe0] sm:$0xff] %v2183
          %2216 = vst [vmem:[#allocation4 + $0xe8] sm:$0xff] %v2184
          %2217 = vst [vmem:[#allocation4 + $0xf0] sm:$0xff] %v2185
          %2218 = vst [vmem:[#allocation4 + $0xf8] sm:$0xff] %v2186
          %p2219 = scmp.eq.s32.totalorder %s26, 3
          // Predicated region
          $region103: #{tpu_custom_call.1} parent=97 // pred_check
            %p2220 = pneg %p2219
          $region104: #{tpu_custom_call.1} parent=97 // pred_check_branch
            %2222 = sbr.rel (%p2220) target = $region106
          $region105: #{tpu_custom_call.1} parent=97 // pred_region
            %v2223 = vld [vmem:[#allocation3] sm:$0xff]
            %v2224 = vld [vmem:[#allocation3 + $0x8] sm:$0xff]
            %v2225 = vld [vmem:[#allocation3 + $0x10] sm:$0xff]
            %v2226 = vld [vmem:[#allocation3 + $0x18] sm:$0xff]
            %v2227 = vld [vmem:[#allocation3 + $0x20] sm:$0xff]
            %v2228 = vld [vmem:[#allocation3 + $0x28] sm:$0xff]
            %v2229 = vld [vmem:[#allocation3 + $0x30] sm:$0xff]
            %v2230 = vld [vmem:[#allocation3 + $0x38] sm:$0xff]
            %v2231 = vld [vmem:[#allocation3 + $0x40] sm:$0xff]
            %v2232 = vld [vmem:[#allocation3 + $0x48] sm:$0xff]
            %v2233 = vld [vmem:[#allocation3 + $0x50] sm:$0xff]
            %v2234 = vld [vmem:[#allocation3 + $0x58] sm:$0xff]
            %v2235 = vld [vmem:[#allocation3 + $0x60] sm:$0xff]
            %v2236 = vld [vmem:[#allocation3 + $0x68] sm:$0xff]
            %v2237 = vld [vmem:[#allocation3 + $0x70] sm:$0xff]
            %v2238 = vld [vmem:[#allocation3 + $0x78] sm:$0xff]
            %v2239 = vld [vmem:[#allocation3 + $0x80] sm:$0xff]
            %v2240 = vld [vmem:[#allocation3 + $0x88] sm:$0xff]
            %v2241 = vld [vmem:[#allocation3 + $0x90] sm:$0xff]
            %v2242 = vld [vmem:[#allocation3 + $0x98] sm:$0xff]
            %v2243 = vld [vmem:[#allocation3 + $0xa0] sm:$0xff]
            %v2244 = vld [vmem:[#allocation3 + $0xa8] sm:$0xff]
            %v2245 = vld [vmem:[#allocation3 + $0xb0] sm:$0xff]
            %v2246 = vld [vmem:[#allocation3 + $0xb8] sm:$0xff]
            %v2247 = vld [vmem:[#allocation3 + $0xc0] sm:$0xff]
            %v2248 = vld [vmem:[#allocation3 + $0xc8] sm:$0xff]
            %v2249 = vld [vmem:[#allocation3 + $0xd0] sm:$0xff]
            %v2250 = vld [vmem:[#allocation3 + $0xd8] sm:$0xff]
            %v2251 = vld [vmem:[#allocation3 + $0xe0] sm:$0xff]
            %v2252 = vld [vmem:[#allocation3 + $0xe8] sm:$0xff]
            %v2253 = vld [vmem:[#allocation3 + $0xf0] sm:$0xff]
            %v2254 = vld [vmem:[#allocation3 + $0xf8] sm:$0xff]
            %v2255 = vmax.f32 %v2223, 1e-08
            %v2256 = vmax.f32 %v2224, 1e-08
            %v2257 = vmax.f32 %v2225, 1e-08
            %v2258 = vmax.f32 %v2226, 1e-08
            %v2259 = vmax.f32 %v2227, 1e-08
            %v2260 = vmax.f32 %v2228, 1e-08
            %v2261 = vmax.f32 %v2229, 1e-08
            %v2262 = vmax.f32 %v2230, 1e-08
            %v2263 = vmax.f32 %v2231, 1e-08
            %v2264 = vmax.f32 %v2232, 1e-08
            %v2265 = vmax.f32 %v2233, 1e-08
            %v2266 = vmax.f32 %v2234, 1e-08
            %v2267 = vmax.f32 %v2235, 1e-08
            %v2268 = vmax.f32 %v2236, 1e-08
            %v2269 = vmax.f32 %v2237, 1e-08
            %v2270 = vmax.f32 %v2238, 1e-08
            %v2271 = vmax.f32 %v2239, 1e-08
            %v2272 = vmax.f32 %v2240, 1e-08
            %v2273 = vmax.f32 %v2241, 1e-08
            %v2274 = vmax.f32 %v2242, 1e-08
            %v2275 = vmax.f32 %v2243, 1e-08
            %v2276 = vmax.f32 %v2244, 1e-08
            %v2277 = vmax.f32 %v2245, 1e-08
            %v2278 = vmax.f32 %v2246, 1e-08
            %v2279 = vmax.f32 %v2247, 1e-08
            %v2280 = vmax.f32 %v2248, 1e-08
            %v2281 = vmax.f32 %v2249, 1e-08
            %v2282 = vmax.f32 %v2250, 1e-08
            %v2283 = vmax.f32 %v2251, 1e-08
            %v2284 = vmax.f32 %v2252, 1e-08
            %v2285 = vmax.f32 %v2253, 1e-08
            %v2286 = vmax.f32 %v2254, 1e-08
            %v2287 = vmul.f32 %v2255, 0.007874016
            %v2288 = vmul.f32 %v2256, 0.007874016
            %v2289 = vmul.f32 %v2257, 0.007874016
            %v2290 = vmul.f32 %v2258, 0.007874016
            %v2291 = vmul.f32 %v2259, 0.007874016
            %v2292 = vmul.f32 %v2260, 0.007874016
            %v2293 = vmul.f32 %v2261, 0.007874016
            %v2294 = vmul.f32 %v2262, 0.007874016
            %v2295 = vmul.f32 %v2263, 0.007874016
            %v2296 = vmul.f32 %v2264, 0.007874016
            %v2297 = vmul.f32 %v2265, 0.007874016
            %v2298 = vmul.f32 %v2266, 0.007874016
            %v2299 = vmul.f32 %v2267, 0.007874016
            %v2300 = vmul.f32 %v2268, 0.007874016
            %v2301 = vmul.f32 %v2269, 0.007874016
            %v2302 = vmul.f32 %v2270, 0.007874016
            %v2303 = vmul.f32 %v2271, 0.007874016
            %v2304 = vmul.f32 %v2272, 0.007874016
            %v2305 = vmul.f32 %v2273, 0.007874016
            %v2306 = vmul.f32 %v2274, 0.007874016
            %v2307 = vmul.f32 %v2275, 0.007874016
            %v2308 = vmul.f32 %v2276, 0.007874016
            %v2309 = vmul.f32 %v2277, 0.007874016
            %v2310 = vmul.f32 %v2278, 0.007874016
            %v2311 = vmul.f32 %v2279, 0.007874016
            %v2312 = vmul.f32 %v2280, 0.007874016
            %v2313 = vmul.f32 %v2281, 0.007874016
            %v2314 = vmul.f32 %v2282, 0.007874016
            %v2315 = vmul.f32 %v2283, 0.007874016
            %v2316 = vmul.f32 %v2284, 0.007874016
            %v2317 = vmul.f32 %v2285, 0.007874016
            %v2318 = vmul.f32 %v2286, 0.007874016
            %v2319 = vld [vmem:[#allocation4] sm:$0xff]
            %v2320 = vld [vmem:[#allocation4 + $0x8] sm:$0xff]
            %v2321 = vld [vmem:[#allocation4 + $0x10] sm:$0xff]
            %v2322 = vld [vmem:[#allocation4 + $0x18] sm:$0xff]
            %v2323 = vld [vmem:[#allocation4 + $0x20] sm:$0xff]
            %v2324 = vld [vmem:[#allocation4 + $0x28] sm:$0xff]
            %v2325 = vld [vmem:[#allocation4 + $0x30] sm:$0xff]
            %v2326 = vld [vmem:[#allocation4 + $0x38] sm:$0xff]
            %v2327 = vld [vmem:[#allocation4 + $0x40] sm:$0xff]
            %v2328 = vld [vmem:[#allocation4 + $0x48] sm:$0xff]
            %v2329 = vld [vmem:[#allocation4 + $0x50] sm:$0xff]
            %v2330 = vld [vmem:[#allocation4 + $0x58] sm:$0xff]
            %v2331 = vld [vmem:[#allocation4 + $0x60] sm:$0xff]
            %v2332 = vld [vmem:[#allocation4 + $0x68] sm:$0xff]
            %v2333 = vld [vmem:[#allocation4 + $0x70] sm:$0xff]
            %v2334 = vld [vmem:[#allocation4 + $0x78] sm:$0xff]
            %v2335 = vld [vmem:[#allocation4 + $0x80] sm:$0xff]
            %v2336 = vld [vmem:[#allocation4 + $0x88] sm:$0xff]
            %v2337 = vld [vmem:[#allocation4 + $0x90] sm:$0xff]
            %v2338 = vld [vmem:[#allocation4 + $0x98] sm:$0xff]
            %v2339 = vld [vmem:[#allocation4 + $0xa0] sm:$0xff]
            %v2340 = vld [vmem:[#allocation4 + $0xa8] sm:$0xff]
            %v2341 = vld [vmem:[#allocation4 + $0xb0] sm:$0xff]
            %v2342 = vld [vmem:[#allocation4 + $0xb8] sm:$0xff]
            %v2343 = vld [vmem:[#allocation4 + $0xc0] sm:$0xff]
            %v2344 = vld [vmem:[#allocation4 + $0xc8] sm:$0xff]
            %v2345 = vld [vmem:[#allocation4 + $0xd0] sm:$0xff]
            %v2346 = vld [vmem:[#allocation4 + $0xd8] sm:$0xff]
            %v2347 = vld [vmem:[#allocation4 + $0xe0] sm:$0xff]
            %v2348 = vld [vmem:[#allocation4 + $0xe8] sm:$0xff]
            %v2349 = vld [vmem:[#allocation4 + $0xf0] sm:$0xff]
            %v2350 = vld [vmem:[#allocation4 + $0xf8] sm:$0xff]
            %2352 = vset.pattern.permute.xlu0 0
            %2353 = vperm.xlu0 %2352, %v2287
            %v2354 = vpop.permute.xlu0 %2353
            %2357 = vset.pattern.permute.xlu0 0
            %2358 = vperm.xlu0 %2357, %v2288
            %v2359 = vpop.permute.xlu0 %2358
            %2362 = vset.pattern.permute.xlu0 0
            %2363 = vperm.xlu0 %2362, %v2289
            %v2364 = vpop.permute.xlu0 %2363
            %2367 = vset.pattern.permute.xlu0 0
            %2368 = vperm.xlu0 %2367, %v2290
            %v2369 = vpop.permute.xlu0 %2368
            %2372 = vset.pattern.permute.xlu0 0
            %2373 = vperm.xlu0 %2372, %v2291
            %v2374 = vpop.permute.xlu0 %2373
            %2377 = vset.pattern.permute.xlu0 0
            %2378 = vperm.xlu0 %2377, %v2292
            %v2379 = vpop.permute.xlu0 %2378
            %2382 = vset.pattern.permute.xlu0 0
            %2383 = vperm.xlu0 %2382, %v2293
            %v2384 = vpop.permute.xlu0 %2383
            %2387 = vset.pattern.permute.xlu0 0
            %2388 = vperm.xlu0 %2387, %v2294
            %v2389 = vpop.permute.xlu0 %2388
            %2392 = vset.pattern.permute.xlu0 0
            %2393 = vperm.xlu0 %2392, %v2295
            %v2394 = vpop.permute.xlu0 %2393
            %2397 = vset.pattern.permute.xlu0 0
            %2398 = vperm.xlu0 %2397, %v2296
            %v2399 = vpop.permute.xlu0 %2398
            %2402 = vset.pattern.permute.xlu0 0
            %2403 = vperm.xlu0 %2402, %v2297
            %v2404 = vpop.permute.xlu0 %2403
            %2407 = vset.pattern.permute.xlu0 0
            %2408 = vperm.xlu0 %2407, %v2298
            %v2409 = vpop.permute.xlu0 %2408
            %2412 = vset.pattern.permute.xlu0 0
            %2413 = vperm.xlu0 %2412, %v2299
            %v2414 = vpop.permute.xlu0 %2413
            %2417 = vset.pattern.permute.xlu0 0
            %2418 = vperm.xlu0 %2417, %v2300
            %v2419 = vpop.permute.xlu0 %2418
            %2422 = vset.pattern.permute.xlu0 0
            %2423 = vperm.xlu0 %2422, %v2301
            %v2424 = vpop.permute.xlu0 %2423
            %2427 = vset.pattern.permute.xlu0 0
            %2428 = vperm.xlu0 %2427, %v2302
            %v2429 = vpop.permute.xlu0 %2428
            %2432 = vset.pattern.permute.xlu0 0
            %2433 = vperm.xlu0 %2432, %v2303
            %v2434 = vpop.permute.xlu0 %2433
            %2437 = vset.pattern.permute.xlu0 0
            %2438 = vperm.xlu0 %2437, %v2304
            %v2439 = vpop.permute.xlu0 %2438
            %2442 = vset.pattern.permute.xlu0 0
            %2443 = vperm.xlu0 %2442, %v2305
            %v2444 = vpop.permute.xlu0 %2443
            %2447 = vset.pattern.permute.xlu0 0
            %2448 = vperm.xlu0 %2447, %v2306
            %v2449 = vpop.permute.xlu0 %2448
            %2452 = vset.pattern.permute.xlu0 0
            %2453 = vperm.xlu0 %2452, %v2307
            %v2454 = vpop.permute.xlu0 %2453
            %2457 = vset.pattern.permute.xlu0 0
            %2458 = vperm.xlu0 %2457, %v2308
            %v2459 = vpop.permute.xlu0 %2458
            %2462 = vset.pattern.permute.xlu0 0
            %2463 = vperm.xlu0 %2462, %v2309
            %v2464 = vpop.permute.xlu0 %2463
            %2467 = vset.pattern.permute.xlu0 0
            %2468 = vperm.xlu0 %2467, %v2310
            %v2469 = vpop.permute.xlu0 %2468
            %2472 = vset.pattern.permute.xlu0 0
            %2473 = vperm.xlu0 %2472, %v2311
            %v2474 = vpop.permute.xlu0 %2473
            %2477 = vset.pattern.permute.xlu0 0
            %2478 = vperm.xlu0 %2477, %v2312
            %v2479 = vpop.permute.xlu0 %2478
            %2482 = vset.pattern.permute.xlu0 0
            %2483 = vperm.xlu0 %2482, %v2313
            %v2484 = vpop.permute.xlu0 %2483
            %2487 = vset.pattern.permute.xlu0 0
            %2488 = vperm.xlu0 %2487, %v2314
            %v2489 = vpop.permute.xlu0 %2488
            %2492 = vset.pattern.permute.xlu0 0
            %2493 = vperm.xlu0 %2492, %v2315
            %v2494 = vpop.permute.xlu0 %2493
            %2497 = vset.pattern.permute.xlu0 0
            %2498 = vperm.xlu0 %2497, %v2316
            %v2499 = vpop.permute.xlu0 %2498
            %2502 = vset.pattern.permute.xlu0 0
            %2503 = vperm.xlu0 %2502, %v2317
            %v2504 = vpop.permute.xlu0 %2503
            %2507 = vset.pattern.permute.xlu0 0
            %2508 = vperm.xlu0 %2507, %v2318
            %v2509 = vpop.permute.xlu0 %2508
            %v2511 = vmul.f32 %v2319, %v2354
            %v2512 = vmul.f32 %v2320, %v2359
            %v2513 = vmul.f32 %v2321, %v2364
            %v2514 = vmul.f32 %v2322, %v2369
            %v2515 = vmul.f32 %v2323, %v2374
            %v2516 = vmul.f32 %v2324, %v2379
            %v2517 = vmul.f32 %v2325, %v2384
            %v2518 = vmul.f32 %v2326, %v2389
            %v2519 = vmul.f32 %v2327, %v2394
            %v2520 = vmul.f32 %v2328, %v2399
            %v2521 = vmul.f32 %v2329, %v2404
            %v2522 = vmul.f32 %v2330, %v2409
            %v2523 = vmul.f32 %v2331, %v2414
            %v2524 = vmul.f32 %v2332, %v2419
            %v2525 = vmul.f32 %v2333, %v2424
            %v2526 = vmul.f32 %v2334, %v2429
            %v2527 = vmul.f32 %v2335, %v2434
            %v2528 = vmul.f32 %v2336, %v2439
            %v2529 = vmul.f32 %v2337, %v2444
            %v2530 = vmul.f32 %v2338, %v2449
            %v2531 = vmul.f32 %v2339, %v2454
            %v2532 = vmul.f32 %v2340, %v2459
            %v2533 = vmul.f32 %v2341, %v2464
            %v2534 = vmul.f32 %v2342, %v2469
            %v2535 = vmul.f32 %v2343, %v2474
            %v2536 = vmul.f32 %v2344, %v2479
            %v2537 = vmul.f32 %v2345, %v2484
            %v2538 = vmul.f32 %v2346, %v2489
            %v2539 = vmul.f32 %v2347, %v2494
            %v2540 = vmul.f32 %v2348, %v2499
            %v2541 = vmul.f32 %v2349, %v2504
            %v2542 = vmul.f32 %v2350, %v2509
            %v2543 = vld [vmem:[%s5] sm:$0x1]
            %v2545 = vlaneseq
            %v2546 = vshrl.u32 %v2545, 7
            %v2547 = vsub.s32 0, %v2546
            %v2548 = vrot.slane %v2543, %v2547
            %v2550 = vmul.f32 %v2511, %v2548
            %v2551 = vmul.f32 %v2512, %v2548
            %v2552 = vmul.f32 %v2513, %v2548
            %v2553 = vmul.f32 %v2514, %v2548
            %v2554 = vmul.f32 %v2515, %v2548
            %v2555 = vmul.f32 %v2516, %v2548
            %v2556 = vmul.f32 %v2517, %v2548
            %v2557 = vmul.f32 %v2518, %v2548
            %v2558 = vmul.f32 %v2519, %v2548
            %v2559 = vmul.f32 %v2520, %v2548
            %v2560 = vmul.f32 %v2521, %v2548
            %v2561 = vmul.f32 %v2522, %v2548
            %v2562 = vmul.f32 %v2523, %v2548
            %v2563 = vmul.f32 %v2524, %v2548
            %v2564 = vmul.f32 %v2525, %v2548
            %v2565 = vmul.f32 %v2526, %v2548
            %v2566 = vmul.f32 %v2527, %v2548
            %v2567 = vmul.f32 %v2528, %v2548
            %v2568 = vmul.f32 %v2529, %v2548
            %v2569 = vmul.f32 %v2530, %v2548
            %v2570 = vmul.f32 %v2531, %v2548
            %v2571 = vmul.f32 %v2532, %v2548
            %v2572 = vmul.f32 %v2533, %v2548
            %v2573 = vmul.f32 %v2534, %v2548
            %v2574 = vmul.f32 %v2535, %v2548
            %v2575 = vmul.f32 %v2536, %v2548
            %v2576 = vmul.f32 %v2537, %v2548
            %v2577 = vmul.f32 %v2538, %v2548
            %v2578 = vmul.f32 %v2539, %v2548
            %v2579 = vmul.f32 %v2540, %v2548
            %v2580 = vmul.f32 %v2541, %v2548
            %v2581 = vmul.f32 %v2542, %v2548
            %v2582 = vpack.c.bf16 %v2551, %v2550
            %v2583 = vpack.c.bf16 %v2553, %v2552
            %v2584 = vpack.c.bf16 %v2555, %v2554
            %v2585 = vpack.c.bf16 %v2557, %v2556
            %v2586 = vpack.c.bf16 %v2559, %v2558
            %v2587 = vpack.c.bf16 %v2561, %v2560
            %v2588 = vpack.c.bf16 %v2563, %v2562
            %v2589 = vpack.c.bf16 %v2565, %v2564
            %v2590 = vpack.c.bf16 %v2567, %v2566
            %v2591 = vpack.c.bf16 %v2569, %v2568
            %v2592 = vpack.c.bf16 %v2571, %v2570
            %v2593 = vpack.c.bf16 %v2573, %v2572
            %v2594 = vpack.c.bf16 %v2575, %v2574
            %v2595 = vpack.c.bf16 %v2577, %v2576
            %v2596 = vpack.c.bf16 %v2579, %v2578
            %v2597 = vpack.c.bf16 %v2581, %v2580
            %v2614 = vunpack.c.l.b16 %v2582
            %v2615 = vunpack.c.h.b16 %v2582
            %v2616 = vunpack.c.l.b16 %v2583
            %v2617 = vunpack.c.h.b16 %v2583
            %v2618 = vunpack.c.l.b16 %v2584
            %v2619 = vunpack.c.h.b16 %v2584
            %v2620 = vunpack.c.l.b16 %v2585
            %v2621 = vunpack.c.h.b16 %v2585
            %v2622 = vunpack.c.l.b16 %v2586
            %v2623 = vunpack.c.h.b16 %v2586
            %v2624 = vunpack.c.l.b16 %v2587
            %v2625 = vunpack.c.h.b16 %v2587
            %v2626 = vunpack.c.l.b16 %v2588
            %v2627 = vunpack.c.h.b16 %v2588
            %v2628 = vunpack.c.l.b16 %v2589
            %v2629 = vunpack.c.h.b16 %v2589
            %v2630 = vunpack.c.l.b16 %v2590
            %v2631 = vunpack.c.h.b16 %v2590
            %v2632 = vunpack.c.l.b16 %v2591
            %v2633 = vunpack.c.h.b16 %v2591
            %v2634 = vunpack.c.l.b16 %v2592
            %v2635 = vunpack.c.h.b16 %v2592
            %v2636 = vunpack.c.l.b16 %v2593
            %v2637 = vunpack.c.h.b16 %v2593
            %v2638 = vunpack.c.l.b16 %v2594
            %v2639 = vunpack.c.h.b16 %v2594
            %v2640 = vunpack.c.l.b16 %v2595
            %v2641 = vunpack.c.h.b16 %v2595
            %v2642 = vunpack.c.l.b16 %v2596
            %v2643 = vunpack.c.h.b16 %v2596
            %v2644 = vunpack.c.l.b16 %v2597
            %v2645 = vunpack.c.h.b16 %v2597
            %v2646 = vpack.c.b16 %v2614, %v2614
            %v2647 = vpack.c.b16 %v2615, %v2615
            %v2648 = vpack.c.b16 %v2616, %v2616
            %v2649 = vpack.c.b16 %v2617, %v2617
            %v2650 = vpack.c.b16 %v2618, %v2618
            %v2651 = vpack.c.b16 %v2619, %v2619
            %v2652 = vpack.c.b16 %v2620, %v2620
            %v2653 = vpack.c.b16 %v2621, %v2621
            %v2654 = vpack.c.b16 %v2622, %v2622
            %v2655 = vpack.c.b16 %v2623, %v2623
            %v2656 = vpack.c.b16 %v2624, %v2624
            %v2657 = vpack.c.b16 %v2625, %v2625
            %v2658 = vpack.c.b16 %v2626, %v2626
            %v2659 = vpack.c.b16 %v2627, %v2627
            %v2660 = vpack.c.b16 %v2628, %v2628
            %v2661 = vpack.c.b16 %v2629, %v2629
            %v2662 = vpack.c.b16 %v2630, %v2630
            %v2663 = vpack.c.b16 %v2631, %v2631
            %v2664 = vpack.c.b16 %v2632, %v2632
            %v2665 = vpack.c.b16 %v2633, %v2633
            %v2666 = vpack.c.b16 %v2634, %v2634
            %v2667 = vpack.c.b16 %v2635, %v2635
            %v2668 = vpack.c.b16 %v2636, %v2636
            %v2669 = vpack.c.b16 %v2637, %v2637
            %v2670 = vpack.c.b16 %v2638, %v2638
            %v2671 = vpack.c.b16 %v2639, %v2639
            %v2672 = vpack.c.b16 %v2640, %v2640
            %v2673 = vpack.c.b16 %v2641, %v2641
            %v2674 = vpack.c.b16 %v2642, %v2642
            %v2675 = vpack.c.b16 %v2643, %v2643
            %v2676 = vpack.c.b16 %v2644, %v2644
            %v2677 = vpack.c.b16 %v2645, %v2645
            %2710 = vst [vmem:[#allocation9] sm:$0xf] %v2646
            %2711 = vst [vmem:[#allocation9 + $0x4] sm:$0xf] %v2647
            %2712 = vst [vmem:[#allocation9 + $0x8] sm:$0xf] %v2648
            %2713 = vst [vmem:[#allocation9 + $0xc] sm:$0xf] %v2649
            %2714 = vst [vmem:[#allocation9 + $0x10] sm:$0xf] %v2650
            %2715 = vst [vmem:[#allocation9 + $0x14] sm:$0xf] %v2651
            %2716 = vst [vmem:[#allocation9 + $0x18] sm:$0xf] %v2652
            %2717 = vst [vmem:[#allocation9 + $0x1c] sm:$0xf] %v2653
            %2718 = vst [vmem:[#allocation9 + $0x20] sm:$0xf] %v2654
            %2719 = vst [vmem:[#allocation9 + $0x24] sm:$0xf] %v2655
            %2720 = vst [vmem:[#allocation9 + $0x28] sm:$0xf] %v2656
            %2721 = vst [vmem:[#allocation9 + $0x2c] sm:$0xf] %v2657
            %2722 = vst [vmem:[#allocation9 + $0x30] sm:$0xf] %v2658
            %2723 = vst [vmem:[#allocation9 + $0x34] sm:$0xf] %v2659
            %2724 = vst [vmem:[#allocation9 + $0x38] sm:$0xf] %v2660
            %2725 = vst [vmem:[#allocation9 + $0x3c] sm:$0xf] %v2661
            %2726 = vst [vmem:[#allocation9 + $0x40] sm:$0xf] %v2662
            %2727 = vst [vmem:[#allocation9 + $0x44] sm:$0xf] %v2663
            %2728 = vst [vmem:[#allocation9 + $0x48] sm:$0xf] %v2664
            %2729 = vst [vmem:[#allocation9 + $0x4c] sm:$0xf] %v2665
            %2730 = vst [vmem:[#allocation9 + $0x50] sm:$0xf] %v2666
            %2731 = vst [vmem:[#allocation9 + $0x54] sm:$0xf] %v2667
            %2732 = vst [vmem:[#allocation9 + $0x58] sm:$0xf] %v2668
            %2733 = vst [vmem:[#allocation9 + $0x5c] sm:$0xf] %v2669
            %2734 = vst [vmem:[#allocation9 + $0x60] sm:$0xf] %v2670
            %2735 = vst [vmem:[#allocation9 + $0x64] sm:$0xf] %v2671
            %2736 = vst [vmem:[#allocation9 + $0x68] sm:$0xf] %v2672
            %2737 = vst [vmem:[#allocation9 + $0x6c] sm:$0xf] %v2673
            %2738 = vst [vmem:[#allocation9 + $0x70] sm:$0xf] %v2674
            %2739 = vst [vmem:[#allocation9 + $0x74] sm:$0xf] %v2675
            %2740 = vst [vmem:[#allocation9 + $0x78] sm:$0xf] %v2676
            %2741 = vst [vmem:[#allocation9 + $0x7c] sm:$0xf] %v2677
          $region106: #{tpu_custom_call.1} parent=97 // pred_fallthru
            _
        $region98: #{tpu_custom_call.1} parent=77 // pred_fallthru
          _
        // Predicated region
        $region107: #{tpu_custom_call.1} parent=77 // pred_check
          %p2742 = pneg %p219
        $region108: #{tpu_custom_call.1} parent=77 // pred_check_branch
          %2744 = sbr.rel (%p2742) target = $region110
        $region109: #{tpu_custom_call.1} parent=77 // pred_region
          %s2745 = smul.u32 32, %s24
          %s2747 = ssub.s32 2048, 2048
          %2748 = vsyncadd [#allocation7], %s2747
          %s2749 = smul.addr %s2745, 64
          %s2750 = scalar_lea.hbm %s6, %s2749
          %s2751 = sshll.u32 [#allocation9], 4
          %s2752 = int_to_ptr.vmem [resolvable:$true] %s2751
          %2757 = dma.vmem_to_hbm [thread:$0]  %s2752, 2048, %s2750, [#allocation7], 64, 64, 4
        $region110: #{tpu_custom_call.1} parent=77 // pred_fallthru
          _
        // Predicated region
        $region111: #{tpu_custom_call.1} parent=77 // pred_check
          %p2758 = pneg %p219
        $region112: #{tpu_custom_call.1} parent=77 // pred_check_branch
          %2760 = sbr.rel (%p2758) target = $region114
        $region113: #{tpu_custom_call.1} parent=77 // pred_region
          %2761 = dma.done [#allocation7], 2048
        $region114: #{tpu_custom_call.1} parent=77 // pred_fallthru
          _
      $region78: #{tpu_custom_call.1} parent=5 // pred_fallthru
        _
      %p2762 = scmp.le.s32.totalorder 2, %s14
      // Predicated region
      $region115: #{tpu_custom_call.1} parent=5 // pred_check
        %p2763 = pneg %p2762
      $region116: #{tpu_custom_call.1} parent=5 // pred_check_branch
        %2765 = sbr.rel (%p2763) target = $region118
      $region117: #{tpu_custom_call.1} parent=5 // pred_region
        %s2766 = ssub.s32 %s14, 2
      $region118: #{tpu_custom_call.1} parent=5 // pred_fallthru
        _
    $region6: #{tpu_custom_call.1} parent=1 // loop_footer
      %s18 = sadd.s32 1, %s14
    $region7: #{tpu_custom_call.1} parent=1 // loop_footer_branch
      %13 = sbr.rel target = $region3
    $region8: #{tpu_custom_call.1} parent=1 // loop_exit
      _
    %2767 = vsyncpa [#allocation6], 1
    %s2768 = scalar_lea.sflag [#allocation6], 1
    %2769 = vsyncpa %s2768, 1
    %2770 = vsyncpa [#allocation7], 1
    %s2771 = scalar_lea.sflag [#allocation7], 1
    %2772 = vsyncpa %s2771, 1

</llo_original>
